<compile_context>
chip_gen: v5e
topology: v5e:2x2
jax: 0.10.0
libtpu: 0.0.40
codegen_flags: <defaults>
</compile_context>

<pallas_src>
import jax
import jax.numpy as jnp
from jax.experimental import pallas as pl
from jax.experimental.pallas import tpu as pltpu


def _make_kernel(d_total, td, mask_tail):
    def kernel(x_ref, w_ref, b_ref, o_ref, acc_ref):
        # x_ref: (tb, td) VMEM, native dtype; w_ref: (td, 1) VMEM; b_ref: (1,) SMEM f32;
        # o_ref: (tb, 1) VMEM (x.dtype); acc_ref: (tb, 1) VMEM f32 scratch.
        k = pl.program_id(1)

        @pl.when(k == 0)
        def _init():
            acc_ref[...] = jnp.zeros_like(acc_ref)

        x = x_ref[...]
        w = w_ref[...]
        if mask_tail:
            # Last D block is ragged: zero the out-of-range columns/rows so whatever
            # garbage Pallas reads past D cannot contribute (or inject NaNs).
            col = k * td + jax.lax.broadcasted_iota(jnp.int32, x.shape, 1)
            x = jnp.where(col < d_total, x, jnp.zeros_like(x))
            row = k * td + jax.lax.broadcasted_iota(jnp.int32, w.shape, 0)
            w = jnp.where(row < d_total, w, jnp.zeros_like(w))

        # (tb, td) @ (td, 1) on the MXU, f32 accumulation; x stays in its native dtype.
        acc_ref[...] += jnp.dot(x, w, preferred_element_type=jnp.float32)

        @pl.when(k == pl.num_programs(1) - 1)
        def _finalize():
            o_ref[...] = (acc_ref[...] + b_ref[0]).astype(o_ref.dtype)

    return kernel


def _round_up(n, m):
    return ((n + m - 1) // m) * m


def _choose_tiles(B, D, itemsize, block_batch, budget):
    # A (td, 1) weight block lane-pads to (td, 128) in VMEM -> 128 * itemsize bytes / column.
    per_col = 8 * itemsize + 128 * itemsize  # 8-row x slab + lane-padded weight column
    if D * per_col <= budget:
        td = D                               # single reduction step (common case)
    else:
        td = (budget // (2 * per_col)) // 128 * 128
        td = max(128, min(4096, td))
    nd = pl.cdiv(D, td)
    max_tb = max(8, (budget // (td * itemsize)) // 8 * 8)
    tb = min(block_batch, max_tb, _round_up(B, 8))
    nb = pl.cdiv(B, tb)
    return tb, td, nb, nd


def logistic_residual_pallas(x, weight, bias, *, block_batch=2048,
                             vmem_tile_budget_bytes=4 * 1024 * 1024,
                             input_buffer_count=2):
    """Tiled Pallas forward of fc(x).squeeze(-1) for x of shape (B, D)."""
    B, D = x.shape
    w_col = jnp.asarray(weight).reshape(D, 1)            # pre-transposed once, outside the kernel
    bias_f32 = jnp.asarray(bias).astype(jnp.float32).reshape(1)

    itemsize = x.dtype.itemsize
    tb, td, nb, nd = _choose_tiles(B, D, itemsize, block_batch, vmem_tile_budget_bytes)
    mask_tail = (D % td) != 0

    n_x_buf = max(2, int(input_buffer_count))
    vmem_need = (n_x_buf * tb * td * itemsize             # streamed x tiles
                 + 2 * td * 128 * w_col.dtype.itemsize    # (td, 1) weight blocks, lane padded
                 + 2 * tb * 128 * itemsize                # (tb, 1) output blocks, lane padded
                 + tb * 128 * 4)                          # f32 accumulator scratch
    vmem_limit = int(min(max(2 * vmem_need, 16 * 1024 * 1024), 48 * 1024 * 1024))

    if int(input_buffer_count) != 2:
        # Optional deeper pipelining knob if xprof shows exposed input DMA.
        x_spec = pl.BlockSpec((tb, td), lambda i, k: (i, k),
                              pipeline_mode=pl.Buffered(int(input_buffer_count)))
    else:
        x_spec = pl.BlockSpec((tb, td), lambda i, k: (i, k))

    out = pl.pallas_call(
        _make_kernel(D, td, mask_tail),
        out_shape=jax.ShapeDtypeStruct((B, 1), x.dtype),
        grid_spec=pltpu.PrefetchScalarGridSpec(
            num_scalar_prefetch=0,
            grid=(nb, nd),                                # reduction axis (D) innermost
            in_specs=[
                x_spec,                                                  # x: streamed per tile
                pl.BlockSpec((td, 1), lambda i, k: (k, 0)),              # weight column
                pl.BlockSpec(memory_space=pltpu.MemorySpace.SMEM),       # bias: f32 scalar
            ],
            out_specs=pl.BlockSpec((tb, 1), lambda i, k: (i, 0)),
            scratch_shapes=[pltpu.VMEM((tb, 1), jnp.float32)],
        ),
        compiler_params=pltpu.CompilerParams(
            # TODO(synk): on v7x, if xprof shows one TensorCore idle, switch the batch axis
            # to pltpu.CORE_PARALLEL (plain "parallel" vs "arbitrary" barely changes codegen).
            dimension_semantics=("parallel", "arbitrary"),
            vmem_limit_bytes=vmem_limit,
        ),
        cost_estimate=pl.CostEstimate(
            flops=2 * B * D,
            transcendentals=0,
            bytes_accessed=B * D * itemsize + D * w_col.dtype.itemsize + B * itemsize,
        ),
    )(x, w_col, bias_f32)

    return out[:, 0]                                      # squeeze(-1)


def logistic_residual(x, weight, bias, *, min_pallas_elements=1 << 19, **pallas_kwargs):
    """Forward pass of LogisticResidual for x of shape (..., D).

    Small problems use a single fused XLA op (kernel-launch + per-step overhead dwarfs a
    handful of FMAs); large ones use the tiled Pallas kernel.
    """
    D = x.shape[-1]
    lead = x.shape[:-1]
    x2 = x.reshape(-1, D)
    B = x2.shape[0]
    if B * D < min_pallas_elements:
        w = jnp.asarray(weight).reshape(D, 1).astype(jnp.float32)
        y = (jnp.dot(x2.astype(jnp.float32), w, preferred_element_type=jnp.float32)
             + jnp.asarray(bias).astype(jnp.float32).reshape(1, 1)).astype(x.dtype)[:, 0]
    else:
        y = logistic_residual_pallas(x2, weight, bias, **pallas_kwargs)
    return y.reshape(lead)


if __name__ == "__main__":
    key = jax.random.PRNGKey(0)
    kx1, kx2, kx3, kw1, kb1, kw2, kb2, kw3, kb3 = jax.random.split(key, 9)

    # --- Config 1: module default (input_dim=1), tiny batch -> fused-XLA dispatch path.
    d_s, b_s = 1, 8
    w_s = jax.random.uniform(kw1, (1, d_s), jnp.float32, -1.0, 1.0)
    bias_s = jax.random.uniform(kb1, (1,), jnp.float32, -1.0, 1.0)
    x_s = jax.random.normal(kx1, (b_s, d_s), jnp.float32)
    y_s = jax.block_until_ready(logistic_residual(x_s, w_s, bias_s))
    ref_s = (x_s @ w_s.T + bias_s)[:, 0]
    assert y_s.shape == (b_s,), y_s.shape
    assert jnp.allclose(y_s, ref_s, atol=1e-5, rtol=1e-5)

    # --- Config 2: Pallas via the dispatcher, default tiles (one ~2 MiB batch block).
    d_l, b_l = 256, 2048
    bound = 1.0 / (d_l ** 0.5)
    w_l = jax.random.uniform(kw2, (1, d_l), jnp.float32, -bound, bound)
    bias_l = jax.random.uniform(kb2, (1,), jnp.float32, -bound, bound)
    x_l = jax.random.normal(kx2, (b_l, d_l), jnp.float32)
    ref_l = (x_l @ w_l.T + bias_l)[:, 0]
    y_l = jax.block_until_ready(logistic_residual(x_l, w_l, bias_l))
    assert y_l.shape == (b_l,), y_l.shape
    assert jnp.allclose(y_l, ref_l, atol=1e-4, rtol=1e-4)

    # --- Config 3: multi-block pipelined path (4 batch tiles of 512 rows).
    y_t = jax.block_until_ready(logistic_residual_pallas(x_l, w_l, bias_l, block_batch=512))
    assert jnp.allclose(y_t, ref_l, atol=1e-4, rtol=1e-4)

    # --- Config 4: ragged batch (no jnp.pad copy; Pallas handles the partial last block,
    #     garbage tail rows are simply never in the (B, 1) output).
    x_r = x_l[:1000]
    y_r = jax.block_until_ready(logistic_residual_pallas(x_r, w_l, bias_l, block_batch=512))
    assert y_r.shape == (1000,), y_r.shape
    assert jnp.allclose(y_r, ref_l[:1000], atol=1e-4, rtol=1e-4)

    # --- Config 5: wide-feature / D-tiled reduction path with a ragged last D block
    #     (forced via a tiny VMEM tile budget so td=128 < D=200; exercises the in-kernel mask).
    d_w, b_w = 200, 264
    bound = 1.0 / (d_w ** 0.5)
    w_w = jax.random.uniform(kw3, (1, d_w), jnp.float32, -bound, bound)
    bias_w = jax.random.uniform(kb3, (1,), jnp.float32, -bound, bound)
    x_w = jax.random.normal(kx3, (b_w, d_w), jnp.float32)
    ref_w = (x_w @ w_w.T + bias_w)[:, 0]
    y_w = jax.block_until_ready(
        logistic_residual_pallas(x_w, w_w, bias_w, vmem_tile_budget_bytes=64 * 1024))
    assert y_w.shape == (b_w,), y_w.shape
    assert jnp.allclose(y_w, ref_w, atol=1e-4, rtol=1e-4)

    print("KERNEL_OK")
</pallas_src>

<mosaic_0001>
module attributes {stable_mosaic.version = 11 : i64} {
  func.func @kernel(%arg0: i32, %arg1: i32, %arg2: memref<2048x256xf32, #tpu.memory_space<vmem>>, %arg3: memref<256x1xf32, #tpu.memory_space<vmem>>, %arg4: memref<1xf32, #tpu.memory_space<smem>>, %arg5: memref<2048x1xf32, #tpu.memory_space<vmem>>, %arg6: memref<2048x1xf32, #tpu.memory_space<vmem>>) attributes {dimension_semantics = [#tpu.dimension_semantics<parallel>, #tpu.dimension_semantics<arbitrary>], iteration_bounds = array<i64: 1, 1>, scalar_prefetch = 0 : i64, scratch_operands = 1 : i64, tpu.core_type = #tpu.core_type<tc>, window_params = [{transform_indices = @transform_0, window_bounds = array<i64: 2048, 256>}, {transform_indices = @transform_1, window_bounds = array<i64: 256, 1>}, {transform_indices = @transform_2, window_bounds = array<i64: 1>}, {transform_indices = @transform_3, window_bounds = array<i64: 2048, 1>}]} {
    %c0_i32 = arith.constant 0 : i32
    %0 = arith.cmpi eq, %arg1, %c0_i32 : i32
    %1 = arith.extui %0 : i1 to i32
    %c0_i32_0 = arith.constant 0 : i32
    %2 = arith.cmpi ne, %1, %c0_i32_0 : i32
    scf.if %2 {
      %cst_10 = arith.constant 0.000000e+00 : f32
      %12 = vector.broadcast %cst_10 : f32 to vector<2048x1xf32>
      %c0_11 = arith.constant 0 : index
      %c0_12 = arith.constant 0 : index
      %13 = vector.load %arg6[%c0_11, %c0_12] : memref<2048x1xf32, #tpu.memory_space<vmem>>, vector<2048x1xf32>
      tpu.vector_store %arg6[%c0_11, %c0_12], %12 {strides = array<i32>} : memref<2048x1xf32, #tpu.memory_space<vmem>>, vector<2048x1xf32>,
    } else {
    }
    %c0 = arith.constant 0 : index
    %c0_1 = arith.constant 0 : index
    %3 = vector.load %arg2[%c0, %c0_1] : memref<2048x256xf32, #tpu.memory_space<vmem>>, vector<2048x256xf32>
    %c0_2 = arith.constant 0 : index
    %c0_3 = arith.constant 0 : index
    %4 = vector.load %arg3[%c0_2, %c0_3] : memref<256x1xf32, #tpu.memory_space<vmem>>, vector<256x1xf32>
    %c0_4 = arith.constant 0 : index
    %c0_5 = arith.constant 0 : index
    %5 = vector.load %arg6[%c0_4, %c0_5] : memref<2048x1xf32, #tpu.memory_space<vmem>>, vector<2048x1xf32>
    %cst = arith.constant dense<0.000000e+00> : vector<2048x1xf32>
    %6 = tpu.matmul %3, %4, %cst {dimension_numbers = #tpu.dot_dimension_numbers<[1], [0], [0], [1], [0, 0, 1, 1], [], []>} : vector<2048x256xf32>, vector<256x1xf32>, vector<2048x1xf32> -> vector<2048x1xf32>
    %7 = arith.addf %5, %6 : vector<2048x1xf32>
    %c0_6 = arith.constant 0 : index
    %c0_7 = arith.constant 0 : index
    %8 = vector.load %arg6[%c0_6, %c0_7] : memref<2048x1xf32, #tpu.memory_space<vmem>>, vector<2048x1xf32>
    tpu.vector_store %arg6[%c0_6, %c0_7], %7 {strides = array<i32>} : memref<2048x1xf32, #tpu.memory_space<vmem>>, vector<2048x1xf32>,
    %c0_i32_8 = arith.constant 0 : i32
    %9 = arith.cmpi eq, %arg1, %c0_i32_8 : i32
    %10 = arith.extui %9 : i1 to i32
    %c0_i32_9 = arith.constant 0 : i32
    %11 = arith.cmpi ne, %10, %c0_i32_9 : i32
    scf.if %11 {
      %c0_10 = arith.constant 0 : index
      %c0_11 = arith.constant 0 : index
      %12 = vector.load %arg6[%c0_10, %c0_11] : memref<2048x1xf32, #tpu.memory_space<vmem>>, vector<2048x1xf32>
      %c0_12 = arith.constant 0 : index
      %13 = memref.load %arg4[%c0_12] : memref<1xf32, #tpu.memory_space<smem>>
      %14 = vector.broadcast %13 : f32 to vector<2048x1xf32>
      %15 = arith.addf %12, %14 : vector<2048x1xf32>
      %c0_13 = arith.constant 0 : index
      %c0_14 = arith.constant 0 : index
      %16 = vector.load %arg5[%c0_13, %c0_14] : memref<2048x1xf32, #tpu.memory_space<vmem>>, vector<2048x1xf32>
      tpu.vector_store %arg5[%c0_13, %c0_14], %15 {strides = array<i32>} : memref<2048x1xf32, #tpu.memory_space<vmem>>, vector<2048x1xf32>,
    } else {
    }
    return
  }
  func.func @transform_0(%arg0: i32, %arg1: i32) -> (i32, i32) {
    %c0_i32 = arith.constant 0 : i32
    return %arg0, %arg1 : i32, i32
  }
  func.func @transform_1(%arg0: i32, %arg1: i32) -> (i32, i32) {
    %c0_i32 = arith.constant 0 : i32
    %c0_i32_0 = arith.constant 0 : i32
    return %arg1, %c0_i32 : i32, i32
  }
  func.func @transform_2(%arg0: i32, %arg1: i32) -> i32 {
    %c0_i32 = arith.constant 0 : i32
    %c0_i32_0 = arith.constant 0 : i32
    return %c0_i32 : i32
  }
  func.func @transform_3(%arg0: i32, %arg1: i32) -> (i32, i32) {
    %c0_i32 = arith.constant 0 : i32
    %c0_i32_0 = arith.constant 0 : i32
    return %arg0, %c0_i32 : i32, i32
  }
}

</mosaic_0001>

<llo_original>
// kernel: tpu_custom_call.1
$region0: #{tpu_custom_call.1}
  #allocation0 [shape = 'u32[]', space=smem, size = 0x4, offset = 0x4, fixed_abs, tag = 'smem constant byte address 0x4 - core index']
  #allocation1 [shape = 'u32[72,128]{1,0:T(1,128)}', space=vmem, size = 0x9000, scoped, tag = 'internal scratch']
  #allocation2 [shape = 'f32[2048,1]{1,0:T(8,128)}', space=vmem, size = 0x100000, scoped, tag = 'scratch operand']
  #allocation3 [shape = 'f32[1]{0:T(128)S(6)}', space=smem, size = 0x200, scoped, tag = 'scoped memory for tpu_custom_call.1']
  %s0 = inlined_call_operand.hbm [shape: f32[2048,256], index: 0, kind: input, shape index: {}]
  %s1 = inlined_call_operand.vmem [shape: f32[256,1], index: 1, kind: input, shape index: {}]
  %s2 = inlined_call_operand.<no memory space> [shape: f32[1], index: 2, kind: input, shape index: {}]
  %s3 = inlined_call_operand.vmem [shape: f32[2048,1], index: 3, kind: output, shape index: {}]
  %s4 = sld [smem:[#allocation0]]
  $region34: #{tpu_custom_call.1} parent=0
    _
  %s6 = ssub.s32 1, %s4
  %s7 = scalar_select 0, %s6, %s4
  %8 = sst [smem:[#allocation3]] %s2
  $region1: #{tpu_custom_call.1} parent=0
    #allocation4 [shape = 'u8[2097152]{0}', space=vmem, size = 0x200000, scoped, tag = 'input window, operand 0, single buffered']
    #allocation5 [shape = 's32[1]{0}', space=sflag, size = 0x4, scoped, tag = 'scoped memory for tpu_custom_call.1']
    %9 = vsyncpa [#allocation5], 0
    // Predicated region
    $region2: #{tpu_custom_call.1} parent=1 // pred_check
      _
    $region3: #{tpu_custom_call.1} parent=1 // pred_check_branch
      %11 = sbr.rel (0) target = $region5
    $region4: #{tpu_custom_call.1} parent=1 // pred_region
      %13 = vsyncadd [#allocation5], 0
      %s14 = sshll.u32 %s0, 4
      %s15 = int_to_ptr.hbm [resolvable:$true] %s14
      %s16 = sshll.u32 [#allocation4], 4
      %s17 = int_to_ptr.vmem [resolvable:$true] %s16
      %22 = dma.hbm_to_vmem [thread:$0]  %s15, 65536, %s17, [#allocation5], 256, 256, 16
    $region5: #{tpu_custom_call.1} parent=1 // pred_fallthru
      _
    // Predicated region
    $region6: #{tpu_custom_call.1} parent=1 // pred_check
      _
    $region7: #{tpu_custom_call.1} parent=1 // pred_check_branch
      %24 = sbr.rel (0) target = $region9
    $region8: #{tpu_custom_call.1} parent=1 // pred_region
      _
    $region9: #{tpu_custom_call.1} parent=1 // pred_fallthru
      _
    // Predicated region
    $region10: #{tpu_custom_call.1} parent=1 // pred_check
      _
    $region11: #{tpu_custom_call.1} parent=1 // pred_check_branch
      %26 = sbr.rel (0) target = $region13
    $region12: #{tpu_custom_call.1} parent=1 // pred_region
      _
    $region13: #{tpu_custom_call.1} parent=1 // pred_fallthru
      _
    // Predicated region
    $region14: #{tpu_custom_call.1} parent=1 // pred_check
      _
    $region15: #{tpu_custom_call.1} parent=1 // pred_check_branch
      %28 = sbr.rel (0) target = $region17
    $region16: #{tpu_custom_call.1} parent=1 // pred_region
      %30 = dma.done [#allocation5], 65536
    $region17: #{tpu_custom_call.1} parent=1 // pred_fallthru
      _
    %p31 = scmp.eq.s32.totalorder 0, 0
    // Predicated region
    $region18: #{tpu_custom_call.1} parent=1 // pred_check
      %p32 = pneg %p31
    $region19: #{tpu_custom_call.1} parent=1 // pred_check_branch
      %34 = sbr.rel (%p32) target = $region21
    $region20: #{tpu_custom_call.1} parent=1 // pred_region
      %vm35 = vcmask 7168
      %36 = vst.msk [vmem:[#allocation2] sm:$0xff] %vm35, 0.0
      %37 = vst.msk [vmem:[#allocation2 + $0x8] sm:$0xff] %vm35, 0.0
      %38 = vst.msk [vmem:[#allocation2 + $0x10] sm:$0xff] %vm35, 0.0
      %39 = vst.msk [vmem:[#allocation2 + $0x18] sm:$0xff] %vm35, 0.0
      %40 = vst.msk [vmem:[#allocation2 + $0x20] sm:$0xff] %vm35, 0.0
      %41 = vst.msk [vmem:[#allocation2 + $0x28] sm:$0xff] %vm35, 0.0
      %42 = vst.msk [vmem:[#allocation2 + $0x30] sm:$0xff] %vm35, 0.0
      %43 = vst.msk [vmem:[#allocation2 + $0x38] sm:$0xff] %vm35, 0.0
      %44 = vst.msk [vmem:[#allocation2 + $0x40] sm:$0xff] %vm35, 0.0
      %45 = vst.msk [vmem:[#allocation2 + $0x48] sm:$0xff] %vm35, 0.0
      %46 = vst.msk [vmem:[#allocation2 + $0x50] sm:$0xff] %vm35, 0.0
      %47 = vst.msk [vmem:[#allocation2 + $0x58] sm:$0xff] %vm35, 0.0
      %48 = vst.msk [vmem:[#allocation2 + $0x60] sm:$0xff] %vm35, 0.0
      %49 = vst.msk [vmem:[#allocation2 + $0x68] sm:$0xff] %vm35, 0.0
      %50 = vst.msk [vmem:[#allocation2 + $0x70] sm:$0xff] %vm35, 0.0
      %51 = vst.msk [vmem:[#allocation2 + $0x78] sm:$0xff] %vm35, 0.0
      %52 = vst.msk [vmem:[#allocation2 + $0x80] sm:$0xff] %vm35, 0.0
      %53 = vst.msk [vmem:[#allocation2 + $0x88] sm:$0xff] %vm35, 0.0
      %54 = vst.msk [vmem:[#allocation2 + $0x90] sm:$0xff] %vm35, 0.0
      %55 = vst.msk [vmem:[#allocation2 + $0x98] sm:$0xff] %vm35, 0.0
      %56 = vst.msk [vmem:[#allocation2 + $0xa0] sm:$0xff] %vm35, 0.0
      %57 = vst.msk [vmem:[#allocation2 + $0xa8] sm:$0xff] %vm35, 0.0
      %58 = vst.msk [vmem:[#allocation2 + $0xb0] sm:$0xff] %vm35, 0.0
      %59 = vst.msk [vmem:[#allocation2 + $0xb8] sm:$0xff] %vm35, 0.0
      %60 = vst.msk [vmem:[#allocation2 + $0xc0] sm:$0xff] %vm35, 0.0
      %61 = vst.msk [vmem:[#allocation2 + $0xc8] sm:$0xff] %vm35, 0.0
      %62 = vst.msk [vmem:[#allocation2 + $0xd0] sm:$0xff] %vm35, 0.0
      %63 = vst.msk [vmem:[#allocation2 + $0xd8] sm:$0xff] %vm35, 0.0
      %64 = vst.msk [vmem:[#allocation2 + $0xe0] sm:$0xff] %vm35, 0.0
      %65 = vst.msk [vmem:[#allocation2 + $0xe8] sm:$0xff] %vm35, 0.0
      %66 = vst.msk [vmem:[#allocation2 + $0xf0] sm:$0xff] %vm35, 0.0
      %67 = vst.msk [vmem:[#allocation2 + $0xf8] sm:$0xff] %vm35, 0.0
      %68 = vst.msk [vmem:[#allocation2 + $0x100] sm:$0xff] %vm35, 0.0
      %69 = vst.msk [vmem:[#allocation2 + $0x108] sm:$0xff] %vm35, 0.0
      %70 = vst.msk [vmem:[#allocation2 + $0x110] sm:$0xff] %vm35, 0.0
      %71 = vst.msk [vmem:[#allocation2 + $0x118] sm:$0xff] %vm35, 0.0
      %72 = vst.msk [vmem:[#allocation2 + $0x120] sm:$0xff] %vm35, 0.0
      %73 = vst.msk [vmem:[#allocation2 + $0x128] sm:$0xff] %vm35, 0.0
      %74 = vst.msk [vmem:[#allocation2 + $0x130] sm:$0xff] %vm35, 0.0
      %75 = vst.msk [vmem:[#allocation2 + $0x138] sm:$0xff] %vm35, 0.0
      %76 = vst.msk [vmem:[#allocation2 + $0x140] sm:$0xff] %vm35, 0.0
      %77 = vst.msk [vmem:[#allocation2 + $0x148] sm:$0xff] %vm35, 0.0
      %78 = vst.msk [vmem:[#allocation2 + $0x150] sm:$0xff] %vm35, 0.0
      %79 = vst.msk [vmem:[#allocation2 + $0x158] sm:$0xff] %vm35, 0.0
      %80 = vst.msk [vmem:[#allocation2 + $0x160] sm:$0xff] %vm35, 0.0
      %81 = vst.msk [vmem:[#allocation2 + $0x168] sm:$0xff] %vm35, 0.0
      %82 = vst.msk [vmem:[#allocation2 + $0x170] sm:$0xff] %vm35, 0.0
      %83 = vst.msk [vmem:[#allocation2 + $0x178] sm:$0xff] %vm35, 0.0
      %84 = vst.msk [vmem:[#allocation2 + $0x180] sm:$0xff] %vm35, 0.0
      %85 = vst.msk [vmem:[#allocation2 + $0x188] sm:$0xff] %vm35, 0.0
      %86 = vst.msk [vmem:[#allocation2 + $0x190] sm:$0xff] %vm35, 0.0
      %87 = vst.msk [vmem:[#allocation2 + $0x198] sm:$0xff] %vm35, 0.0
      %88 = vst.msk [vmem:[#allocation2 + $0x1a0] sm:$0xff] %vm35, 0.0
      %89 = vst.msk [vmem:[#allocation2 + $0x1a8] sm:$0xff] %vm35, 0.0
      %90 = vst.msk [vmem:[#allocation2 + $0x1b0] sm:$0xff] %vm35, 0.0
      %91 = vst.msk [vmem:[#allocation2 + $0x1b8] sm:$0xff] %vm35, 0.0
      %92 = vst.msk [vmem:[#allocation2 + $0x1c0] sm:$0xff] %vm35, 0.0
      %93 = vst.msk [vmem:[#allocation2 + $0x1c8] sm:$0xff] %vm35, 0.0
      %94 = vst.msk [vmem:[#allocation2 + $0x1d0] sm:$0xff] %vm35, 0.0
      %95 = vst.msk [vmem:[#allocation2 + $0x1d8] sm:$0xff] %vm35, 0.0
      %96 = vst.msk [vmem:[#allocation2 + $0x1e0] sm:$0xff] %vm35, 0.0
      %97 = vst.msk [vmem:[#allocation2 + $0x1e8] sm:$0xff] %vm35, 0.0
      %98 = vst.msk [vmem:[#allocation2 + $0x1f0] sm:$0xff] %vm35, 0.0
      %99 = vst.msk [vmem:[#allocation2 + $0x1f8] sm:$0xff] %vm35, 0.0
      %100 = vst.msk [vmem:[#allocation2 + $0x200] sm:$0xff] %vm35, 0.0
      %101 = vst.msk [vmem:[#allocation2 + $0x208] sm:$0xff] %vm35, 0.0
      %102 = vst.msk [vmem:[#allocation2 + $0x210] sm:$0xff] %vm35, 0.0
      %103 = vst.msk [vmem:[#allocation2 + $0x218] sm:$0xff] %vm35, 0.0
      %104 = vst.msk [vmem:[#allocation2 + $0x220] sm:$0xff] %vm35, 0.0
      %105 = vst.msk [vmem:[#allocation2 + $0x228] sm:$0xff] %vm35, 0.0
      %106 = vst.msk [vmem:[#allocation2 + $0x230] sm:$0xff] %vm35, 0.0
      %107 = vst.msk [vmem:[#allocation2 + $0x238] sm:$0xff] %vm35, 0.0
      %108 = vst.msk [vmem:[#allocation2 + $0x240] sm:$0xff] %vm35, 0.0
      %109 = vst.msk [vmem:[#allocation2 + $0x248] sm:$0xff] %vm35, 0.0
      %110 = vst.msk [vmem:[#allocation2 + $0x250] sm:$0xff] %vm35, 0.0
      %111 = vst.msk [vmem:[#allocation2 + $0x258] sm:$0xff] %vm35, 0.0
      %112 = vst.msk [vmem:[#allocation2 + $0x260] sm:$0xff] %vm35, 0.0
      %113 = vst.msk [vmem:[#allocation2 + $0x268] sm:$0xff] %vm35, 0.0
      %114 = vst.msk [vmem:[#allocation2 + $0x270] sm:$0xff] %vm35, 0.0
      %115 = vst.msk [vmem:[#allocation2 + $0x278] sm:$0xff] %vm35, 0.0
      %116 = vst.msk [vmem:[#allocation2 + $0x280] sm:$0xff] %vm35, 0.0
      %117 = vst.msk [vmem:[#allocation2 + $0x288] sm:$0xff] %vm35, 0.0
      %118 = vst.msk [vmem:[#allocation2 + $0x290] sm:$0xff] %vm35, 0.0
      %119 = vst.msk [vmem:[#allocation2 + $0x298] sm:$0xff] %vm35, 0.0
      %120 = vst.msk [vmem:[#allocation2 + $0x2a0] sm:$0xff] %vm35, 0.0
      %121 = vst.msk [vmem:[#allocation2 + $0x2a8] sm:$0xff] %vm35, 0.0
      %122 = vst.msk [vmem:[#allocation2 + $0x2b0] sm:$0xff] %vm35, 0.0
      %123 = vst.msk [vmem:[#allocation2 + $0x2b8] sm:$0xff] %vm35, 0.0
      %124 = vst.msk [vmem:[#allocation2 + $0x2c0] sm:$0xff] %vm35, 0.0
      %125 = vst.msk [vmem:[#allocation2 + $0x2c8] sm:$0xff] %vm35, 0.0
      %126 = vst.msk [vmem:[#allocation2 + $0x2d0] sm:$0xff] %vm35, 0.0
      %127 = vst.msk [vmem:[#allocation2 + $0x2d8] sm:$0xff] %vm35, 0.0
      %128 = vst.msk [vmem:[#allocation2 + $0x2e0] sm:$0xff] %vm35, 0.0
      %129 = vst.msk [vmem:[#allocation2 + $0x2e8] sm:$0xff] %vm35, 0.0
      %130 = vst.msk [vmem:[#allocation2 + $0x2f0] sm:$0xff] %vm35, 0.0
      %131 = vst.msk [vmem:[#allocation2 + $0x2f8] sm:$0xff] %vm35, 0.0
      %132 = vst.msk [vmem:[#allocation2 + $0x300] sm:$0xff] %vm35, 0.0
      %133 = vst.msk [vmem:[#allocation2 + $0x308] sm:$0xff] %vm35, 0.0
      %134 = vst.msk [vmem:[#allocation2 + $0x310] sm:$0xff] %vm35, 0.0
      %135 = vst.msk [vmem:[#allocation2 + $0x318] sm:$0xff] %vm35, 0.0
      %136 = vst.msk [vmem:[#allocation2 + $0x320] sm:$0xff] %vm35, 0.0
      %137 = vst.msk [vmem:[#allocation2 + $0x328] sm:$0xff] %vm35, 0.0
      %138 = vst.msk [vmem:[#allocation2 + $0x330] sm:$0xff] %vm35, 0.0
      %139 = vst.msk [vmem:[#allocation2 + $0x338] sm:$0xff] %vm35, 0.0
      %140 = vst.msk [vmem:[#allocation2 + $0x340] sm:$0xff] %vm35, 0.0
      %141 = vst.msk [vmem:[#allocation2 + $0x348] sm:$0xff] %vm35, 0.0
      %142 = vst.msk [vmem:[#allocation2 + $0x350] sm:$0xff] %vm35, 0.0
      %143 = vst.msk [vmem:[#allocation2 + $0x358] sm:$0xff] %vm35, 0.0
      %144 = vst.msk [vmem:[#allocation2 + $0x360] sm:$0xff] %vm35, 0.0
      %145 = vst.msk [vmem:[#allocation2 + $0x368] sm:$0xff] %vm35, 0.0
      %146 = vst.msk [vmem:[#allocation2 + $0x370] sm:$0xff] %vm35, 0.0
      %147 = vst.msk [vmem:[#allocation2 + $0x378] sm:$0xff] %vm35, 0.0
      %148 = vst.msk [vmem:[#allocation2 + $0x380] sm:$0xff] %vm35, 0.0
      %149 = vst.msk [vmem:[#allocation2 + $0x388] sm:$0xff] %vm35, 0.0
      %150 = vst.msk [vmem:[#allocation2 + $0x390] sm:$0xff] %vm35, 0.0
      %151 = vst.msk [vmem:[#allocation2 + $0x398] sm:$0xff] %vm35, 0.0
      %152 = vst.msk [vmem:[#allocation2 + $0x3a0] sm:$0xff] %vm35, 0.0
      %153 = vst.msk [vmem:[#allocation2 + $0x3a8] sm:$0xff] %vm35, 0.0
      %154 = vst.msk [vmem:[#allocation2 + $0x3b0] sm:$0xff] %vm35, 0.0
      %155 = vst.msk [vmem:[#allocation2 + $0x3b8] sm:$0xff] %vm35, 0.0
      %156 = vst.msk [vmem:[#allocation2 + $0x3c0] sm:$0xff] %vm35, 0.0
      %157 = vst.msk [vmem:[#allocation2 + $0x3c8] sm:$0xff] %vm35, 0.0
      %158 = vst.msk [vmem:[#allocation2 + $0x3d0] sm:$0xff] %vm35, 0.0
      %159 = vst.msk [vmem:[#allocation2 + $0x3d8] sm:$0xff] %vm35, 0.0
      %160 = vst.msk [vmem:[#allocation2 + $0x3e0] sm:$0xff] %vm35, 0.0
      %161 = vst.msk [vmem:[#allocation2 + $0x3e8] sm:$0xff] %vm35, 0.0
      %162 = vst.msk [vmem:[#allocation2 + $0x3f0] sm:$0xff] %vm35, 0.0
      %163 = vst.msk [vmem:[#allocation2 + $0x3f8] sm:$0xff] %vm35, 0.0
      %164 = vst.msk [vmem:[#allocation2 + $0x400] sm:$0xff] %vm35, 0.0
      %165 = vst.msk [vmem:[#allocation2 + $0x408] sm:$0xff] %vm35, 0.0
      %166 = vst.msk [vmem:[#allocation2 + $0x410] sm:$0xff] %vm35, 0.0
      %167 = vst.msk [vmem:[#allocation2 + $0x418] sm:$0xff] %vm35, 0.0
      %168 = vst.msk [vmem:[#allocation2 + $0x420] sm:$0xff] %vm35, 0.0
      %169 = vst.msk [vmem:[#allocation2 + $0x428] sm:$0xff] %vm35, 0.0
      %170 = vst.msk [vmem:[#allocation2 + $0x430] sm:$0xff] %vm35, 0.0
      %171 = vst.msk [vmem:[#allocation2 + $0x438] sm:$0xff] %vm35, 0.0
      %172 = vst.msk [vmem:[#allocation2 + $0x440] sm:$0xff] %vm35, 0.0
      %173 = vst.msk [vmem:[#allocation2 + $0x448] sm:$0xff] %vm35, 0.0
      %174 = vst.msk [vmem:[#allocation2 + $0x450] sm:$0xff] %vm35, 0.0
      %175 = vst.msk [vmem:[#allocation2 + $0x458] sm:$0xff] %vm35, 0.0
      %176 = vst.msk [vmem:[#allocation2 + $0x460] sm:$0xff] %vm35, 0.0
      %177 = vst.msk [vmem:[#allocation2 + $0x468] sm:$0xff] %vm35, 0.0
      %178 = vst.msk [vmem:[#allocation2 + $0x470] sm:$0xff] %vm35, 0.0
      %179 = vst.msk [vmem:[#allocation2 + $0x478] sm:$0xff] %vm35, 0.0
      %180 = vst.msk [vmem:[#allocation2 + $0x480] sm:$0xff] %vm35, 0.0
      %181 = vst.msk [vmem:[#allocation2 + $0x488] sm:$0xff] %vm35, 0.0
      %182 = vst.msk [vmem:[#allocation2 + $0x490] sm:$0xff] %vm35, 0.0
      %183 = vst.msk [vmem:[#allocation2 + $0x498] sm:$0xff] %vm35, 0.0
      %184 = vst.msk [vmem:[#allocation2 + $0x4a0] sm:$0xff] %vm35, 0.0
      %185 = vst.msk [vmem:[#allocation2 + $0x4a8] sm:$0xff] %vm35, 0.0
      %186 = vst.msk [vmem:[#allocation2 + $0x4b0] sm:$0xff] %vm35, 0.0
      %187 = vst.msk [vmem:[#allocation2 + $0x4b8] sm:$0xff] %vm35, 0.0
      %188 = vst.msk [vmem:[#allocation2 + $0x4c0] sm:$0xff] %vm35, 0.0
      %189 = vst.msk [vmem:[#allocation2 + $0x4c8] sm:$0xff] %vm35, 0.0
      %190 = vst.msk [vmem:[#allocation2 + $0x4d0] sm:$0xff] %vm35, 0.0
      %191 = vst.msk [vmem:[#allocation2 + $0x4d8] sm:$0xff] %vm35, 0.0
      %192 = vst.msk [vmem:[#allocation2 + $0x4e0] sm:$0xff] %vm35, 0.0
      %193 = vst.msk [vmem:[#allocation2 + $0x4e8] sm:$0xff] %vm35, 0.0
      %194 = vst.msk [vmem:[#allocation2 + $0x4f0] sm:$0xff] %vm35, 0.0
      %195 = vst.msk [vmem:[#allocation2 + $0x4f8] sm:$0xff] %vm35, 0.0
      %196 = vst.msk [vmem:[#allocation2 + $0x500] sm:$0xff] %vm35, 0.0
      %197 = vst.msk [vmem:[#allocation2 + $0x508] sm:$0xff] %vm35, 0.0
      %198 = vst.msk [vmem:[#allocation2 + $0x510] sm:$0xff] %vm35, 0.0
      %199 = vst.msk [vmem:[#allocation2 + $0x518] sm:$0xff] %vm35, 0.0
      %200 = vst.msk [vmem:[#allocation2 + $0x520] sm:$0xff] %vm35, 0.0
      %201 = vst.msk [vmem:[#allocation2 + $0x528] sm:$0xff] %vm35, 0.0
      %202 = vst.msk [vmem:[#allocation2 + $0x530] sm:$0xff] %vm35, 0.0
      %203 = vst.msk [vmem:[#allocation2 + $0x538] sm:$0xff] %vm35, 0.0
      %204 = vst.msk [vmem:[#allocation2 + $0x540] sm:$0xff] %vm35, 0.0
      %205 = vst.msk [vmem:[#allocation2 + $0x548] sm:$0xff] %vm35, 0.0
      %206 = vst.msk [vmem:[#allocation2 + $0x550] sm:$0xff] %vm35, 0.0
      %207 = vst.msk [vmem:[#allocation2 + $0x558] sm:$0xff] %vm35, 0.0
      %208 = vst.msk [vmem:[#allocation2 + $0x560] sm:$0xff] %vm35, 0.0
      %209 = vst.msk [vmem:[#allocation2 + $0x568] sm:$0xff] %vm35, 0.0
      %210 = vst.msk [vmem:[#allocation2 + $0x570] sm:$0xff] %vm35, 0.0
      %211 = vst.msk [vmem:[#allocation2 + $0x578] sm:$0xff] %vm35, 0.0
      %212 = vst.msk [vmem:[#allocation2 + $0x580] sm:$0xff] %vm35, 0.0
      %213 = vst.msk [vmem:[#allocation2 + $0x588] sm:$0xff] %vm35, 0.0
      %214 = vst.msk [vmem:[#allocation2 + $0x590] sm:$0xff] %vm35, 0.0
      %215 = vst.msk [vmem:[#allocation2 + $0x598] sm:$0xff] %vm35, 0.0
      %216 = vst.msk [vmem:[#allocation2 + $0x5a0] sm:$0xff] %vm35, 0.0
      %217 = vst.msk [vmem:[#allocation2 + $0x5a8] sm:$0xff] %vm35, 0.0
      %218 = vst.msk [vmem:[#allocation2 + $0x5b0] sm:$0xff] %vm35, 0.0
      %219 = vst.msk [vmem:[#allocation2 + $0x5b8] sm:$0xff] %vm35, 0.0
      %220 = vst.msk [vmem:[#allocation2 + $0x5c0] sm:$0xff] %vm35, 0.0
      %221 = vst.msk [vmem:[#allocation2 + $0x5c8] sm:$0xff] %vm35, 0.0
      %222 = vst.msk [vmem:[#allocation2 + $0x5d0] sm:$0xff] %vm35, 0.0
      %223 = vst.msk [vmem:[#allocation2 + $0x5d8] sm:$0xff] %vm35, 0.0
      %224 = vst.msk [vmem:[#allocation2 + $0x5e0] sm:$0xff] %vm35, 0.0
      %225 = vst.msk [vmem:[#allocation2 + $0x5e8] sm:$0xff] %vm35, 0.0
      %226 = vst.msk [vmem:[#allocation2 + $0x5f0] sm:$0xff] %vm35, 0.0
      %227 = vst.msk [vmem:[#allocation2 + $0x5f8] sm:$0xff] %vm35, 0.0
      %228 = vst.msk [vmem:[#allocation2 + $0x600] sm:$0xff] %vm35, 0.0
      %229 = vst.msk [vmem:[#allocation2 + $0x608] sm:$0xff] %vm35, 0.0
      %230 = vst.msk [vmem:[#allocation2 + $0x610] sm:$0xff] %vm35, 0.0
      %231 = vst.msk [vmem:[#allocation2 + $0x618] sm:$0xff] %vm35, 0.0
      %232 = vst.msk [vmem:[#allocation2 + $0x620] sm:$0xff] %vm35, 0.0
      %233 = vst.msk [vmem:[#allocation2 + $0x628] sm:$0xff] %vm35, 0.0
      %234 = vst.msk [vmem:[#allocation2 + $0x630] sm:$0xff] %vm35, 0.0
      %235 = vst.msk [vmem:[#allocation2 + $0x638] sm:$0xff] %vm35, 0.0
      %236 = vst.msk [vmem:[#allocation2 + $0x640] sm:$0xff] %vm35, 0.0
      %237 = vst.msk [vmem:[#allocation2 + $0x648] sm:$0xff] %vm35, 0.0
      %238 = vst.msk [vmem:[#allocation2 + $0x650] sm:$0xff] %vm35, 0.0
      %239 = vst.msk [vmem:[#allocation2 + $0x658] sm:$0xff] %vm35, 0.0
      %240 = vst.msk [vmem:[#allocation2 + $0x660] sm:$0xff] %vm35, 0.0
      %241 = vst.msk [vmem:[#allocation2 + $0x668] sm:$0xff] %vm35, 0.0
      %242 = vst.msk [vmem:[#allocation2 + $0x670] sm:$0xff] %vm35, 0.0
      %243 = vst.msk [vmem:[#allocation2 + $0x678] sm:$0xff] %vm35, 0.0
      %244 = vst.msk [vmem:[#allocation2 + $0x680] sm:$0xff] %vm35, 0.0
      %245 = vst.msk [vmem:[#allocation2 + $0x688] sm:$0xff] %vm35, 0.0
      %246 = vst.msk [vmem:[#allocation2 + $0x690] sm:$0xff] %vm35, 0.0
      %247 = vst.msk [vmem:[#allocation2 + $0x698] sm:$0xff] %vm35, 0.0
      %248 = vst.msk [vmem:[#allocation2 + $0x6a0] sm:$0xff] %vm35, 0.0
      %249 = vst.msk [vmem:[#allocation2 + $0x6a8] sm:$0xff] %vm35, 0.0
      %250 = vst.msk [vmem:[#allocation2 + $0x6b0] sm:$0xff] %vm35, 0.0
      %251 = vst.msk [vmem:[#allocation2 + $0x6b8] sm:$0xff] %vm35, 0.0
      %252 = vst.msk [vmem:[#allocation2 + $0x6c0] sm:$0xff] %vm35, 0.0
      %253 = vst.msk [vmem:[#allocation2 + $0x6c8] sm:$0xff] %vm35, 0.0
      %254 = vst.msk [vmem:[#allocation2 + $0x6d0] sm:$0xff] %vm35, 0.0
      %255 = vst.msk [vmem:[#allocation2 + $0x6d8] sm:$0xff] %vm35, 0.0
      %256 = vst.msk [vmem:[#allocation2 + $0x6e0] sm:$0xff] %vm35, 0.0
      %257 = vst.msk [vmem:[#allocation2 + $0x6e8] sm:$0xff] %vm35, 0.0
      %258 = vst.msk [vmem:[#allocation2 + $0x6f0] sm:$0xff] %vm35, 0.0
      %259 = vst.msk [vmem:[#allocation2 + $0x6f8] sm:$0xff] %vm35, 0.0
      %260 = vst.msk [vmem:[#allocation2 + $0x700] sm:$0xff] %vm35, 0.0
      %261 = vst.msk [vmem:[#allocation2 + $0x708] sm:$0xff] %vm35, 0.0
      %262 = vst.msk [vmem:[#allocation2 + $0x710] sm:$0xff] %vm35, 0.0
      %263 = vst.msk [vmem:[#allocation2 + $0x718] sm:$0xff] %vm35, 0.0
      %264 = vst.msk [vmem:[#allocation2 + $0x720] sm:$0xff] %vm35, 0.0
      %265 = vst.msk [vmem:[#allocation2 + $0x728] sm:$0xff] %vm35, 0.0
      %266 = vst.msk [vmem:[#allocation2 + $0x730] sm:$0xff] %vm35, 0.0
      %267 = vst.msk [vmem:[#allocation2 + $0x738] sm:$0xff] %vm35, 0.0
      %268 = vst.msk [vmem:[#allocation2 + $0x740] sm:$0xff] %vm35, 0.0
      %269 = vst.msk [vmem:[#allocation2 + $0x748] sm:$0xff] %vm35, 0.0
      %270 = vst.msk [vmem:[#allocation2 + $0x750] sm:$0xff] %vm35, 0.0
      %271 = vst.msk [vmem:[#allocation2 + $0x758] sm:$0xff] %vm35, 0.0
      %272 = vst.msk [vmem:[#allocation2 + $0x760] sm:$0xff] %vm35, 0.0
      %273 = vst.msk [vmem:[#allocation2 + $0x768] sm:$0xff] %vm35, 0.0
      %274 = vst.msk [vmem:[#allocation2 + $0x770] sm:$0xff] %vm35, 0.0
      %275 = vst.msk [vmem:[#allocation2 + $0x778] sm:$0xff] %vm35, 0.0
      %276 = vst.msk [vmem:[#allocation2 + $0x780] sm:$0xff] %vm35, 0.0
      %277 = vst.msk [vmem:[#allocation2 + $0x788] sm:$0xff] %vm35, 0.0
      %278 = vst.msk [vmem:[#allocation2 + $0x790] sm:$0xff] %vm35, 0.0
      %279 = vst.msk [vmem:[#allocation2 + $0x798] sm:$0xff] %vm35, 0.0
      %280 = vst.msk [vmem:[#allocation2 + $0x7a0] sm:$0xff] %vm35, 0.0
      %281 = vst.msk [vmem:[#allocation2 + $0x7a8] sm:$0xff] %vm35, 0.0
      %282 = vst.msk [vmem:[#allocation2 + $0x7b0] sm:$0xff] %vm35, 0.0
      %283 = vst.msk [vmem:[#allocation2 + $0x7b8] sm:$0xff] %vm35, 0.0
      %284 = vst.msk [vmem:[#allocation2 + $0x7c0] sm:$0xff] %vm35, 0.0
      %285 = vst.msk [vmem:[#allocation2 + $0x7c8] sm:$0xff] %vm35, 0.0
      %286 = vst.msk [vmem:[#allocation2 + $0x7d0] sm:$0xff] %vm35, 0.0
      %287 = vst.msk [vmem:[#allocation2 + $0x7d8] sm:$0xff] %vm35, 0.0
      %288 = vst.msk [vmem:[#allocation2 + $0x7e0] sm:$0xff] %vm35, 0.0
      %289 = vst.msk [vmem:[#allocation2 + $0x7e8] sm:$0xff] %vm35, 0.0
      %290 = vst.msk [vmem:[#allocation2 + $0x7f0] sm:$0xff] %vm35, 0.0
      %291 = vst.msk [vmem:[#allocation2 + $0x7f8] sm:$0xff] %vm35, 0.0
    $region21: #{tpu_custom_call.1} parent=1 // pred_fallthru
      _
    %v292 = vld [vmem:[#allocation4] sm:$0xff]
    %v293 = vld [vmem:[#allocation4 + $0x8] sm:$0xff]
    %v294 = vld [vmem:[#allocation4 + $0x10] sm:$0xff]
    %v295 = vld [vmem:[#allocation4 + $0x18] sm:$0xff]
    %v296 = vld [vmem:[#allocation4 + $0x20] sm:$0xff]
    %v297 = vld [vmem:[#allocation4 + $0x28] sm:$0xff]
    %v298 = vld [vmem:[#allocation4 + $0x30] sm:$0xff]
    %v299 = vld [vmem:[#allocation4 + $0x38] sm:$0xff]
    %v300 = vld [vmem:[#allocation4 + $0x40] sm:$0xff]
    %v301 = vld [vmem:[#allocation4 + $0x48] sm:$0xff]
    %v302 = vld [vmem:[#allocation4 + $0x50] sm:$0xff]
    %v303 = vld [vmem:[#allocation4 + $0x58] sm:$0xff]
    %v304 = vld [vmem:[#allocation4 + $0x60] sm:$0xff]
    %v305 = vld [vmem:[#allocation4 + $0x68] sm:$0xff]
    %v306 = vld [vmem:[#allocation4 + $0x70] sm:$0xff]
    %v307 = vld [vmem:[#allocation4 + $0x78] sm:$0xff]
    %v308 = vld [vmem:[#allocation4 + $0x80] sm:$0xff]
    %v309 = vld [vmem:[#allocation4 + $0x88] sm:$0xff]
    %v310 = vld [vmem:[#allocation4 + $0x90] sm:$0xff]
    %v311 = vld [vmem:[#allocation4 + $0x98] sm:$0xff]
    %v312 = vld [vmem:[#allocation4 + $0xa0] sm:$0xff]
    %v313 = vld [vmem:[#allocation4 + $0xa8] sm:$0xff]
    %v314 = vld [vmem:[#allocation4 + $0xb0] sm:$0xff]
    %v315 = vld [vmem:[#allocation4 + $0xb8] sm:$0xff]
    %v316 = vld [vmem:[#allocation4 + $0xc0] sm:$0xff]
    %v317 = vld [vmem:[#allocation4 + $0xc8] sm:$0xff]
    %v318 = vld [vmem:[#allocation4 + $0xd0] sm:$0xff]
    %v319 = vld [vmem:[#allocation4 + $0xd8] sm:$0xff]
    %v320 = vld [vmem:[#allocation4 + $0xe0] sm:$0xff]
    %v321 = vld [vmem:[#allocation4 + $0xe8] sm:$0xff]
    %v322 = vld [vmem:[#allocation4 + $0xf0] sm:$0xff]
    %v323 = vld [vmem:[#allocation4 + $0xf8] sm:$0xff]
    %v324 = vld [vmem:[#allocation4 + $0x100] sm:$0xff]
    %v325 = vld [vmem:[#allocation4 + $0x108] sm:$0xff]
    %v326 = vld [vmem:[#allocation4 + $0x110] sm:$0xff]
    %v327 = vld [vmem:[#allocation4 + $0x118] sm:$0xff]
    %v328 = vld [vmem:[#allocation4 + $0x120] sm:$0xff]
    %v329 = vld [vmem:[#allocation4 + $0x128] sm:$0xff]
    %v330 = vld [vmem:[#allocation4 + $0x130] sm:$0xff]
    %v331 = vld [vmem:[#allocation4 + $0x138] sm:$0xff]
    %v332 = vld [vmem:[#allocation4 + $0x140] sm:$0xff]
    %v333 = vld [vmem:[#allocation4 + $0x148] sm:$0xff]
    %v334 = vld [vmem:[#allocation4 + $0x150] sm:$0xff]
    %v335 = vld [vmem:[#allocation4 + $0x158] sm:$0xff]
    %v336 = vld [vmem:[#allocation4 + $0x160] sm:$0xff]
    %v337 = vld [vmem:[#allocation4 + $0x168] sm:$0xff]
    %v338 = vld [vmem:[#allocation4 + $0x170] sm:$0xff]
    %v339 = vld [vmem:[#allocation4 + $0x178] sm:$0xff]
    %v340 = vld [vmem:[#allocation4 + $0x180] sm:$0xff]
    %v341 = vld [vmem:[#allocation4 + $0x188] sm:$0xff]
    %v342 = vld [vmem:[#allocation4 + $0x190] sm:$0xff]
    %v343 = vld [vmem:[#allocation4 + $0x198] sm:$0xff]
    %v344 = vld [vmem:[#allocation4 + $0x1a0] sm:$0xff]
    %v345 = vld [vmem:[#allocation4 + $0x1a8] sm:$0xff]
    %v346 = vld [vmem:[#allocation4 + $0x1b0] sm:$0xff]
    %v347 = vld [vmem:[#allocation4 + $0x1b8] sm:$0xff]
    %v348 = vld [vmem:[#allocation4 + $0x1c0] sm:$0xff]
    %v349 = vld [vmem:[#allocation4 + $0x1c8] sm:$0xff]
    %v350 = vld [vmem:[#allocation4 + $0x1d0] sm:$0xff]
    %v351 = vld [vmem:[#allocation4 + $0x1d8] sm:$0xff]
    %v352 = vld [vmem:[#allocation4 + $0x1e0] sm:$0xff]
    %v353 = vld [vmem:[#allocation4 + $0x1e8] sm:$0xff]
    %v354 = vld [vmem:[#allocation4 + $0x1f0] sm:$0xff]
    %v355 = vld [vmem:[#allocation4 + $0x1f8] sm:$0xff]
    %v356 = vld [vmem:[#allocation4 + $0x200] sm:$0xff]
    %v357 = vld [vmem:[#allocation4 + $0x208] sm:$0xff]
    %v358 = vld [vmem:[#allocation4 + $0x210] sm:$0xff]
    %v359 = vld [vmem:[#allocation4 + $0x218] sm:$0xff]
    %v360 = vld [vmem:[#allocation4 + $0x220] sm:$0xff]
    %v361 = vld [vmem:[#allocation4 + $0x228] sm:$0xff]
    %v362 = vld [vmem:[#allocation4 + $0x230] sm:$0xff]
    %v363 = vld [vmem:[#allocation4 + $0x238] sm:$0xff]
    %v364 = vld [vmem:[#allocation4 + $0x240] sm:$0xff]
    %v365 = vld [vmem:[#allocation4 + $0x248] sm:$0xff]
    %v366 = vld [vmem:[#allocation4 + $0x250] sm:$0xff]
    %v367 = vld [vmem:[#allocation4 + $0x258] sm:$0xff]
    %v368 = vld [vmem:[#allocation4 + $0x260] sm:$0xff]
    %v369 = vld [vmem:[#allocation4 + $0x268] sm:$0xff]
    %v370 = vld [vmem:[#allocation4 + $0x270] sm:$0xff]
    %v371 = vld [vmem:[#allocation4 + $0x278] sm:$0xff]
    %v372 = vld [vmem:[#allocation4 + $0x280] sm:$0xff]
    %v373 = vld [vmem:[#allocation4 + $0x288] sm:$0xff]
    %v374 = vld [vmem:[#allocation4 + $0x290] sm:$0xff]
    %v375 = vld [vmem:[#allocation4 + $0x298] sm:$0xff]
    %v376 = vld [vmem:[#allocation4 + $0x2a0] sm:$0xff]
    %v377 = vld [vmem:[#allocation4 + $0x2a8] sm:$0xff]
    %v378 = vld [vmem:[#allocation4 + $0x2b0] sm:$0xff]
    %v379 = vld [vmem:[#allocation4 + $0x2b8] sm:$0xff]
    %v380 = vld [vmem:[#allocation4 + $0x2c0] sm:$0xff]
    %v381 = vld [vmem:[#allocation4 + $0x2c8] sm:$0xff]
    %v382 = vld [vmem:[#allocation4 + $0x2d0] sm:$0xff]
    %v383 = vld [vmem:[#allocation4 + $0x2d8] sm:$0xff]
    %v384 = vld [vmem:[#allocation4 + $0x2e0] sm:$0xff]
    %v385 = vld [vmem:[#allocation4 + $0x2e8] sm:$0xff]
    %v386 = vld [vmem:[#allocation4 + $0x2f0] sm:$0xff]
    %v387 = vld [vmem:[#allocation4 + $0x2f8] sm:$0xff]
    %v388 = vld [vmem:[#allocation4 + $0x300] sm:$0xff]
    %v389 = vld [vmem:[#allocation4 + $0x308] sm:$0xff]
    %v390 = vld [vmem:[#allocation4 + $0x310] sm:$0xff]
    %v391 = vld [vmem:[#allocation4 + $0x318] sm:$0xff]
    %v392 = vld [vmem:[#allocation4 + $0x320] sm:$0xff]
    %v393 = vld [vmem:[#allocation4 + $0x328] sm:$0xff]
    %v394 = vld [vmem:[#allocation4 + $0x330] sm:$0xff]
    %v395 = vld [vmem:[#allocation4 + $0x338] sm:$0xff]
    %v396 = vld [vmem:[#allocation4 + $0x340] sm:$0xff]
    %v397 = vld [vmem:[#allocation4 + $0x348] sm:$0xff]
    %v398 = vld [vmem:[#allocation4 + $0x350] sm:$0xff]
    %v399 = vld [vmem:[#allocation4 + $0x358] sm:$0xff]
    %v400 = vld [vmem:[#allocation4 + $0x360] sm:$0xff]
    %v401 = vld [vmem:[#allocation4 + $0x368] sm:$0xff]
    %v402 = vld [vmem:[#allocation4 + $0x370] sm:$0xff]
    %v403 = vld [vmem:[#allocation4 + $0x378] sm:$0xff]
    %v404 = vld [vmem:[#allocation4 + $0x380] sm:$0xff]
    %v405 = vld [vmem:[#allocation4 + $0x388] sm:$0xff]
    %v406 = vld [vmem:[#allocation4 + $0x390] sm:$0xff]
    %v407 = vld [vmem:[#allocation4 + $0x398] sm:$0xff]
    %v408 = vld [vmem:[#allocation4 + $0x3a0] sm:$0xff]
    %v409 = vld [vmem:[#allocation4 + $0x3a8] sm:$0xff]
    %v410 = vld [vmem:[#allocation4 + $0x3b0] sm:$0xff]
    %v411 = vld [vmem:[#allocation4 + $0x3b8] sm:$0xff]
    %v412 = vld [vmem:[#allocation4 + $0x3c0] sm:$0xff]
    %v413 = vld [vmem:[#allocation4 + $0x3c8] sm:$0xff]
    %v414 = vld [vmem:[#allocation4 + $0x3d0] sm:$0xff]
    %v415 = vld [vmem:[#allocation4 + $0x3d8] sm:$0xff]
    %v416 = vld [vmem:[#allocation4 + $0x3e0] sm:$0xff]
    %v417 = vld [vmem:[#allocation4 + $0x3e8] sm:$0xff]
    %v418 = vld [vmem:[#allocation4 + $0x3f0] sm:$0xff]
    %v419 = vld [vmem:[#allocation4 + $0x3f8] sm:$0xff]
    %v420 = vld [vmem:[#allocation4 + $0x400] sm:$0xff]
    %v421 = vld [vmem:[#allocation4 + $0x408] sm:$0xff]
    %v422 = vld [vmem:[#allocation4 + $0x410] sm:$0xff]
    %v423 = vld [vmem:[#allocation4 + $0x418] sm:$0xff]
    %v424 = vld [vmem:[#allocation4 + $0x420] sm:$0xff]
    %v425 = vld [vmem:[#allocation4 + $0x428] sm:$0xff]
    %v426 = vld [vmem:[#allocation4 + $0x430] sm:$0xff]
    %v427 = vld [vmem:[#allocation4 + $0x438] sm:$0xff]
    %v428 = vld [vmem:[#allocation4 + $0x440] sm:$0xff]
    %v429 = vld [vmem:[#allocation4 + $0x448] sm:$0xff]
    %v430 = vld [vmem:[#allocation4 + $0x450] sm:$0xff]
    %v431 = vld [vmem:[#allocation4 + $0x458] sm:$0xff]
    %v432 = vld [vmem:[#allocation4 + $0x460] sm:$0xff]
    %v433 = vld [vmem:[#allocation4 + $0x468] sm:$0xff]
    %v434 = vld [vmem:[#allocation4 + $0x470] sm:$0xff]
    %v435 = vld [vmem:[#allocation4 + $0x478] sm:$0xff]
    %v436 = vld [vmem:[#allocation4 + $0x480] sm:$0xff]
    %v437 = vld [vmem:[#allocation4 + $0x488] sm:$0xff]
    %v438 = vld [vmem:[#allocation4 + $0x490] sm:$0xff]
    %v439 = vld [vmem:[#allocation4 + $0x498] sm:$0xff]
    %v440 = vld [vmem:[#allocation4 + $0x4a0] sm:$0xff]
    %v441 = vld [vmem:[#allocation4 + $0x4a8] sm:$0xff]
    %v442 = vld [vmem:[#allocation4 + $0x4b0] sm:$0xff]
    %v443 = vld [vmem:[#allocation4 + $0x4b8] sm:$0xff]
    %v444 = vld [vmem:[#allocation4 + $0x4c0] sm:$0xff]
    %v445 = vld [vmem:[#allocation4 + $0x4c8] sm:$0xff]
    %v446 = vld [vmem:[#allocation4 + $0x4d0] sm:$0xff]
    %v447 = vld [vmem:[#allocation4 + $0x4d8] sm:$0xff]
    %v448 = vld [vmem:[#allocation4 + $0x4e0] sm:$0xff]
    %v449 = vld [vmem:[#allocation4 + $0x4e8] sm:$0xff]
    %v450 = vld [vmem:[#allocation4 + $0x4f0] sm:$0xff]
    %v451 = vld [vmem:[#allocation4 + $0x4f8] sm:$0xff]
    %v452 = vld [vmem:[#allocation4 + $0x500] sm:$0xff]
    %v453 = vld [vmem:[#allocation4 + $0x508] sm:$0xff]
    %v454 = vld [vmem:[#allocation4 + $0x510] sm:$0xff]
    %v455 = vld [vmem:[#allocation4 + $0x518] sm:$0xff]
    %v456 = vld [vmem:[#allocation4 + $0x520] sm:$0xff]
    %v457 = vld [vmem:[#allocation4 + $0x528] sm:$0xff]
    %v458 = vld [vmem:[#allocation4 + $0x530] sm:$0xff]
    %v459 = vld [vmem:[#allocation4 + $0x538] sm:$0xff]
    %v460 = vld [vmem:[#allocation4 + $0x540] sm:$0xff]
    %v461 = vld [vmem:[#allocation4 + $0x548] sm:$0xff]
    %v462 = vld [vmem:[#allocation4 + $0x550] sm:$0xff]
    %v463 = vld [vmem:[#allocation4 + $0x558] sm:$0xff]
    %v464 = vld [vmem:[#allocation4 + $0x560] sm:$0xff]
    %v465 = vld [vmem:[#allocation4 + $0x568] sm:$0xff]
    %v466 = vld [vmem:[#allocation4 + $0x570] sm:$0xff]
    %v467 = vld [vmem:[#allocation4 + $0x578] sm:$0xff]
    %v468 = vld [vmem:[#allocation4 + $0x580] sm:$0xff]
    %v469 = vld [vmem:[#allocation4 + $0x588] sm:$0xff]
    %v470 = vld [vmem:[#allocation4 + $0x590] sm:$0xff]
    %v471 = vld [vmem:[#allocation4 + $0x598] sm:$0xff]
    %v472 = vld [vmem:[#allocation4 + $0x5a0] sm:$0xff]
    %v473 = vld [vmem:[#allocation4 + $0x5a8] sm:$0xff]
    %v474 = vld [vmem:[#allocation4 + $0x5b0] sm:$0xff]
    %v475 = vld [vmem:[#allocation4 + $0x5b8] sm:$0xff]
    %v476 = vld [vmem:[#allocation4 + $0x5c0] sm:$0xff]
    %v477 = vld [vmem:[#allocation4 + $0x5c8] sm:$0xff]
    %v478 = vld [vmem:[#allocation4 + $0x5d0] sm:$0xff]
    %v479 = vld [vmem:[#allocation4 + $0x5d8] sm:$0xff]
    %v480 = vld [vmem:[#allocation4 + $0x5e0] sm:$0xff]
    %v481 = vld [vmem:[#allocation4 + $0x5e8] sm:$0xff]
    %v482 = vld [vmem:[#allocation4 + $0x5f0] sm:$0xff]
    %v483 = vld [vmem:[#allocation4 + $0x5f8] sm:$0xff]
    %v484 = vld [vmem:[#allocation4 + $0x600] sm:$0xff]
    %v485 = vld [vmem:[#allocation4 + $0x608] sm:$0xff]
    %v486 = vld [vmem:[#allocation4 + $0x610] sm:$0xff]
    %v487 = vld [vmem:[#allocation4 + $0x618] sm:$0xff]
    %v488 = vld [vmem:[#allocation4 + $0x620] sm:$0xff]
    %v489 = vld [vmem:[#allocation4 + $0x628] sm:$0xff]
    %v490 = vld [vmem:[#allocation4 + $0x630] sm:$0xff]
    %v491 = vld [vmem:[#allocation4 + $0x638] sm:$0xff]
    %v492 = vld [vmem:[#allocation4 + $0x640] sm:$0xff]
    %v493 = vld [vmem:[#allocation4 + $0x648] sm:$0xff]
    %v494 = vld [vmem:[#allocation4 + $0x650] sm:$0xff]
    %v495 = vld [vmem:[#allocation4 + $0x658] sm:$0xff]
    %v496 = vld [vmem:[#allocation4 + $0x660] sm:$0xff]
    %v497 = vld [vmem:[#allocation4 + $0x668] sm:$0xff]
    %v498 = vld [vmem:[#allocation4 + $0x670] sm:$0xff]
    %v499 = vld [vmem:[#allocation4 + $0x678] sm:$0xff]
    %v500 = vld [vmem:[#allocation4 + $0x680] sm:$0xff]
    %v501 = vld [vmem:[#allocation4 + $0x688] sm:$0xff]
    %v502 = vld [vmem:[#allocation4 + $0x690] sm:$0xff]
    %v503 = vld [vmem:[#allocation4 + $0x698] sm:$0xff]
    %v504 = vld [vmem:[#allocation4 + $0x6a0] sm:$0xff]
    %v505 = vld [vmem:[#allocation4 + $0x6a8] sm:$0xff]
    %v506 = vld [vmem:[#allocation4 + $0x6b0] sm:$0xff]
    %v507 = vld [vmem:[#allocation4 + $0x6b8] sm:$0xff]
    %v508 = vld [vmem:[#allocation4 + $0x6c0] sm:$0xff]
    %v509 = vld [vmem:[#allocation4 + $0x6c8] sm:$0xff]
    %v510 = vld [vmem:[#allocation4 + $0x6d0] sm:$0xff]
    %v511 = vld [vmem:[#allocation4 + $0x6d8] sm:$0xff]
    %v512 = vld [vmem:[#allocation4 + $0x6e0] sm:$0xff]
    %v513 = vld [vmem:[#allocation4 + $0x6e8] sm:$0xff]
    %v514 = vld [vmem:[#allocation4 + $0x6f0] sm:$0xff]
    %v515 = vld [vmem:[#allocation4 + $0x6f8] sm:$0xff]
    %v516 = vld [vmem:[#allocation4 + $0x700] sm:$0xff]
    %v517 = vld [vmem:[#allocation4 + $0x708] sm:$0xff]
    %v518 = vld [vmem:[#allocation4 + $0x710] sm:$0xff]
    %v519 = vld [vmem:[#allocation4 + $0x718] sm:$0xff]
    %v520 = vld [vmem:[#allocation4 + $0x720] sm:$0xff]
    %v521 = vld [vmem:[#allocation4 + $0x728] sm:$0xff]
    %v522 = vld [vmem:[#allocation4 + $0x730] sm:$0xff]
    %v523 = vld [vmem:[#allocation4 + $0x738] sm:$0xff]
    %v524 = vld [vmem:[#allocation4 + $0x740] sm:$0xff]
    %v525 = vld [vmem:[#allocation4 + $0x748] sm:$0xff]
    %v526 = vld [vmem:[#allocation4 + $0x750] sm:$0xff]
    %v527 = vld [vmem:[#allocation4 + $0x758] sm:$0xff]
    %v528 = vld [vmem:[#allocation4 + $0x760] sm:$0xff]
    %v529 = vld [vmem:[#allocation4 + $0x768] sm:$0xff]
    %v530 = vld [vmem:[#allocation4 + $0x770] sm:$0xff]
    %v531 = vld [vmem:[#allocation4 + $0x778] sm:$0xff]
    %v532 = vld [vmem:[#allocation4 + $0x780] sm:$0xff]
    %v533 = vld [vmem:[#allocation4 + $0x788] sm:$0xff]
    %v534 = vld [vmem:[#allocation4 + $0x790] sm:$0xff]
    %v535 = vld [vmem:[#allocation4 + $0x798] sm:$0xff]
    %v536 = vld [vmem:[#allocation4 + $0x7a0] sm:$0xff]
    %v537 = vld [vmem:[#allocation4 + $0x7a8] sm:$0xff]
    %v538 = vld [vmem:[#allocation4 + $0x7b0] sm:$0xff]
    %v539 = vld [vmem:[#allocation4 + $0x7b8] sm:$0xff]
    %v540 = vld [vmem:[#allocation4 + $0x7c0] sm:$0xff]
    %v541 = vld [vmem:[#allocation4 + $0x7c8] sm:$0xff]
    %v542 = vld [vmem:[#allocation4 + $0x7d0] sm:$0xff]
    %v543 = vld [vmem:[#allocation4 + $0x7d8] sm:$0xff]
    %v544 = vld [vmem:[#allocation4 + $0x7e0] sm:$0xff]
    %v545 = vld [vmem:[#allocation4 + $0x7e8] sm:$0xff]
    %v546 = vld [vmem:[#allocation4 + $0x7f0] sm:$0xff]
    %v547 = vld [vmem:[#allocation4 + $0x7f8] sm:$0xff]
    %v548 = vld [vmem:[#allocation4 + $0x800] sm:$0xff]
    %v549 = vld [vmem:[#allocation4 + $0x808] sm:$0xff]
    %v550 = vld [vmem:[#allocation4 + $0x810] sm:$0xff]
    %v551 = vld [vmem:[#allocation4 + $0x818] sm:$0xff]
    %v552 = vld [vmem:[#allocation4 + $0x820] sm:$0xff]
    %v553 = vld [vmem:[#allocation4 + $0x828] sm:$0xff]
    %v554 = vld [vmem:[#allocation4 + $0x830] sm:$0xff]
    %v555 = vld [vmem:[#allocation4 + $0x838] sm:$0xff]
    %v556 = vld [vmem:[#allocation4 + $0x840] sm:$0xff]
    %v557 = vld [vmem:[#allocation4 + $0x848] sm:$0xff]
    %v558 = vld [vmem:[#allocation4 + $0x850] sm:$0xff]
    %v559 = vld [vmem:[#allocation4 + $0x858] sm:$0xff]
    %v560 = vld [vmem:[#allocation4 + $0x860] sm:$0xff]
    %v561 = vld [vmem:[#allocation4 + $0x868] sm:$0xff]
    %v562 = vld [vmem:[#allocation4 + $0x870] sm:$0xff]
    %v563 = vld [vmem:[#allocation4 + $0x878] sm:$0xff]
    %v564 = vld [vmem:[#allocation4 + $0x880] sm:$0xff]
    %v565 = vld [vmem:[#allocation4 + $0x888] sm:$0xff]
    %v566 = vld [vmem:[#allocation4 + $0x890] sm:$0xff]
    %v567 = vld [vmem:[#allocation4 + $0x898] sm:$0xff]
    %v568 = vld [vmem:[#allocation4 + $0x8a0] sm:$0xff]
    %v569 = vld [vmem:[#allocation4 + $0x8a8] sm:$0xff]
    %v570 = vld [vmem:[#allocation4 + $0x8b0] sm:$0xff]
    %v571 = vld [vmem:[#allocation4 + $0x8b8] sm:$0xff]
    %v572 = vld [vmem:[#allocation4 + $0x8c0] sm:$0xff]
    %v573 = vld [vmem:[#allocation4 + $0x8c8] sm:$0xff]
    %v574 = vld [vmem:[#allocation4 + $0x8d0] sm:$0xff]
    %v575 = vld [vmem:[#allocation4 + $0x8d8] sm:$0xff]
    %v576 = vld [vmem:[#allocation4 + $0x8e0] sm:$0xff]
    %v577 = vld [vmem:[#allocation4 + $0x8e8] sm:$0xff]
    %v578 = vld [vmem:[#allocation4 + $0x8f0] sm:$0xff]
    %v579 = vld [vmem:[#allocation4 + $0x8f8] sm:$0xff]
    %v580 = vld [vmem:[#allocation4 + $0x900] sm:$0xff]
    %v581 = vld [vmem:[#allocation4 + $0x908] sm:$0xff]
    %v582 = vld [vmem:[#allocation4 + $0x910] sm:$0xff]
    %v583 = vld [vmem:[#allocation4 + $0x918] sm:$0xff]
    %v584 = vld [vmem:[#allocation4 + $0x920] sm:$0xff]
    %v585 = vld [vmem:[#allocation4 + $0x928] sm:$0xff]
    %v586 = vld [vmem:[#allocation4 + $0x930] sm:$0xff]
    %v587 = vld [vmem:[#allocation4 + $0x938] sm:$0xff]
    %v588 = vld [vmem:[#allocation4 + $0x940] sm:$0xff]
    %v589 = vld [vmem:[#allocation4 + $0x948] sm:$0xff]
    %v590 = vld [vmem:[#allocation4 + $0x950] sm:$0xff]
    %v591 = vld [vmem:[#allocation4 + $0x958] sm:$0xff]
    %v592 = vld [vmem:[#allocation4 + $0x960] sm:$0xff]
    %v593 = vld [vmem:[#allocation4 + $0x968] sm:$0xff]
    %v594 = vld [vmem:[#allocation4 + $0x970] sm:$0xff]
    %v595 = vld [vmem:[#allocation4 + $0x978] sm:$0xff]
    %v596 = vld [vmem:[#allocation4 + $0x980] sm:$0xff]
    %v597 = vld [vmem:[#allocation4 + $0x988] sm:$0xff]
    %v598 = vld [vmem:[#allocation4 + $0x990] sm:$0xff]
    %v599 = vld [vmem:[#allocation4 + $0x998] sm:$0xff]
    %v600 = vld [vmem:[#allocation4 + $0x9a0] sm:$0xff]
    %v601 = vld [vmem:[#allocation4 + $0x9a8] sm:$0xff]
    %v602 = vld [vmem:[#allocation4 + $0x9b0] sm:$0xff]
    %v603 = vld [vmem:[#allocation4 + $0x9b8] sm:$0xff]
    %v604 = vld [vmem:[#allocation4 + $0x9c0] sm:$0xff]
    %v605 = vld [vmem:[#allocation4 + $0x9c8] sm:$0xff]
    %v606 = vld [vmem:[#allocation4 + $0x9d0] sm:$0xff]
    %v607 = vld [vmem:[#allocation4 + $0x9d8] sm:$0xff]
    %v608 = vld [vmem:[#allocation4 + $0x9e0] sm:$0xff]
    %v609 = vld [vmem:[#allocation4 + $0x9e8] sm:$0xff]
    %v610 = vld [vmem:[#allocation4 + $0x9f0] sm:$0xff]
    %v611 = vld [vmem:[#allocation4 + $0x9f8] sm:$0xff]
    %v612 = vld [vmem:[#allocation4 + $0xa00] sm:$0xff]
    %v613 = vld [vmem:[#allocation4 + $0xa08] sm:$0xff]
    %v614 = vld [vmem:[#allocation4 + $0xa10] sm:$0xff]
    %v615 = vld [vmem:[#allocation4 + $0xa18] sm:$0xff]
    %v616 = vld [vmem:[#allocation4 + $0xa20] sm:$0xff]
    %v617 = vld [vmem:[#allocation4 + $0xa28] sm:$0xff]
    %v618 = vld [vmem:[#allocation4 + $0xa30] sm:$0xff]
    %v619 = vld [vmem:[#allocation4 + $0xa38] sm:$0xff]
    %v620 = vld [vmem:[#allocation4 + $0xa40] sm:$0xff]
    %v621 = vld [vmem:[#allocation4 + $0xa48] sm:$0xff]
    %v622 = vld [vmem:[#allocation4 + $0xa50] sm:$0xff]
    %v623 = vld [vmem:[#allocation4 + $0xa58] sm:$0xff]
    %v624 = vld [vmem:[#allocation4 + $0xa60] sm:$0xff]
    %v625 = vld [vmem:[#allocation4 + $0xa68] sm:$0xff]
    %v626 = vld [vmem:[#allocation4 + $0xa70] sm:$0xff]
    %v627 = vld [vmem:[#allocation4 + $0xa78] sm:$0xff]
    %v628 = vld [vmem:[#allocation4 + $0xa80] sm:$0xff]
    %v629 = vld [vmem:[#allocation4 + $0xa88] sm:$0xff]
    %v630 = vld [vmem:[#allocation4 + $0xa90] sm:$0xff]
    %v631 = vld [vmem:[#allocation4 + $0xa98] sm:$0xff]
    %v632 = vld [vmem:[#allocation4 + $0xaa0] sm:$0xff]
    %v633 = vld [vmem:[#allocation4 + $0xaa8] sm:$0xff]
    %v634 = vld [vmem:[#allocation4 + $0xab0] sm:$0xff]
    %v635 = vld [vmem:[#allocation4 + $0xab8] sm:$0xff]
    %v636 = vld [vmem:[#allocation4 + $0xac0] sm:$0xff]
    %v637 = vld [vmem:[#allocation4 + $0xac8] sm:$0xff]
    %v638 = vld [vmem:[#allocation4 + $0xad0] sm:$0xff]
    %v639 = vld [vmem:[#allocation4 + $0xad8] sm:$0xff]
    %v640 = vld [vmem:[#allocation4 + $0xae0] sm:$0xff]
    %v641 = vld [vmem:[#allocation4 + $0xae8] sm:$0xff]
    %v642 = vld [vmem:[#allocation4 + $0xaf0] sm:$0xff]
    %v643 = vld [vmem:[#allocation4 + $0xaf8] sm:$0xff]
    %v644 = vld [vmem:[#allocation4 + $0xb00] sm:$0xff]
    %v645 = vld [vmem:[#allocation4 + $0xb08] sm:$0xff]
    %v646 = vld [vmem:[#allocation4 + $0xb10] sm:$0xff]
    %v647 = vld [vmem:[#allocation4 + $0xb18] sm:$0xff]
    %v648 = vld [vmem:[#allocation4 + $0xb20] sm:$0xff]
    %v649 = vld [vmem:[#allocation4 + $0xb28] sm:$0xff]
    %v650 = vld [vmem:[#allocation4 + $0xb30] sm:$0xff]
    %v651 = vld [vmem:[#allocation4 + $0xb38] sm:$0xff]
    %v652 = vld [vmem:[#allocation4 + $0xb40] sm:$0xff]
    %v653 = vld [vmem:[#allocation4 + $0xb48] sm:$0xff]
    %v654 = vld [vmem:[#allocation4 + $0xb50] sm:$0xff]
    %v655 = vld [vmem:[#allocation4 + $0xb58] sm:$0xff]
    %v656 = vld [vmem:[#allocation4 + $0xb60] sm:$0xff]
    %v657 = vld [vmem:[#allocation4 + $0xb68] sm:$0xff]
    %v658 = vld [vmem:[#allocation4 + $0xb70] sm:$0xff]
    %v659 = vld [vmem:[#allocation4 + $0xb78] sm:$0xff]
    %v660 = vld [vmem:[#allocation4 + $0xb80] sm:$0xff]
    %v661 = vld [vmem:[#allocation4 + $0xb88] sm:$0xff]
    %v662 = vld [vmem:[#allocation4 + $0xb90] sm:$0xff]
    %v663 = vld [vmem:[#allocation4 + $0xb98] sm:$0xff]
    %v664 = vld [vmem:[#allocation4 + $0xba0] sm:$0xff]
    %v665 = vld [vmem:[#allocation4 + $0xba8] sm:$0xff]
    %v666 = vld [vmem:[#allocation4 + $0xbb0] sm:$0xff]
    %v667 = vld [vmem:[#allocation4 + $0xbb8] sm:$0xff]
    %v668 = vld [vmem:[#allocation4 + $0xbc0] sm:$0xff]
    %v669 = vld [vmem:[#allocation4 + $0xbc8] sm:$0xff]
    %v670 = vld [vmem:[#allocation4 + $0xbd0] sm:$0xff]
    %v671 = vld [vmem:[#allocation4 + $0xbd8] sm:$0xff]
    %v672 = vld [vmem:[#allocation4 + $0xbe0] sm:$0xff]
    %v673 = vld [vmem:[#allocation4 + $0xbe8] sm:$0xff]
    %v674 = vld [vmem:[#allocation4 + $0xbf0] sm:$0xff]
    %v675 = vld [vmem:[#allocation4 + $0xbf8] sm:$0xff]
    %v676 = vld [vmem:[#allocation4 + $0xc00] sm:$0xff]
    %v677 = vld [vmem:[#allocation4 + $0xc08] sm:$0xff]
    %v678 = vld [vmem:[#allocation4 + $0xc10] sm:$0xff]
    %v679 = vld [vmem:[#allocation4 + $0xc18] sm:$0xff]
    %v680 = vld [vmem:[#allocation4 + $0xc20] sm:$0xff]
    %v681 = vld [vmem:[#allocation4 + $0xc28] sm:$0xff]
    %v682 = vld [vmem:[#allocation4 + $0xc30] sm:$0xff]
    %v683 = vld [vmem:[#allocation4 + $0xc38] sm:$0xff]
    %v684 = vld [vmem:[#allocation4 + $0xc40] sm:$0xff]
    %v685 = vld [vmem:[#allocation4 + $0xc48] sm:$0xff]
    %v686 = vld [vmem:[#allocation4 + $0xc50] sm:$0xff]
    %v687 = vld [vmem:[#allocation4 + $0xc58] sm:$0xff]
    %v688 = vld [vmem:[#allocation4 + $0xc60] sm:$0xff]
    %v689 = vld [vmem:[#allocation4 + $0xc68] sm:$0xff]
    %v690 = vld [vmem:[#allocation4 + $0xc70] sm:$0xff]
    %v691 = vld [vmem:[#allocation4 + $0xc78] sm:$0xff]
    %v692 = vld [vmem:[#allocation4 + $0xc80] sm:$0xff]
    %v693 = vld [vmem:[#allocation4 + $0xc88] sm:$0xff]
    %v694 = vld [vmem:[#allocation4 + $0xc90] sm:$0xff]
    %v695 = vld [vmem:[#allocation4 + $0xc98] sm:$0xff]
    %v696 = vld [vmem:[#allocation4 + $0xca0] sm:$0xff]
    %v697 = vld [vmem:[#allocation4 + $0xca8] sm:$0xff]
    %v698 = vld [vmem:[#allocation4 + $0xcb0] sm:$0xff]
    %v699 = vld [vmem:[#allocation4 + $0xcb8] sm:$0xff]
    %v700 = vld [vmem:[#allocation4 + $0xcc0] sm:$0xff]
    %v701 = vld [vmem:[#allocation4 + $0xcc8] sm:$0xff]
    %v702 = vld [vmem:[#allocation4 + $0xcd0] sm:$0xff]
    %v703 = vld [vmem:[#allocation4 + $0xcd8] sm:$0xff]
    %v704 = vld [vmem:[#allocation4 + $0xce0] sm:$0xff]
    %v705 = vld [vmem:[#allocation4 + $0xce8] sm:$0xff]
    %v706 = vld [vmem:[#allocation4 + $0xcf0] sm:$0xff]
    %v707 = vld [vmem:[#allocation4 + $0xcf8] sm:$0xff]
    %v708 = vld [vmem:[#allocation4 + $0xd00] sm:$0xff]
    %v709 = vld [vmem:[#allocation4 + $0xd08] sm:$0xff]
    %v710 = vld [vmem:[#allocation4 + $0xd10] sm:$0xff]
    %v711 = vld [vmem:[#allocation4 + $0xd18] sm:$0xff]
    %v712 = vld [vmem:[#allocation4 + $0xd20] sm:$0xff]
    %v713 = vld [vmem:[#allocation4 + $0xd28] sm:$0xff]
    %v714 = vld [vmem:[#allocation4 + $0xd30] sm:$0xff]
    %v715 = vld [vmem:[#allocation4 + $0xd38] sm:$0xff]
    %v716 = vld [vmem:[#allocation4 + $0xd40] sm:$0xff]
    %v717 = vld [vmem:[#allocation4 + $0xd48] sm:$0xff]
    %v718 = vld [vmem:[#allocation4 + $0xd50] sm:$0xff]
    %v719 = vld [vmem:[#allocation4 + $0xd58] sm:$0xff]
    %v720 = vld [vmem:[#allocation4 + $0xd60] sm:$0xff]
    %v721 = vld [vmem:[#allocation4 + $0xd68] sm:$0xff]
    %v722 = vld [vmem:[#allocation4 + $0xd70] sm:$0xff]
    %v723 = vld [vmem:[#allocation4 + $0xd78] sm:$0xff]
    %v724 = vld [vmem:[#allocation4 + $0xd80] sm:$0xff]
    %v725 = vld [vmem:[#allocation4 + $0xd88] sm:$0xff]
    %v726 = vld [vmem:[#allocation4 + $0xd90] sm:$0xff]
    %v727 = vld [vmem:[#allocation4 + $0xd98] sm:$0xff]
    %v728 = vld [vmem:[#allocation4 + $0xda0] sm:$0xff]
    %v729 = vld [vmem:[#allocation4 + $0xda8] sm:$0xff]
    %v730 = vld [vmem:[#allocation4 + $0xdb0] sm:$0xff]
    %v731 = vld [vmem:[#allocation4 + $0xdb8] sm:$0xff]
    %v732 = vld [vmem:[#allocation4 + $0xdc0] sm:$0xff]
    %v733 = vld [vmem:[#allocation4 + $0xdc8] sm:$0xff]
    %v734 = vld [vmem:[#allocation4 + $0xdd0] sm:$0xff]
    %v735 = vld [vmem:[#allocation4 + $0xdd8] sm:$0xff]
    %v736 = vld [vmem:[#allocation4 + $0xde0] sm:$0xff]
    %v737 = vld [vmem:[#allocation4 + $0xde8] sm:$0xff]
    %v738 = vld [vmem:[#allocation4 + $0xdf0] sm:$0xff]
    %v739 = vld [vmem:[#allocation4 + $0xdf8] sm:$0xff]
    %v740 = vld [vmem:[#allocation4 + $0xe00] sm:$0xff]
    %v741 = vld [vmem:[#allocation4 + $0xe08] sm:$0xff]
    %v742 = vld [vmem:[#allocation4 + $0xe10] sm:$0xff]
    %v743 = vld [vmem:[#allocation4 + $0xe18] sm:$0xff]
    %v744 = vld [vmem:[#allocation4 + $0xe20] sm:$0xff]
    %v745 = vld [vmem:[#allocation4 + $0xe28] sm:$0xff]
    %v746 = vld [vmem:[#allocation4 + $0xe30] sm:$0xff]
    %v747 = vld [vmem:[#allocation4 + $0xe38] sm:$0xff]
    %v748 = vld [vmem:[#allocation4 + $0xe40] sm:$0xff]
    %v749 = vld [vmem:[#allocation4 + $0xe48] sm:$0xff]
    %v750 = vld [vmem:[#allocation4 + $0xe50] sm:$0xff]
    %v751 = vld [vmem:[#allocation4 + $0xe58] sm:$0xff]
    %v752 = vld [vmem:[#allocation4 + $0xe60] sm:$0xff]
    %v753 = vld [vmem:[#allocation4 + $0xe68] sm:$0xff]
    %v754 = vld [vmem:[#allocation4 + $0xe70] sm:$0xff]
    %v755 = vld [vmem:[#allocation4 + $0xe78] sm:$0xff]
    %v756 = vld [vmem:[#allocation4 + $0xe80] sm:$0xff]
    %v757 = vld [vmem:[#allocation4 + $0xe88] sm:$0xff]
    %v758 = vld [vmem:[#allocation4 + $0xe90] sm:$0xff]
    %v759 = vld [vmem:[#allocation4 + $0xe98] sm:$0xff]
    %v760 = vld [vmem:[#allocation4 + $0xea0] sm:$0xff]
    %v761 = vld [vmem:[#allocation4 + $0xea8] sm:$0xff]
    %v762 = vld [vmem:[#allocation4 + $0xeb0] sm:$0xff]
    %v763 = vld [vmem:[#allocation4 + $0xeb8] sm:$0xff]
    %v764 = vld [vmem:[#allocation4 + $0xec0] sm:$0xff]
    %v765 = vld [vmem:[#allocation4 + $0xec8] sm:$0xff]
    %v766 = vld [vmem:[#allocation4 + $0xed0] sm:$0xff]
    %v767 = vld [vmem:[#allocation4 + $0xed8] sm:$0xff]
    %v768 = vld [vmem:[#allocation4 + $0xee0] sm:$0xff]
    %v769 = vld [vmem:[#allocation4 + $0xee8] sm:$0xff]
    %v770 = vld [vmem:[#allocation4 + $0xef0] sm:$0xff]
    %v771 = vld [vmem:[#allocation4 + $0xef8] sm:$0xff]
    %v772 = vld [vmem:[#allocation4 + $0xf00] sm:$0xff]
    %v773 = vld [vmem:[#allocation4 + $0xf08] sm:$0xff]
    %v774 = vld [vmem:[#allocation4 + $0xf10] sm:$0xff]
    %v775 = vld [vmem:[#allocation4 + $0xf18] sm:$0xff]
    %v776 = vld [vmem:[#allocation4 + $0xf20] sm:$0xff]
    %v777 = vld [vmem:[#allocation4 + $0xf28] sm:$0xff]
    %v778 = vld [vmem:[#allocation4 + $0xf30] sm:$0xff]
    %v779 = vld [vmem:[#allocation4 + $0xf38] sm:$0xff]
    %v780 = vld [vmem:[#allocation4 + $0xf40] sm:$0xff]
    %v781 = vld [vmem:[#allocation4 + $0xf48] sm:$0xff]
    %v782 = vld [vmem:[#allocation4 + $0xf50] sm:$0xff]
    %v783 = vld [vmem:[#allocation4 + $0xf58] sm:$0xff]
    %v784 = vld [vmem:[#allocation4 + $0xf60] sm:$0xff]
    %v785 = vld [vmem:[#allocation4 + $0xf68] sm:$0xff]
    %v786 = vld [vmem:[#allocation4 + $0xf70] sm:$0xff]
    %v787 = vld [vmem:[#allocation4 + $0xf78] sm:$0xff]
    %v788 = vld [vmem:[#allocation4 + $0xf80] sm:$0xff]
    %v789 = vld [vmem:[#allocation4 + $0xf88] sm:$0xff]
    %v790 = vld [vmem:[#allocation4 + $0xf90] sm:$0xff]
    %v791 = vld [vmem:[#allocation4 + $0xf98] sm:$0xff]
    %v792 = vld [vmem:[#allocation4 + $0xfa0] sm:$0xff]
    %v793 = vld [vmem:[#allocation4 + $0xfa8] sm:$0xff]
    %v794 = vld [vmem:[#allocation4 + $0xfb0] sm:$0xff]
    %v795 = vld [vmem:[#allocation4 + $0xfb8] sm:$0xff]
    %v796 = vld [vmem:[#allocation4 + $0xfc0] sm:$0xff]
    %v797 = vld [vmem:[#allocation4 + $0xfc8] sm:$0xff]
    %v798 = vld [vmem:[#allocation4 + $0xfd0] sm:$0xff]
    %v799 = vld [vmem:[#allocation4 + $0xfd8] sm:$0xff]
    %v800 = vld [vmem:[#allocation4 + $0xfe0] sm:$0xff]
    %v801 = vld [vmem:[#allocation4 + $0xfe8] sm:$0xff]
    %v802 = vld [vmem:[#allocation4 + $0xff0] sm:$0xff]
    %v803 = vld [vmem:[#allocation4 + $0xff8] sm:$0xff]
    %v804 = vld [vmem:[%s1] sm:$0xff]
    %v805 = vld [vmem:[%s1 + $0x8] sm:$0xff]
    %v806 = vld [vmem:[%s1 + $0x10] sm:$0xff]
    %v807 = vld [vmem:[%s1 + $0x18] sm:$0xff]
    %v808 = vld [vmem:[%s1 + $0x20] sm:$0xff]
    %v809 = vld [vmem:[%s1 + $0x28] sm:$0xff]
    %v810 = vld [vmem:[%s1 + $0x30] sm:$0xff]
    %v811 = vld [vmem:[%s1 + $0x38] sm:$0xff]
    %v812 = vld [vmem:[%s1 + $0x40] sm:$0xff]
    %v813 = vld [vmem:[%s1 + $0x48] sm:$0xff]
    %v814 = vld [vmem:[%s1 + $0x50] sm:$0xff]
    %v815 = vld [vmem:[%s1 + $0x58] sm:$0xff]
    %v816 = vld [vmem:[%s1 + $0x60] sm:$0xff]
    %v817 = vld [vmem:[%s1 + $0x68] sm:$0xff]
    %v818 = vld [vmem:[%s1 + $0x70] sm:$0xff]
    %v819 = vld [vmem:[%s1 + $0x78] sm:$0xff]
    %v820 = vld [vmem:[%s1 + $0x80] sm:$0xff]
    %v821 = vld [vmem:[%s1 + $0x88] sm:$0xff]
    %v822 = vld [vmem:[%s1 + $0x90] sm:$0xff]
    %v823 = vld [vmem:[%s1 + $0x98] sm:$0xff]
    %v824 = vld [vmem:[%s1 + $0xa0] sm:$0xff]
    %v825 = vld [vmem:[%s1 + $0xa8] sm:$0xff]
    %v826 = vld [vmem:[%s1 + $0xb0] sm:$0xff]
    %v827 = vld [vmem:[%s1 + $0xb8] sm:$0xff]
    %v828 = vld [vmem:[%s1 + $0xc0] sm:$0xff]
    %v829 = vld [vmem:[%s1 + $0xc8] sm:$0xff]
    %v830 = vld [vmem:[%s1 + $0xd0] sm:$0xff]
    %v831 = vld [vmem:[%s1 + $0xd8] sm:$0xff]
    %v832 = vld [vmem:[%s1 + $0xe0] sm:$0xff]
    %v833 = vld [vmem:[%s1 + $0xe8] sm:$0xff]
    %v834 = vld [vmem:[%s1 + $0xf0] sm:$0xff]
    %v835 = vld [vmem:[%s1 + $0xf8] sm:$0xff]
    %v836 = vld [vmem:[#allocation2] sm:$0xff]
    %v837 = vld [vmem:[#allocation2 + $0x8] sm:$0xff]
    %v838 = vld [vmem:[#allocation2 + $0x10] sm:$0xff]
    %v839 = vld [vmem:[#allocation2 + $0x18] sm:$0xff]
    %v840 = vld [vmem:[#allocation2 + $0x20] sm:$0xff]
    %v841 = vld [vmem:[#allocation2 + $0x28] sm:$0xff]
    %v842 = vld [vmem:[#allocation2 + $0x30] sm:$0xff]
    %v843 = vld [vmem:[#allocation2 + $0x38] sm:$0xff]
    %v844 = vld [vmem:[#allocation2 + $0x40] sm:$0xff]
    %v845 = vld [vmem:[#allocation2 + $0x48] sm:$0xff]
    %v846 = vld [vmem:[#allocation2 + $0x50] sm:$0xff]
    %v847 = vld [vmem:[#allocation2 + $0x58] sm:$0xff]
    %v848 = vld [vmem:[#allocation2 + $0x60] sm:$0xff]
    %v849 = vld [vmem:[#allocation2 + $0x68] sm:$0xff]
    %v850 = vld [vmem:[#allocation2 + $0x70] sm:$0xff]
    %v851 = vld [vmem:[#allocation2 + $0x78] sm:$0xff]
    %v852 = vld [vmem:[#allocation2 + $0x80] sm:$0xff]
    %v853 = vld [vmem:[#allocation2 + $0x88] sm:$0xff]
    %v854 = vld [vmem:[#allocation2 + $0x90] sm:$0xff]
    %v855 = vld [vmem:[#allocation2 + $0x98] sm:$0xff]
    %v856 = vld [vmem:[#allocation2 + $0xa0] sm:$0xff]
    %v857 = vld [vmem:[#allocation2 + $0xa8] sm:$0xff]
    %v858 = vld [vmem:[#allocation2 + $0xb0] sm:$0xff]
    %v859 = vld [vmem:[#allocation2 + $0xb8] sm:$0xff]
    %v860 = vld [vmem:[#allocation2 + $0xc0] sm:$0xff]
    %v861 = vld [vmem:[#allocation2 + $0xc8] sm:$0xff]
    %v862 = vld [vmem:[#allocation2 + $0xd0] sm:$0xff]
    %v863 = vld [vmem:[#allocation2 + $0xd8] sm:$0xff]
    %v864 = vld [vmem:[#allocation2 + $0xe0] sm:$0xff]
    %v865 = vld [vmem:[#allocation2 + $0xe8] sm:$0xff]
    %v866 = vld [vmem:[#allocation2 + $0xf0] sm:$0xff]
    %v867 = vld [vmem:[#allocation2 + $0xf8] sm:$0xff]
    %v868 = vld [vmem:[#allocation2 + $0x100] sm:$0xff]
    %v869 = vld [vmem:[#allocation2 + $0x108] sm:$0xff]
    %v870 = vld [vmem:[#allocation2 + $0x110] sm:$0xff]
    %v871 = vld [vmem:[#allocation2 + $0x118] sm:$0xff]
    %v872 = vld [vmem:[#allocation2 + $0x120] sm:$0xff]
    %v873 = vld [vmem:[#allocation2 + $0x128] sm:$0xff]
    %v874 = vld [vmem:[#allocation2 + $0x130] sm:$0xff]
    %v875 = vld [vmem:[#allocation2 + $0x138] sm:$0xff]
    %v876 = vld [vmem:[#allocation2 + $0x140] sm:$0xff]
    %v877 = vld [vmem:[#allocation2 + $0x148] sm:$0xff]
    %v878 = vld [vmem:[#allocation2 + $0x150] sm:$0xff]
    %v879 = vld [vmem:[#allocation2 + $0x158] sm:$0xff]
    %v880 = vld [vmem:[#allocation2 + $0x160] sm:$0xff]
    %v881 = vld [vmem:[#allocation2 + $0x168] sm:$0xff]
    %v882 = vld [vmem:[#allocation2 + $0x170] sm:$0xff]
    %v883 = vld [vmem:[#allocation2 + $0x178] sm:$0xff]
    %v884 = vld [vmem:[#allocation2 + $0x180] sm:$0xff]
    %v885 = vld [vmem:[#allocation2 + $0x188] sm:$0xff]
    %v886 = vld [vmem:[#allocation2 + $0x190] sm:$0xff]
    %v887 = vld [vmem:[#allocation2 + $0x198] sm:$0xff]
    %v888 = vld [vmem:[#allocation2 + $0x1a0] sm:$0xff]
    %v889 = vld [vmem:[#allocation2 + $0x1a8] sm:$0xff]
    %v890 = vld [vmem:[#allocation2 + $0x1b0] sm:$0xff]
    %v891 = vld [vmem:[#allocation2 + $0x1b8] sm:$0xff]
    %v892 = vld [vmem:[#allocation2 + $0x1c0] sm:$0xff]
    %v893 = vld [vmem:[#allocation2 + $0x1c8] sm:$0xff]
    %v894 = vld [vmem:[#allocation2 + $0x1d0] sm:$0xff]
    %v895 = vld [vmem:[#allocation2 + $0x1d8] sm:$0xff]
    %v896 = vld [vmem:[#allocation2 + $0x1e0] sm:$0xff]
    %v897 = vld [vmem:[#allocation2 + $0x1e8] sm:$0xff]
    %v898 = vld [vmem:[#allocation2 + $0x1f0] sm:$0xff]
    %v899 = vld [vmem:[#allocation2 + $0x1f8] sm:$0xff]
    %v900 = vld [vmem:[#allocation2 + $0x200] sm:$0xff]
    %v901 = vld [vmem:[#allocation2 + $0x208] sm:$0xff]
    %v902 = vld [vmem:[#allocation2 + $0x210] sm:$0xff]
    %v903 = vld [vmem:[#allocation2 + $0x218] sm:$0xff]
    %v904 = vld [vmem:[#allocation2 + $0x220] sm:$0xff]
    %v905 = vld [vmem:[#allocation2 + $0x228] sm:$0xff]
    %v906 = vld [vmem:[#allocation2 + $0x230] sm:$0xff]
    %v907 = vld [vmem:[#allocation2 + $0x238] sm:$0xff]
    %v908 = vld [vmem:[#allocation2 + $0x240] sm:$0xff]
    %v909 = vld [vmem:[#allocation2 + $0x248] sm:$0xff]
    %v910 = vld [vmem:[#allocation2 + $0x250] sm:$0xff]
    %v911 = vld [vmem:[#allocation2 + $0x258] sm:$0xff]
    %v912 = vld [vmem:[#allocation2 + $0x260] sm:$0xff]
    %v913 = vld [vmem:[#allocation2 + $0x268] sm:$0xff]
    %v914 = vld [vmem:[#allocation2 + $0x270] sm:$0xff]
    %v915 = vld [vmem:[#allocation2 + $0x278] sm:$0xff]
    %v916 = vld [vmem:[#allocation2 + $0x280] sm:$0xff]
    %v917 = vld [vmem:[#allocation2 + $0x288] sm:$0xff]
    %v918 = vld [vmem:[#allocation2 + $0x290] sm:$0xff]
    %v919 = vld [vmem:[#allocation2 + $0x298] sm:$0xff]
    %v920 = vld [vmem:[#allocation2 + $0x2a0] sm:$0xff]
    %v921 = vld [vmem:[#allocation2 + $0x2a8] sm:$0xff]
    %v922 = vld [vmem:[#allocation2 + $0x2b0] sm:$0xff]
    %v923 = vld [vmem:[#allocation2 + $0x2b8] sm:$0xff]
    %v924 = vld [vmem:[#allocation2 + $0x2c0] sm:$0xff]
    %v925 = vld [vmem:[#allocation2 + $0x2c8] sm:$0xff]
    %v926 = vld [vmem:[#allocation2 + $0x2d0] sm:$0xff]
    %v927 = vld [vmem:[#allocation2 + $0x2d8] sm:$0xff]
    %v928 = vld [vmem:[#allocation2 + $0x2e0] sm:$0xff]
    %v929 = vld [vmem:[#allocation2 + $0x2e8] sm:$0xff]
    %v930 = vld [vmem:[#allocation2 + $0x2f0] sm:$0xff]
    %v931 = vld [vmem:[#allocation2 + $0x2f8] sm:$0xff]
    %v932 = vld [vmem:[#allocation2 + $0x300] sm:$0xff]
    %v933 = vld [vmem:[#allocation2 + $0x308] sm:$0xff]
    %v934 = vld [vmem:[#allocation2 + $0x310] sm:$0xff]
    %v935 = vld [vmem:[#allocation2 + $0x318] sm:$0xff]
    %v936 = vld [vmem:[#allocation2 + $0x320] sm:$0xff]
    %v937 = vld [vmem:[#allocation2 + $0x328] sm:$0xff]
    %v938 = vld [vmem:[#allocation2 + $0x330] sm:$0xff]
    %v939 = vld [vmem:[#allocation2 + $0x338] sm:$0xff]
    %v940 = vld [vmem:[#allocation2 + $0x340] sm:$0xff]
    %v941 = vld [vmem:[#allocation2 + $0x348] sm:$0xff]
    %v942 = vld [vmem:[#allocation2 + $0x350] sm:$0xff]
    %v943 = vld [vmem:[#allocation2 + $0x358] sm:$0xff]
    %v944 = vld [vmem:[#allocation2 + $0x360] sm:$0xff]
    %v945 = vld [vmem:[#allocation2 + $0x368] sm:$0xff]
    %v946 = vld [vmem:[#allocation2 + $0x370] sm:$0xff]
    %v947 = vld [vmem:[#allocation2 + $0x378] sm:$0xff]
    %v948 = vld [vmem:[#allocation2 + $0x380] sm:$0xff]
    %v949 = vld [vmem:[#allocation2 + $0x388] sm:$0xff]
    %v950 = vld [vmem:[#allocation2 + $0x390] sm:$0xff]
    %v951 = vld [vmem:[#allocation2 + $0x398] sm:$0xff]
    %v952 = vld [vmem:[#allocation2 + $0x3a0] sm:$0xff]
    %v953 = vld [vmem:[#allocation2 + $0x3a8] sm:$0xff]
    %v954 = vld [vmem:[#allocation2 + $0x3b0] sm:$0xff]
    %v955 = vld [vmem:[#allocation2 + $0x3b8] sm:$0xff]
    %v956 = vld [vmem:[#allocation2 + $0x3c0] sm:$0xff]
    %v957 = vld [vmem:[#allocation2 + $0x3c8] sm:$0xff]
    %v958 = vld [vmem:[#allocation2 + $0x3d0] sm:$0xff]
    %v959 = vld [vmem:[#allocation2 + $0x3d8] sm:$0xff]
    %v960 = vld [vmem:[#allocation2 + $0x3e0] sm:$0xff]
    %v961 = vld [vmem:[#allocation2 + $0x3e8] sm:$0xff]
    %v962 = vld [vmem:[#allocation2 + $0x3f0] sm:$0xff]
    %v963 = vld [vmem:[#allocation2 + $0x3f8] sm:$0xff]
    %v964 = vld [vmem:[#allocation2 + $0x400] sm:$0xff]
    %v965 = vld [vmem:[#allocation2 + $0x408] sm:$0xff]
    %v966 = vld [vmem:[#allocation2 + $0x410] sm:$0xff]
    %v967 = vld [vmem:[#allocation2 + $0x418] sm:$0xff]
    %v968 = vld [vmem:[#allocation2 + $0x420] sm:$0xff]
    %v969 = vld [vmem:[#allocation2 + $0x428] sm:$0xff]
    %v970 = vld [vmem:[#allocation2 + $0x430] sm:$0xff]
    %v971 = vld [vmem:[#allocation2 + $0x438] sm:$0xff]
    %v972 = vld [vmem:[#allocation2 + $0x440] sm:$0xff]
    %v973 = vld [vmem:[#allocation2 + $0x448] sm:$0xff]
    %v974 = vld [vmem:[#allocation2 + $0x450] sm:$0xff]
    %v975 = vld [vmem:[#allocation2 + $0x458] sm:$0xff]
    %v976 = vld [vmem:[#allocation2 + $0x460] sm:$0xff]
    %v977 = vld [vmem:[#allocation2 + $0x468] sm:$0xff]
    %v978 = vld [vmem:[#allocation2 + $0x470] sm:$0xff]
    %v979 = vld [vmem:[#allocation2 + $0x478] sm:$0xff]
    %v980 = vld [vmem:[#allocation2 + $0x480] sm:$0xff]
    %v981 = vld [vmem:[#allocation2 + $0x488] sm:$0xff]
    %v982 = vld [vmem:[#allocation2 + $0x490] sm:$0xff]
    %v983 = vld [vmem:[#allocation2 + $0x498] sm:$0xff]
    %v984 = vld [vmem:[#allocation2 + $0x4a0] sm:$0xff]
    %v985 = vld [vmem:[#allocation2 + $0x4a8] sm:$0xff]
    %v986 = vld [vmem:[#allocation2 + $0x4b0] sm:$0xff]
    %v987 = vld [vmem:[#allocation2 + $0x4b8] sm:$0xff]
    %v988 = vld [vmem:[#allocation2 + $0x4c0] sm:$0xff]
    %v989 = vld [vmem:[#allocation2 + $0x4c8] sm:$0xff]
    %v990 = vld [vmem:[#allocation2 + $0x4d0] sm:$0xff]
    %v991 = vld [vmem:[#allocation2 + $0x4d8] sm:$0xff]
    %v992 = vld [vmem:[#allocation2 + $0x4e0] sm:$0xff]
    %v993 = vld [vmem:[#allocation2 + $0x4e8] sm:$0xff]
    %v994 = vld [vmem:[#allocation2 + $0x4f0] sm:$0xff]
    %v995 = vld [vmem:[#allocation2 + $0x4f8] sm:$0xff]
    %v996 = vld [vmem:[#allocation2 + $0x500] sm:$0xff]
    %v997 = vld [vmem:[#allocation2 + $0x508] sm:$0xff]
    %v998 = vld [vmem:[#allocation2 + $0x510] sm:$0xff]
    %v999 = vld [vmem:[#allocation2 + $0x518] sm:$0xff]
    %v1000 = vld [vmem:[#allocation2 + $0x520] sm:$0xff]
    %v1001 = vld [vmem:[#allocation2 + $0x528] sm:$0xff]
    %v1002 = vld [vmem:[#allocation2 + $0x530] sm:$0xff]
    %v1003 = vld [vmem:[#allocation2 + $0x538] sm:$0xff]
    %v1004 = vld [vmem:[#allocation2 + $0x540] sm:$0xff]
    %v1005 = vld [vmem:[#allocation2 + $0x548] sm:$0xff]
    %v1006 = vld [vmem:[#allocation2 + $0x550] sm:$0xff]
    %v1007 = vld [vmem:[#allocation2 + $0x558] sm:$0xff]
    %v1008 = vld [vmem:[#allocation2 + $0x560] sm:$0xff]
    %v1009 = vld [vmem:[#allocation2 + $0x568] sm:$0xff]
    %v1010 = vld [vmem:[#allocation2 + $0x570] sm:$0xff]
    %v1011 = vld [vmem:[#allocation2 + $0x578] sm:$0xff]
    %v1012 = vld [vmem:[#allocation2 + $0x580] sm:$0xff]
    %v1013 = vld [vmem:[#allocation2 + $0x588] sm:$0xff]
    %v1014 = vld [vmem:[#allocation2 + $0x590] sm:$0xff]
    %v1015 = vld [vmem:[#allocation2 + $0x598] sm:$0xff]
    %v1016 = vld [vmem:[#allocation2 + $0x5a0] sm:$0xff]
    %v1017 = vld [vmem:[#allocation2 + $0x5a8] sm:$0xff]
    %v1018 = vld [vmem:[#allocation2 + $0x5b0] sm:$0xff]
    %v1019 = vld [vmem:[#allocation2 + $0x5b8] sm:$0xff]
    %v1020 = vld [vmem:[#allocation2 + $0x5c0] sm:$0xff]
    %v1021 = vld [vmem:[#allocation2 + $0x5c8] sm:$0xff]
    %v1022 = vld [vmem:[#allocation2 + $0x5d0] sm:$0xff]
    %v1023 = vld [vmem:[#allocation2 + $0x5d8] sm:$0xff]
    %v1024 = vld [vmem:[#allocation2 + $0x5e0] sm:$0xff]
    %v1025 = vld [vmem:[#allocation2 + $0x5e8] sm:$0xff]
    %v1026 = vld [vmem:[#allocation2 + $0x5f0] sm:$0xff]
    %v1027 = vld [vmem:[#allocation2 + $0x5f8] sm:$0xff]
    %v1028 = vld [vmem:[#allocation2 + $0x600] sm:$0xff]
    %v1029 = vld [vmem:[#allocation2 + $0x608] sm:$0xff]
    %v1030 = vld [vmem:[#allocation2 + $0x610] sm:$0xff]
    %v1031 = vld [vmem:[#allocation2 + $0x618] sm:$0xff]
    %v1032 = vld [vmem:[#allocation2 + $0x620] sm:$0xff]
    %v1033 = vld [vmem:[#allocation2 + $0x628] sm:$0xff]
    %v1034 = vld [vmem:[#allocation2 + $0x630] sm:$0xff]
    %v1035 = vld [vmem:[#allocation2 + $0x638] sm:$0xff]
    %v1036 = vld [vmem:[#allocation2 + $0x640] sm:$0xff]
    %v1037 = vld [vmem:[#allocation2 + $0x648] sm:$0xff]
    %v1038 = vld [vmem:[#allocation2 + $0x650] sm:$0xff]
    %v1039 = vld [vmem:[#allocation2 + $0x658] sm:$0xff]
    %v1040 = vld [vmem:[#allocation2 + $0x660] sm:$0xff]
    %v1041 = vld [vmem:[#allocation2 + $0x668] sm:$0xff]
    %v1042 = vld [vmem:[#allocation2 + $0x670] sm:$0xff]
    %v1043 = vld [vmem:[#allocation2 + $0x678] sm:$0xff]
    %v1044 = vld [vmem:[#allocation2 + $0x680] sm:$0xff]
    %v1045 = vld [vmem:[#allocation2 + $0x688] sm:$0xff]
    %v1046 = vld [vmem:[#allocation2 + $0x690] sm:$0xff]
    %v1047 = vld [vmem:[#allocation2 + $0x698] sm:$0xff]
    %v1048 = vld [vmem:[#allocation2 + $0x6a0] sm:$0xff]
    %v1049 = vld [vmem:[#allocation2 + $0x6a8] sm:$0xff]
    %v1050 = vld [vmem:[#allocation2 + $0x6b0] sm:$0xff]
    %v1051 = vld [vmem:[#allocation2 + $0x6b8] sm:$0xff]
    %v1052 = vld [vmem:[#allocation2 + $0x6c0] sm:$0xff]
    %v1053 = vld [vmem:[#allocation2 + $0x6c8] sm:$0xff]
    %v1054 = vld [vmem:[#allocation2 + $0x6d0] sm:$0xff]
    %v1055 = vld [vmem:[#allocation2 + $0x6d8] sm:$0xff]
    %v1056 = vld [vmem:[#allocation2 + $0x6e0] sm:$0xff]
    %v1057 = vld [vmem:[#allocation2 + $0x6e8] sm:$0xff]
    %v1058 = vld [vmem:[#allocation2 + $0x6f0] sm:$0xff]
    %v1059 = vld [vmem:[#allocation2 + $0x6f8] sm:$0xff]
    %v1060 = vld [vmem:[#allocation2 + $0x700] sm:$0xff]
    %v1061 = vld [vmem:[#allocation2 + $0x708] sm:$0xff]
    %v1062 = vld [vmem:[#allocation2 + $0x710] sm:$0xff]
    %v1063 = vld [vmem:[#allocation2 + $0x718] sm:$0xff]
    %v1064 = vld [vmem:[#allocation2 + $0x720] sm:$0xff]
    %v1065 = vld [vmem:[#allocation2 + $0x728] sm:$0xff]
    %v1066 = vld [vmem:[#allocation2 + $0x730] sm:$0xff]
    %v1067 = vld [vmem:[#allocation2 + $0x738] sm:$0xff]
    %v1068 = vld [vmem:[#allocation2 + $0x740] sm:$0xff]
    %v1069 = vld [vmem:[#allocation2 + $0x748] sm:$0xff]
    %v1070 = vld [vmem:[#allocation2 + $0x750] sm:$0xff]
    %v1071 = vld [vmem:[#allocation2 + $0x758] sm:$0xff]
    %v1072 = vld [vmem:[#allocation2 + $0x760] sm:$0xff]
    %v1073 = vld [vmem:[#allocation2 + $0x768] sm:$0xff]
    %v1074 = vld [vmem:[#allocation2 + $0x770] sm:$0xff]
    %v1075 = vld [vmem:[#allocation2 + $0x778] sm:$0xff]
    %v1076 = vld [vmem:[#allocation2 + $0x780] sm:$0xff]
    %v1077 = vld [vmem:[#allocation2 + $0x788] sm:$0xff]
    %v1078 = vld [vmem:[#allocation2 + $0x790] sm:$0xff]
    %v1079 = vld [vmem:[#allocation2 + $0x798] sm:$0xff]
    %v1080 = vld [vmem:[#allocation2 + $0x7a0] sm:$0xff]
    %v1081 = vld [vmem:[#allocation2 + $0x7a8] sm:$0xff]
    %v1082 = vld [vmem:[#allocation2 + $0x7b0] sm:$0xff]
    %v1083 = vld [vmem:[#allocation2 + $0x7b8] sm:$0xff]
    %v1084 = vld [vmem:[#allocation2 + $0x7c0] sm:$0xff]
    %v1085 = vld [vmem:[#allocation2 + $0x7c8] sm:$0xff]
    %v1086 = vld [vmem:[#allocation2 + $0x7d0] sm:$0xff]
    %v1087 = vld [vmem:[#allocation2 + $0x7d8] sm:$0xff]
    %v1088 = vld [vmem:[#allocation2 + $0x7e0] sm:$0xff]
    %v1089 = vld [vmem:[#allocation2 + $0x7e8] sm:$0xff]
    %v1090 = vld [vmem:[#allocation2 + $0x7f0] sm:$0xff]
    %v1091 = vld [vmem:[#allocation2 + $0x7f8] sm:$0xff]
    %1092 = vmatpush.msra.mxu0 %v819
    %1093 = vmatpush.msra.mxu0 %v818
    %1094 = vmatpush.msra.mxu0 %v817
    %1095 = vmatpush.msra.mxu0 %v816
    %1096 = vmatpush.msra.mxu0 %v815
    %1097 = vmatpush.msra.mxu0 %v814
    %1098 = vmatpush.msra.mxu0 %v813
    %1099 = vmatpush.msra.mxu0 %v812
    %1100 = vmatpush.msra.mxu0 %v811
    %1101 = vmatpush.msra.mxu0 %v810
    %1102 = vmatpush.msra.mxu0 %v809
    %1103 = vmatpush.msra.mxu0 %v808
    %1104 = vmatpush.msra.mxu0 %v807
    %1105 = vmatpush.msra.mxu0 %v806
    %1106 = vmatpush.msra.mxu0 %v805
    %1107 = vmatpush.msra.mxu0 %v804
    %1108 = vmatmul.f32.gmra.mxu0 %v292
    %v1109 = vpop.f32.mrf.mxu0
    %v1110 = vadd.f32 0.0, %v1109
    %1111 = vmatmul.f32.gmra.mxu0 %v294
    %v1112 = vpop.f32.mrf.mxu0
    %v1113 = vadd.f32 0.0, %v1112
    %1114 = vmatmul.f32.gmra.mxu0 %v296
    %v1115 = vpop.f32.mrf.mxu0
    %v1116 = vadd.f32 0.0, %v1115
    %1117 = vmatmul.f32.gmra.mxu0 %v298
    %v1118 = vpop.f32.mrf.mxu0
    %v1119 = vadd.f32 0.0, %v1118
    %1120 = vmatmul.f32.gmra.mxu0 %v300
    %v1121 = vpop.f32.mrf.mxu0
    %v1122 = vadd.f32 0.0, %v1121
    %1123 = vmatmul.f32.gmra.mxu0 %v302
    %v1124 = vpop.f32.mrf.mxu0
    %v1125 = vadd.f32 0.0, %v1124
    %1126 = vmatmul.f32.gmra.mxu0 %v304
    %v1127 = vpop.f32.mrf.mxu0
    %v1128 = vadd.f32 0.0, %v1127
    %1129 = vmatmul.f32.gmra.mxu0 %v306
    %v1130 = vpop.f32.mrf.mxu0
    %v1131 = vadd.f32 0.0, %v1130
    %1132 = vmatmul.f32.gmra.mxu0 %v308
    %v1133 = vpop.f32.mrf.mxu0
    %v1134 = vadd.f32 0.0, %v1133
    %1135 = vmatmul.f32.gmra.mxu0 %v310
    %v1136 = vpop.f32.mrf.mxu0
    %v1137 = vadd.f32 0.0, %v1136
    %1138 = vmatmul.f32.gmra.mxu0 %v312
    %v1139 = vpop.f32.mrf.mxu0
    %v1140 = vadd.f32 0.0, %v1139
    %1141 = vmatmul.f32.gmra.mxu0 %v314
    %v1142 = vpop.f32.mrf.mxu0
    %v1143 = vadd.f32 0.0, %v1142
    %1144 = vmatmul.f32.gmra.mxu0 %v316
    %v1145 = vpop.f32.mrf.mxu0
    %v1146 = vadd.f32 0.0, %v1145
    %1147 = vmatmul.f32.gmra.mxu0 %v318
    %v1148 = vpop.f32.mrf.mxu0
    %v1149 = vadd.f32 0.0, %v1148
    %1150 = vmatmul.f32.gmra.mxu0 %v320
    %v1151 = vpop.f32.mrf.mxu0
    %v1152 = vadd.f32 0.0, %v1151
    %1153 = vmatmul.f32.gmra.mxu0 %v322
    %v1154 = vpop.f32.mrf.mxu0
    %v1155 = vadd.f32 0.0, %v1154
    %1156 = vmatmul.f32.gmra.mxu0 %v324
    %v1157 = vpop.f32.mrf.mxu0
    %v1158 = vadd.f32 0.0, %v1157
    %1159 = vmatmul.f32.gmra.mxu0 %v326
    %v1160 = vpop.f32.mrf.mxu0
    %v1161 = vadd.f32 0.0, %v1160
    %1162 = vmatmul.f32.gmra.mxu0 %v328
    %v1163 = vpop.f32.mrf.mxu0
    %v1164 = vadd.f32 0.0, %v1163
    %1165 = vmatmul.f32.gmra.mxu0 %v330
    %v1166 = vpop.f32.mrf.mxu0
    %v1167 = vadd.f32 0.0, %v1166
    %1168 = vmatmul.f32.gmra.mxu0 %v332
    %v1169 = vpop.f32.mrf.mxu0
    %v1170 = vadd.f32 0.0, %v1169
    %1171 = vmatmul.f32.gmra.mxu0 %v334
    %v1172 = vpop.f32.mrf.mxu0
    %v1173 = vadd.f32 0.0, %v1172
    %1174 = vmatmul.f32.gmra.mxu0 %v336
    %v1175 = vpop.f32.mrf.mxu0
    %v1176 = vadd.f32 0.0, %v1175
    %1177 = vmatmul.f32.gmra.mxu0 %v338
    %v1178 = vpop.f32.mrf.mxu0
    %v1179 = vadd.f32 0.0, %v1178
    %1180 = vmatmul.f32.gmra.mxu0 %v340
    %v1181 = vpop.f32.mrf.mxu0
    %v1182 = vadd.f32 0.0, %v1181
    %1183 = vmatmul.f32.gmra.mxu0 %v342
    %v1184 = vpop.f32.mrf.mxu0
    %v1185 = vadd.f32 0.0, %v1184
    %1186 = vmatmul.f32.gmra.mxu0 %v344
    %v1187 = vpop.f32.mrf.mxu0
    %v1188 = vadd.f32 0.0, %v1187
    %1189 = vmatmul.f32.gmra.mxu0 %v346
    %v1190 = vpop.f32.mrf.mxu0
    %v1191 = vadd.f32 0.0, %v1190
    %1192 = vmatmul.f32.gmra.mxu0 %v348
    %v1193 = vpop.f32.mrf.mxu0
    %v1194 = vadd.f32 0.0, %v1193
    %1195 = vmatmul.f32.gmra.mxu0 %v350
    %v1196 = vpop.f32.mrf.mxu0
    %v1197 = vadd.f32 0.0, %v1196
    %1198 = vmatmul.f32.gmra.mxu0 %v352
    %v1199 = vpop.f32.mrf.mxu0
    %v1200 = vadd.f32 0.0, %v1199
    %1201 = vmatmul.f32.gmra.mxu0 %v354
    %v1202 = vpop.f32.mrf.mxu0
    %v1203 = vadd.f32 0.0, %v1202
    %1204 = vmatmul.f32.gmra.mxu0 %v356
    %v1205 = vpop.f32.mrf.mxu0
    %v1206 = vadd.f32 0.0, %v1205
    %1207 = vmatmul.f32.gmra.mxu0 %v358
    %v1208 = vpop.f32.mrf.mxu0
    %v1209 = vadd.f32 0.0, %v1208
    %1210 = vmatmul.f32.gmra.mxu0 %v360
    %v1211 = vpop.f32.mrf.mxu0
    %v1212 = vadd.f32 0.0, %v1211
    %1213 = vmatmul.f32.gmra.mxu0 %v362
    %v1214 = vpop.f32.mrf.mxu0
    %v1215 = vadd.f32 0.0, %v1214
    %1216 = vmatmul.f32.gmra.mxu0 %v364
    %v1217 = vpop.f32.mrf.mxu0
    %v1218 = vadd.f32 0.0, %v1217
    %1219 = vmatmul.f32.gmra.mxu0 %v366
    %v1220 = vpop.f32.mrf.mxu0
    %v1221 = vadd.f32 0.0, %v1220
    %1222 = vmatmul.f32.gmra.mxu0 %v368
    %v1223 = vpop.f32.mrf.mxu0
    %v1224 = vadd.f32 0.0, %v1223
    %1225 = vmatmul.f32.gmra.mxu0 %v370
    %v1226 = vpop.f32.mrf.mxu0
    %v1227 = vadd.f32 0.0, %v1226
    %1228 = vmatmul.f32.gmra.mxu0 %v372
    %v1229 = vpop.f32.mrf.mxu0
    %v1230 = vadd.f32 0.0, %v1229
    %1231 = vmatmul.f32.gmra.mxu0 %v374
    %v1232 = vpop.f32.mrf.mxu0
    %v1233 = vadd.f32 0.0, %v1232
    %1234 = vmatmul.f32.gmra.mxu0 %v376
    %v1235 = vpop.f32.mrf.mxu0
    %v1236 = vadd.f32 0.0, %v1235
    %1237 = vmatmul.f32.gmra.mxu0 %v378
    %v1238 = vpop.f32.mrf.mxu0
    %v1239 = vadd.f32 0.0, %v1238
    %1240 = vmatmul.f32.gmra.mxu0 %v380
    %v1241 = vpop.f32.mrf.mxu0
    %v1242 = vadd.f32 0.0, %v1241
    %1243 = vmatmul.f32.gmra.mxu0 %v382
    %v1244 = vpop.f32.mrf.mxu0
    %v1245 = vadd.f32 0.0, %v1244
    %1246 = vmatmul.f32.gmra.mxu0 %v384
    %v1247 = vpop.f32.mrf.mxu0
    %v1248 = vadd.f32 0.0, %v1247
    %1249 = vmatmul.f32.gmra.mxu0 %v386
    %v1250 = vpop.f32.mrf.mxu0
    %v1251 = vadd.f32 0.0, %v1250
    %1252 = vmatmul.f32.gmra.mxu0 %v388
    %v1253 = vpop.f32.mrf.mxu0
    %v1254 = vadd.f32 0.0, %v1253
    %1255 = vmatmul.f32.gmra.mxu0 %v390
    %v1256 = vpop.f32.mrf.mxu0
    %v1257 = vadd.f32 0.0, %v1256
    %1258 = vmatmul.f32.gmra.mxu0 %v392
    %v1259 = vpop.f32.mrf.mxu0
    %v1260 = vadd.f32 0.0, %v1259
    %1261 = vmatmul.f32.gmra.mxu0 %v394
    %v1262 = vpop.f32.mrf.mxu0
    %v1263 = vadd.f32 0.0, %v1262
    %1264 = vmatmul.f32.gmra.mxu0 %v396
    %v1265 = vpop.f32.mrf.mxu0
    %v1266 = vadd.f32 0.0, %v1265
    %1267 = vmatmul.f32.gmra.mxu0 %v398
    %v1268 = vpop.f32.mrf.mxu0
    %v1269 = vadd.f32 0.0, %v1268
    %1270 = vmatmul.f32.gmra.mxu0 %v400
    %v1271 = vpop.f32.mrf.mxu0
    %v1272 = vadd.f32 0.0, %v1271
    %1273 = vmatmul.f32.gmra.mxu0 %v402
    %v1274 = vpop.f32.mrf.mxu0
    %v1275 = vadd.f32 0.0, %v1274
    %1276 = vmatmul.f32.gmra.mxu0 %v404
    %v1277 = vpop.f32.mrf.mxu0
    %v1278 = vadd.f32 0.0, %v1277
    %1279 = vmatmul.f32.gmra.mxu0 %v406
    %v1280 = vpop.f32.mrf.mxu0
    %v1281 = vadd.f32 0.0, %v1280
    %1282 = vmatmul.f32.gmra.mxu0 %v408
    %v1283 = vpop.f32.mrf.mxu0
    %v1284 = vadd.f32 0.0, %v1283
    %1285 = vmatmul.f32.gmra.mxu0 %v410
    %v1286 = vpop.f32.mrf.mxu0
    %v1287 = vadd.f32 0.0, %v1286
    %1288 = vmatmul.f32.gmra.mxu0 %v412
    %v1289 = vpop.f32.mrf.mxu0
    %v1290 = vadd.f32 0.0, %v1289
    %1291 = vmatmul.f32.gmra.mxu0 %v414
    %v1292 = vpop.f32.mrf.mxu0
    %v1293 = vadd.f32 0.0, %v1292
    %1294 = vmatmul.f32.gmra.mxu0 %v416
    %v1295 = vpop.f32.mrf.mxu0
    %v1296 = vadd.f32 0.0, %v1295
    %1297 = vmatmul.f32.gmra.mxu0 %v418
    %v1298 = vpop.f32.mrf.mxu0
    %v1299 = vadd.f32 0.0, %v1298
    %1300 = vmatmul.f32.gmra.mxu0 %v420
    %v1301 = vpop.f32.mrf.mxu0
    %v1302 = vadd.f32 0.0, %v1301
    %1303 = vmatmul.f32.gmra.mxu0 %v422
    %v1304 = vpop.f32.mrf.mxu0
    %v1305 = vadd.f32 0.0, %v1304
    %1306 = vmatmul.f32.gmra.mxu0 %v424
    %v1307 = vpop.f32.mrf.mxu0
    %v1308 = vadd.f32 0.0, %v1307
    %1309 = vmatmul.f32.gmra.mxu0 %v426
    %v1310 = vpop.f32.mrf.mxu0
    %v1311 = vadd.f32 0.0, %v1310
    %1312 = vmatmul.f32.gmra.mxu0 %v428
    %v1313 = vpop.f32.mrf.mxu0
    %v1314 = vadd.f32 0.0, %v1313
    %1315 = vmatmul.f32.gmra.mxu0 %v430
    %v1316 = vpop.f32.mrf.mxu0
    %v1317 = vadd.f32 0.0, %v1316
    %1318 = vmatmul.f32.gmra.mxu0 %v432
    %v1319 = vpop.f32.mrf.mxu0
    %v1320 = vadd.f32 0.0, %v1319
    %1321 = vmatmul.f32.gmra.mxu0 %v434
    %v1322 = vpop.f32.mrf.mxu0
    %v1323 = vadd.f32 0.0, %v1322
    %1324 = vmatmul.f32.gmra.mxu0 %v436
    %v1325 = vpop.f32.mrf.mxu0
    %v1326 = vadd.f32 0.0, %v1325
    %1327 = vmatmul.f32.gmra.mxu0 %v438
    %v1328 = vpop.f32.mrf.mxu0
    %v1329 = vadd.f32 0.0, %v1328
    %1330 = vmatmul.f32.gmra.mxu0 %v440
    %v1331 = vpop.f32.mrf.mxu0
    %v1332 = vadd.f32 0.0, %v1331
    %1333 = vmatmul.f32.gmra.mxu0 %v442
    %v1334 = vpop.f32.mrf.mxu0
    %v1335 = vadd.f32 0.0, %v1334
    %1336 = vmatmul.f32.gmra.mxu0 %v444
    %v1337 = vpop.f32.mrf.mxu0
    %v1338 = vadd.f32 0.0, %v1337
    %1339 = vmatmul.f32.gmra.mxu0 %v446
    %v1340 = vpop.f32.mrf.mxu0
    %v1341 = vadd.f32 0.0, %v1340
    %1342 = vmatmul.f32.gmra.mxu0 %v448
    %v1343 = vpop.f32.mrf.mxu0
    %v1344 = vadd.f32 0.0, %v1343
    %1345 = vmatmul.f32.gmra.mxu0 %v450
    %v1346 = vpop.f32.mrf.mxu0
    %v1347 = vadd.f32 0.0, %v1346
    %1348 = vmatmul.f32.gmra.mxu0 %v452
    %v1349 = vpop.f32.mrf.mxu0
    %v1350 = vadd.f32 0.0, %v1349
    %1351 = vmatmul.f32.gmra.mxu0 %v454
    %v1352 = vpop.f32.mrf.mxu0
    %v1353 = vadd.f32 0.0, %v1352
    %1354 = vmatmul.f32.gmra.mxu0 %v456
    %v1355 = vpop.f32.mrf.mxu0
    %v1356 = vadd.f32 0.0, %v1355
    %1357 = vmatmul.f32.gmra.mxu0 %v458
    %v1358 = vpop.f32.mrf.mxu0
    %v1359 = vadd.f32 0.0, %v1358
    %1360 = vmatmul.f32.gmra.mxu0 %v460
    %v1361 = vpop.f32.mrf.mxu0
    %v1362 = vadd.f32 0.0, %v1361
    %1363 = vmatmul.f32.gmra.mxu0 %v462
    %v1364 = vpop.f32.mrf.mxu0
    %v1365 = vadd.f32 0.0, %v1364
    %1366 = vmatmul.f32.gmra.mxu0 %v464
    %v1367 = vpop.f32.mrf.mxu0
    %v1368 = vadd.f32 0.0, %v1367
    %1369 = vmatmul.f32.gmra.mxu0 %v466
    %v1370 = vpop.f32.mrf.mxu0
    %v1371 = vadd.f32 0.0, %v1370
    %1372 = vmatmul.f32.gmra.mxu0 %v468
    %v1373 = vpop.f32.mrf.mxu0
    %v1374 = vadd.f32 0.0, %v1373
    %1375 = vmatmul.f32.gmra.mxu0 %v470
    %v1376 = vpop.f32.mrf.mxu0
    %v1377 = vadd.f32 0.0, %v1376
    %1378 = vmatmul.f32.gmra.mxu0 %v472
    %v1379 = vpop.f32.mrf.mxu0
    %v1380 = vadd.f32 0.0, %v1379
    %1381 = vmatmul.f32.gmra.mxu0 %v474
    %v1382 = vpop.f32.mrf.mxu0
    %v1383 = vadd.f32 0.0, %v1382
    %1384 = vmatmul.f32.gmra.mxu0 %v476
    %v1385 = vpop.f32.mrf.mxu0
    %v1386 = vadd.f32 0.0, %v1385
    %1387 = vmatmul.f32.gmra.mxu0 %v478
    %v1388 = vpop.f32.mrf.mxu0
    %v1389 = vadd.f32 0.0, %v1388
    %1390 = vmatmul.f32.gmra.mxu0 %v480
    %v1391 = vpop.f32.mrf.mxu0
    %v1392 = vadd.f32 0.0, %v1391
    %1393 = vmatmul.f32.gmra.mxu0 %v482
    %v1394 = vpop.f32.mrf.mxu0
    %v1395 = vadd.f32 0.0, %v1394
    %1396 = vmatmul.f32.gmra.mxu0 %v484
    %v1397 = vpop.f32.mrf.mxu0
    %v1398 = vadd.f32 0.0, %v1397
    %1399 = vmatmul.f32.gmra.mxu0 %v486
    %v1400 = vpop.f32.mrf.mxu0
    %v1401 = vadd.f32 0.0, %v1400
    %1402 = vmatmul.f32.gmra.mxu0 %v488
    %v1403 = vpop.f32.mrf.mxu0
    %v1404 = vadd.f32 0.0, %v1403
    %1405 = vmatmul.f32.gmra.mxu0 %v490
    %v1406 = vpop.f32.mrf.mxu0
    %v1407 = vadd.f32 0.0, %v1406
    %1408 = vmatmul.f32.gmra.mxu0 %v492
    %v1409 = vpop.f32.mrf.mxu0
    %v1410 = vadd.f32 0.0, %v1409
    %1411 = vmatmul.f32.gmra.mxu0 %v494
    %v1412 = vpop.f32.mrf.mxu0
    %v1413 = vadd.f32 0.0, %v1412
    %1414 = vmatmul.f32.gmra.mxu0 %v496
    %v1415 = vpop.f32.mrf.mxu0
    %v1416 = vadd.f32 0.0, %v1415
    %1417 = vmatmul.f32.gmra.mxu0 %v498
    %v1418 = vpop.f32.mrf.mxu0
    %v1419 = vadd.f32 0.0, %v1418
    %1420 = vmatmul.f32.gmra.mxu0 %v500
    %v1421 = vpop.f32.mrf.mxu0
    %v1422 = vadd.f32 0.0, %v1421
    %1423 = vmatmul.f32.gmra.mxu0 %v502
    %v1424 = vpop.f32.mrf.mxu0
    %v1425 = vadd.f32 0.0, %v1424
    %1426 = vmatmul.f32.gmra.mxu0 %v504
    %v1427 = vpop.f32.mrf.mxu0
    %v1428 = vadd.f32 0.0, %v1427
    %1429 = vmatmul.f32.gmra.mxu0 %v506
    %v1430 = vpop.f32.mrf.mxu0
    %v1431 = vadd.f32 0.0, %v1430
    %1432 = vmatmul.f32.gmra.mxu0 %v508
    %v1433 = vpop.f32.mrf.mxu0
    %v1434 = vadd.f32 0.0, %v1433
    %1435 = vmatmul.f32.gmra.mxu0 %v510
    %v1436 = vpop.f32.mrf.mxu0
    %v1437 = vadd.f32 0.0, %v1436
    %1438 = vmatmul.f32.gmra.mxu0 %v512
    %v1439 = vpop.f32.mrf.mxu0
    %v1440 = vadd.f32 0.0, %v1439
    %1441 = vmatmul.f32.gmra.mxu0 %v514
    %v1442 = vpop.f32.mrf.mxu0
    %v1443 = vadd.f32 0.0, %v1442
    %1444 = vmatmul.f32.gmra.mxu0 %v516
    %v1445 = vpop.f32.mrf.mxu0
    %v1446 = vadd.f32 0.0, %v1445
    %1447 = vmatmul.f32.gmra.mxu0 %v518
    %v1448 = vpop.f32.mrf.mxu0
    %v1449 = vadd.f32 0.0, %v1448
    %1450 = vmatmul.f32.gmra.mxu0 %v520
    %v1451 = vpop.f32.mrf.mxu0
    %v1452 = vadd.f32 0.0, %v1451
    %1453 = vmatmul.f32.gmra.mxu0 %v522
    %v1454 = vpop.f32.mrf.mxu0
    %v1455 = vadd.f32 0.0, %v1454
    %1456 = vmatmul.f32.gmra.mxu0 %v524
    %v1457 = vpop.f32.mrf.mxu0
    %v1458 = vadd.f32 0.0, %v1457
    %1459 = vmatmul.f32.gmra.mxu0 %v526
    %v1460 = vpop.f32.mrf.mxu0
    %v1461 = vadd.f32 0.0, %v1460
    %1462 = vmatmul.f32.gmra.mxu0 %v528
    %v1463 = vpop.f32.mrf.mxu0
    %v1464 = vadd.f32 0.0, %v1463
    %1465 = vmatmul.f32.gmra.mxu0 %v530
    %v1466 = vpop.f32.mrf.mxu0
    %v1467 = vadd.f32 0.0, %v1466
    %1468 = vmatmul.f32.gmra.mxu0 %v532
    %v1469 = vpop.f32.mrf.mxu0
    %v1470 = vadd.f32 0.0, %v1469
    %1471 = vmatmul.f32.gmra.mxu0 %v534
    %v1472 = vpop.f32.mrf.mxu0
    %v1473 = vadd.f32 0.0, %v1472
    %1474 = vmatmul.f32.gmra.mxu0 %v536
    %v1475 = vpop.f32.mrf.mxu0
    %v1476 = vadd.f32 0.0, %v1475
    %1477 = vmatmul.f32.gmra.mxu0 %v538
    %v1478 = vpop.f32.mrf.mxu0
    %v1479 = vadd.f32 0.0, %v1478
    %1480 = vmatmul.f32.gmra.mxu0 %v540
    %v1481 = vpop.f32.mrf.mxu0
    %v1482 = vadd.f32 0.0, %v1481
    %1483 = vmatmul.f32.gmra.mxu0 %v542
    %v1484 = vpop.f32.mrf.mxu0
    %v1485 = vadd.f32 0.0, %v1484
    %1486 = vmatmul.f32.gmra.mxu0 %v544
    %v1487 = vpop.f32.mrf.mxu0
    %v1488 = vadd.f32 0.0, %v1487
    %1489 = vmatmul.f32.gmra.mxu0 %v546
    %v1490 = vpop.f32.mrf.mxu0
    %v1491 = vadd.f32 0.0, %v1490
    %1492 = vmatmul.f32.gmra.mxu0 %v548
    %v1493 = vpop.f32.mrf.mxu0
    %v1494 = vadd.f32 0.0, %v1493
    %1495 = vmatmul.f32.gmra.mxu0 %v550
    %v1496 = vpop.f32.mrf.mxu0
    %v1497 = vadd.f32 0.0, %v1496
    %1498 = vmatmul.f32.gmra.mxu0 %v552
    %v1499 = vpop.f32.mrf.mxu0
    %v1500 = vadd.f32 0.0, %v1499
    %1501 = vmatmul.f32.gmra.mxu0 %v554
    %v1502 = vpop.f32.mrf.mxu0
    %v1503 = vadd.f32 0.0, %v1502
    %1504 = vmatmul.f32.gmra.mxu0 %v556
    %v1505 = vpop.f32.mrf.mxu0
    %v1506 = vadd.f32 0.0, %v1505
    %1507 = vmatmul.f32.gmra.mxu0 %v558
    %v1508 = vpop.f32.mrf.mxu0
    %v1509 = vadd.f32 0.0, %v1508
    %1510 = vmatmul.f32.gmra.mxu0 %v560
    %v1511 = vpop.f32.mrf.mxu0
    %v1512 = vadd.f32 0.0, %v1511
    %1513 = vmatmul.f32.gmra.mxu0 %v562
    %v1514 = vpop.f32.mrf.mxu0
    %v1515 = vadd.f32 0.0, %v1514
    %1516 = vmatmul.f32.gmra.mxu0 %v564
    %v1517 = vpop.f32.mrf.mxu0
    %v1518 = vadd.f32 0.0, %v1517
    %1519 = vmatmul.f32.gmra.mxu0 %v566
    %v1520 = vpop.f32.mrf.mxu0
    %v1521 = vadd.f32 0.0, %v1520
    %1522 = vmatmul.f32.gmra.mxu0 %v568
    %v1523 = vpop.f32.mrf.mxu0
    %v1524 = vadd.f32 0.0, %v1523
    %1525 = vmatmul.f32.gmra.mxu0 %v570
    %v1526 = vpop.f32.mrf.mxu0
    %v1527 = vadd.f32 0.0, %v1526
    %1528 = vmatmul.f32.gmra.mxu0 %v572
    %v1529 = vpop.f32.mrf.mxu0
    %v1530 = vadd.f32 0.0, %v1529
    %1531 = vmatmul.f32.gmra.mxu0 %v574
    %v1532 = vpop.f32.mrf.mxu0
    %v1533 = vadd.f32 0.0, %v1532
    %1534 = vmatmul.f32.gmra.mxu0 %v576
    %v1535 = vpop.f32.mrf.mxu0
    %v1536 = vadd.f32 0.0, %v1535
    %1537 = vmatmul.f32.gmra.mxu0 %v578
    %v1538 = vpop.f32.mrf.mxu0
    %v1539 = vadd.f32 0.0, %v1538
    %1540 = vmatmul.f32.gmra.mxu0 %v580
    %v1541 = vpop.f32.mrf.mxu0
    %v1542 = vadd.f32 0.0, %v1541
    %1543 = vmatmul.f32.gmra.mxu0 %v582
    %v1544 = vpop.f32.mrf.mxu0
    %v1545 = vadd.f32 0.0, %v1544
    %1546 = vmatmul.f32.gmra.mxu0 %v584
    %v1547 = vpop.f32.mrf.mxu0
    %v1548 = vadd.f32 0.0, %v1547
    %1549 = vmatmul.f32.gmra.mxu0 %v586
    %v1550 = vpop.f32.mrf.mxu0
    %v1551 = vadd.f32 0.0, %v1550
    %1552 = vmatmul.f32.gmra.mxu0 %v588
    %v1553 = vpop.f32.mrf.mxu0
    %v1554 = vadd.f32 0.0, %v1553
    %1555 = vmatmul.f32.gmra.mxu0 %v590
    %v1556 = vpop.f32.mrf.mxu0
    %v1557 = vadd.f32 0.0, %v1556
    %1558 = vmatmul.f32.gmra.mxu0 %v592
    %v1559 = vpop.f32.mrf.mxu0
    %v1560 = vadd.f32 0.0, %v1559
    %1561 = vmatmul.f32.gmra.mxu0 %v594
    %v1562 = vpop.f32.mrf.mxu0
    %v1563 = vadd.f32 0.0, %v1562
    %1564 = vmatmul.f32.gmra.mxu0 %v596
    %v1565 = vpop.f32.mrf.mxu0
    %v1566 = vadd.f32 0.0, %v1565
    %1567 = vmatmul.f32.gmra.mxu0 %v598
    %v1568 = vpop.f32.mrf.mxu0
    %v1569 = vadd.f32 0.0, %v1568
    %1570 = vmatmul.f32.gmra.mxu0 %v600
    %v1571 = vpop.f32.mrf.mxu0
    %v1572 = vadd.f32 0.0, %v1571
    %1573 = vmatmul.f32.gmra.mxu0 %v602
    %v1574 = vpop.f32.mrf.mxu0
    %v1575 = vadd.f32 0.0, %v1574
    %1576 = vmatmul.f32.gmra.mxu0 %v604
    %v1577 = vpop.f32.mrf.mxu0
    %v1578 = vadd.f32 0.0, %v1577
    %1579 = vmatmul.f32.gmra.mxu0 %v606
    %v1580 = vpop.f32.mrf.mxu0
    %v1581 = vadd.f32 0.0, %v1580
    %1582 = vmatmul.f32.gmra.mxu0 %v608
    %v1583 = vpop.f32.mrf.mxu0
    %v1584 = vadd.f32 0.0, %v1583
    %1585 = vmatmul.f32.gmra.mxu0 %v610
    %v1586 = vpop.f32.mrf.mxu0
    %v1587 = vadd.f32 0.0, %v1586
    %1588 = vmatmul.f32.gmra.mxu0 %v612
    %v1589 = vpop.f32.mrf.mxu0
    %v1590 = vadd.f32 0.0, %v1589
    %1591 = vmatmul.f32.gmra.mxu0 %v614
    %v1592 = vpop.f32.mrf.mxu0
    %v1593 = vadd.f32 0.0, %v1592
    %1594 = vmatmul.f32.gmra.mxu0 %v616
    %v1595 = vpop.f32.mrf.mxu0
    %v1596 = vadd.f32 0.0, %v1595
    %1597 = vmatmul.f32.gmra.mxu0 %v618
    %v1598 = vpop.f32.mrf.mxu0
    %v1599 = vadd.f32 0.0, %v1598
    %1600 = vmatmul.f32.gmra.mxu0 %v620
    %v1601 = vpop.f32.mrf.mxu0
    %v1602 = vadd.f32 0.0, %v1601
    %1603 = vmatmul.f32.gmra.mxu0 %v622
    %v1604 = vpop.f32.mrf.mxu0
    %v1605 = vadd.f32 0.0, %v1604
    %1606 = vmatmul.f32.gmra.mxu0 %v624
    %v1607 = vpop.f32.mrf.mxu0
    %v1608 = vadd.f32 0.0, %v1607
    %1609 = vmatmul.f32.gmra.mxu0 %v626
    %v1610 = vpop.f32.mrf.mxu0
    %v1611 = vadd.f32 0.0, %v1610
    %1612 = vmatmul.f32.gmra.mxu0 %v628
    %v1613 = vpop.f32.mrf.mxu0
    %v1614 = vadd.f32 0.0, %v1613
    %1615 = vmatmul.f32.gmra.mxu0 %v630
    %v1616 = vpop.f32.mrf.mxu0
    %v1617 = vadd.f32 0.0, %v1616
    %1618 = vmatmul.f32.gmra.mxu0 %v632
    %v1619 = vpop.f32.mrf.mxu0
    %v1620 = vadd.f32 0.0, %v1619
    %1621 = vmatmul.f32.gmra.mxu0 %v634
    %v1622 = vpop.f32.mrf.mxu0
    %v1623 = vadd.f32 0.0, %v1622
    %1624 = vmatmul.f32.gmra.mxu0 %v636
    %v1625 = vpop.f32.mrf.mxu0
    %v1626 = vadd.f32 0.0, %v1625
    %1627 = vmatmul.f32.gmra.mxu0 %v638
    %v1628 = vpop.f32.mrf.mxu0
    %v1629 = vadd.f32 0.0, %v1628
    %1630 = vmatmul.f32.gmra.mxu0 %v640
    %v1631 = vpop.f32.mrf.mxu0
    %v1632 = vadd.f32 0.0, %v1631
    %1633 = vmatmul.f32.gmra.mxu0 %v642
    %v1634 = vpop.f32.mrf.mxu0
    %v1635 = vadd.f32 0.0, %v1634
    %1636 = vmatmul.f32.gmra.mxu0 %v644
    %v1637 = vpop.f32.mrf.mxu0
    %v1638 = vadd.f32 0.0, %v1637
    %1639 = vmatmul.f32.gmra.mxu0 %v646
    %v1640 = vpop.f32.mrf.mxu0
    %v1641 = vadd.f32 0.0, %v1640
    %1642 = vmatmul.f32.gmra.mxu0 %v648
    %v1643 = vpop.f32.mrf.mxu0
    %v1644 = vadd.f32 0.0, %v1643
    %1645 = vmatmul.f32.gmra.mxu0 %v650
    %v1646 = vpop.f32.mrf.mxu0
    %v1647 = vadd.f32 0.0, %v1646
    %1648 = vmatmul.f32.gmra.mxu0 %v652
    %v1649 = vpop.f32.mrf.mxu0
    %v1650 = vadd.f32 0.0, %v1649
    %1651 = vmatmul.f32.gmra.mxu0 %v654
    %v1652 = vpop.f32.mrf.mxu0
    %v1653 = vadd.f32 0.0, %v1652
    %1654 = vmatmul.f32.gmra.mxu0 %v656
    %v1655 = vpop.f32.mrf.mxu0
    %v1656 = vadd.f32 0.0, %v1655
    %1657 = vmatmul.f32.gmra.mxu0 %v658
    %v1658 = vpop.f32.mrf.mxu0
    %v1659 = vadd.f32 0.0, %v1658
    %1660 = vmatmul.f32.gmra.mxu0 %v660
    %v1661 = vpop.f32.mrf.mxu0
    %v1662 = vadd.f32 0.0, %v1661
    %1663 = vmatmul.f32.gmra.mxu0 %v662
    %v1664 = vpop.f32.mrf.mxu0
    %v1665 = vadd.f32 0.0, %v1664
    %1666 = vmatmul.f32.gmra.mxu0 %v664
    %v1667 = vpop.f32.mrf.mxu0
    %v1668 = vadd.f32 0.0, %v1667
    %1669 = vmatmul.f32.gmra.mxu0 %v666
    %v1670 = vpop.f32.mrf.mxu0
    %v1671 = vadd.f32 0.0, %v1670
    %1672 = vmatmul.f32.gmra.mxu0 %v668
    %v1673 = vpop.f32.mrf.mxu0
    %v1674 = vadd.f32 0.0, %v1673
    %1675 = vmatmul.f32.gmra.mxu0 %v670
    %v1676 = vpop.f32.mrf.mxu0
    %v1677 = vadd.f32 0.0, %v1676
    %1678 = vmatmul.f32.gmra.mxu0 %v672
    %v1679 = vpop.f32.mrf.mxu0
    %v1680 = vadd.f32 0.0, %v1679
    %1681 = vmatmul.f32.gmra.mxu0 %v674
    %v1682 = vpop.f32.mrf.mxu0
    %v1683 = vadd.f32 0.0, %v1682
    %1684 = vmatmul.f32.gmra.mxu0 %v676
    %v1685 = vpop.f32.mrf.mxu0
    %v1686 = vadd.f32 0.0, %v1685
    %1687 = vmatmul.f32.gmra.mxu0 %v678
    %v1688 = vpop.f32.mrf.mxu0
    %v1689 = vadd.f32 0.0, %v1688
    %1690 = vmatmul.f32.gmra.mxu0 %v680
    %v1691 = vpop.f32.mrf.mxu0
    %v1692 = vadd.f32 0.0, %v1691
    %1693 = vmatmul.f32.gmra.mxu0 %v682
    %v1694 = vpop.f32.mrf.mxu0
    %v1695 = vadd.f32 0.0, %v1694
    %1696 = vmatmul.f32.gmra.mxu0 %v684
    %v1697 = vpop.f32.mrf.mxu0
    %v1698 = vadd.f32 0.0, %v1697
    %1699 = vmatmul.f32.gmra.mxu0 %v686
    %v1700 = vpop.f32.mrf.mxu0
    %v1701 = vadd.f32 0.0, %v1700
    %1702 = vmatmul.f32.gmra.mxu0 %v688
    %v1703 = vpop.f32.mrf.mxu0
    %v1704 = vadd.f32 0.0, %v1703
    %1705 = vmatmul.f32.gmra.mxu0 %v690
    %v1706 = vpop.f32.mrf.mxu0
    %v1707 = vadd.f32 0.0, %v1706
    %1708 = vmatmul.f32.gmra.mxu0 %v692
    %v1709 = vpop.f32.mrf.mxu0
    %v1710 = vadd.f32 0.0, %v1709
    %1711 = vmatmul.f32.gmra.mxu0 %v694
    %v1712 = vpop.f32.mrf.mxu0
    %v1713 = vadd.f32 0.0, %v1712
    %1714 = vmatmul.f32.gmra.mxu0 %v696
    %v1715 = vpop.f32.mrf.mxu0
    %v1716 = vadd.f32 0.0, %v1715
    %1717 = vmatmul.f32.gmra.mxu0 %v698
    %v1718 = vpop.f32.mrf.mxu0
    %v1719 = vadd.f32 0.0, %v1718
    %1720 = vmatmul.f32.gmra.mxu0 %v700
    %v1721 = vpop.f32.mrf.mxu0
    %v1722 = vadd.f32 0.0, %v1721
    %1723 = vmatmul.f32.gmra.mxu0 %v702
    %v1724 = vpop.f32.mrf.mxu0
    %v1725 = vadd.f32 0.0, %v1724
    %1726 = vmatmul.f32.gmra.mxu0 %v704
    %v1727 = vpop.f32.mrf.mxu0
    %v1728 = vadd.f32 0.0, %v1727
    %1729 = vmatmul.f32.gmra.mxu0 %v706
    %v1730 = vpop.f32.mrf.mxu0
    %v1731 = vadd.f32 0.0, %v1730
    %1732 = vmatmul.f32.gmra.mxu0 %v708
    %v1733 = vpop.f32.mrf.mxu0
    %v1734 = vadd.f32 0.0, %v1733
    %1735 = vmatmul.f32.gmra.mxu0 %v710
    %v1736 = vpop.f32.mrf.mxu0
    %v1737 = vadd.f32 0.0, %v1736
    %1738 = vmatmul.f32.gmra.mxu0 %v712
    %v1739 = vpop.f32.mrf.mxu0
    %v1740 = vadd.f32 0.0, %v1739
    %1741 = vmatmul.f32.gmra.mxu0 %v714
    %v1742 = vpop.f32.mrf.mxu0
    %v1743 = vadd.f32 0.0, %v1742
    %1744 = vmatmul.f32.gmra.mxu0 %v716
    %v1745 = vpop.f32.mrf.mxu0
    %v1746 = vadd.f32 0.0, %v1745
    %1747 = vmatmul.f32.gmra.mxu0 %v718
    %v1748 = vpop.f32.mrf.mxu0
    %v1749 = vadd.f32 0.0, %v1748
    %1750 = vmatmul.f32.gmra.mxu0 %v720
    %v1751 = vpop.f32.mrf.mxu0
    %v1752 = vadd.f32 0.0, %v1751
    %1753 = vmatmul.f32.gmra.mxu0 %v722
    %v1754 = vpop.f32.mrf.mxu0
    %v1755 = vadd.f32 0.0, %v1754
    %1756 = vmatmul.f32.gmra.mxu0 %v724
    %v1757 = vpop.f32.mrf.mxu0
    %v1758 = vadd.f32 0.0, %v1757
    %1759 = vmatmul.f32.gmra.mxu0 %v726
    %v1760 = vpop.f32.mrf.mxu0
    %v1761 = vadd.f32 0.0, %v1760
    %1762 = vmatmul.f32.gmra.mxu0 %v728
    %v1763 = vpop.f32.mrf.mxu0
    %v1764 = vadd.f32 0.0, %v1763
    %1765 = vmatmul.f32.gmra.mxu0 %v730
    %v1766 = vpop.f32.mrf.mxu0
    %v1767 = vadd.f32 0.0, %v1766
    %1768 = vmatmul.f32.gmra.mxu0 %v732
    %v1769 = vpop.f32.mrf.mxu0
    %v1770 = vadd.f32 0.0, %v1769
    %1771 = vmatmul.f32.gmra.mxu0 %v734
    %v1772 = vpop.f32.mrf.mxu0
    %v1773 = vadd.f32 0.0, %v1772
    %1774 = vmatmul.f32.gmra.mxu0 %v736
    %v1775 = vpop.f32.mrf.mxu0
    %v1776 = vadd.f32 0.0, %v1775
    %1777 = vmatmul.f32.gmra.mxu0 %v738
    %v1778 = vpop.f32.mrf.mxu0
    %v1779 = vadd.f32 0.0, %v1778
    %1780 = vmatmul.f32.gmra.mxu0 %v740
    %v1781 = vpop.f32.mrf.mxu0
    %v1782 = vadd.f32 0.0, %v1781
    %1783 = vmatmul.f32.gmra.mxu0 %v742
    %v1784 = vpop.f32.mrf.mxu0
    %v1785 = vadd.f32 0.0, %v1784
    %1786 = vmatmul.f32.gmra.mxu0 %v744
    %v1787 = vpop.f32.mrf.mxu0
    %v1788 = vadd.f32 0.0, %v1787
    %1789 = vmatmul.f32.gmra.mxu0 %v746
    %v1790 = vpop.f32.mrf.mxu0
    %v1791 = vadd.f32 0.0, %v1790
    %1792 = vmatmul.f32.gmra.mxu0 %v748
    %v1793 = vpop.f32.mrf.mxu0
    %v1794 = vadd.f32 0.0, %v1793
    %1795 = vmatmul.f32.gmra.mxu0 %v750
    %v1796 = vpop.f32.mrf.mxu0
    %v1797 = vadd.f32 0.0, %v1796
    %1798 = vmatmul.f32.gmra.mxu0 %v752
    %v1799 = vpop.f32.mrf.mxu0
    %v1800 = vadd.f32 0.0, %v1799
    %1801 = vmatmul.f32.gmra.mxu0 %v754
    %v1802 = vpop.f32.mrf.mxu0
    %v1803 = vadd.f32 0.0, %v1802
    %1804 = vmatmul.f32.gmra.mxu0 %v756
    %v1805 = vpop.f32.mrf.mxu0
    %v1806 = vadd.f32 0.0, %v1805
    %1807 = vmatmul.f32.gmra.mxu0 %v758
    %v1808 = vpop.f32.mrf.mxu0
    %v1809 = vadd.f32 0.0, %v1808
    %1810 = vmatmul.f32.gmra.mxu0 %v760
    %v1811 = vpop.f32.mrf.mxu0
    %v1812 = vadd.f32 0.0, %v1811
    %1813 = vmatmul.f32.gmra.mxu0 %v762
    %v1814 = vpop.f32.mrf.mxu0
    %v1815 = vadd.f32 0.0, %v1814
    %1816 = vmatmul.f32.gmra.mxu0 %v764
    %v1817 = vpop.f32.mrf.mxu0
    %v1818 = vadd.f32 0.0, %v1817
    %1819 = vmatmul.f32.gmra.mxu0 %v766
    %v1820 = vpop.f32.mrf.mxu0
    %v1821 = vadd.f32 0.0, %v1820
    %1822 = vmatmul.f32.gmra.mxu0 %v768
    %v1823 = vpop.f32.mrf.mxu0
    %v1824 = vadd.f32 0.0, %v1823
    %1825 = vmatmul.f32.gmra.mxu0 %v770
    %v1826 = vpop.f32.mrf.mxu0
    %v1827 = vadd.f32 0.0, %v1826
    %1828 = vmatmul.f32.gmra.mxu0 %v772
    %v1829 = vpop.f32.mrf.mxu0
    %v1830 = vadd.f32 0.0, %v1829
    %1831 = vmatmul.f32.gmra.mxu0 %v774
    %v1832 = vpop.f32.mrf.mxu0
    %v1833 = vadd.f32 0.0, %v1832
    %1834 = vmatmul.f32.gmra.mxu0 %v776
    %v1835 = vpop.f32.mrf.mxu0
    %v1836 = vadd.f32 0.0, %v1835
    %1837 = vmatmul.f32.gmra.mxu0 %v778
    %v1838 = vpop.f32.mrf.mxu0
    %v1839 = vadd.f32 0.0, %v1838
    %1840 = vmatmul.f32.gmra.mxu0 %v780
    %v1841 = vpop.f32.mrf.mxu0
    %v1842 = vadd.f32 0.0, %v1841
    %1843 = vmatmul.f32.gmra.mxu0 %v782
    %v1844 = vpop.f32.mrf.mxu0
    %v1845 = vadd.f32 0.0, %v1844
    %1846 = vmatmul.f32.gmra.mxu0 %v784
    %v1847 = vpop.f32.mrf.mxu0
    %v1848 = vadd.f32 0.0, %v1847
    %1849 = vmatmul.f32.gmra.mxu0 %v786
    %v1850 = vpop.f32.mrf.mxu0
    %v1851 = vadd.f32 0.0, %v1850
    %1852 = vmatmul.f32.gmra.mxu0 %v788
    %v1853 = vpop.f32.mrf.mxu0
    %v1854 = vadd.f32 0.0, %v1853
    %1855 = vmatmul.f32.gmra.mxu0 %v790
    %v1856 = vpop.f32.mrf.mxu0
    %v1857 = vadd.f32 0.0, %v1856
    %1858 = vmatmul.f32.gmra.mxu0 %v792
    %v1859 = vpop.f32.mrf.mxu0
    %v1860 = vadd.f32 0.0, %v1859
    %1861 = vmatmul.f32.gmra.mxu0 %v794
    %v1862 = vpop.f32.mrf.mxu0
    %v1863 = vadd.f32 0.0, %v1862
    %1864 = vmatmul.f32.gmra.mxu0 %v796
    %v1865 = vpop.f32.mrf.mxu0
    %v1866 = vadd.f32 0.0, %v1865
    %1867 = vmatmul.f32.gmra.mxu0 %v798
    %v1868 = vpop.f32.mrf.mxu0
    %v1869 = vadd.f32 0.0, %v1868
    %1870 = vmatmul.f32.gmra.mxu0 %v800
    %v1871 = vpop.f32.mrf.mxu0
    %v1872 = vadd.f32 0.0, %v1871
    %1873 = vmatmul.f32.gmra.mxu0 %v802
    %v1874 = vpop.f32.mrf.mxu0
    %v1875 = vadd.f32 0.0, %v1874
    %1876 = vdwg.mxu0
    %1877 = vmatpush.msra.mxu0 %v835
    %1878 = vmatpush.msra.mxu0 %v834
    %1879 = vmatpush.msra.mxu0 %v833
    %1880 = vmatpush.msra.mxu0 %v832
    %1881 = vmatpush.msra.mxu0 %v831
    %1882 = vmatpush.msra.mxu0 %v830
    %1883 = vmatpush.msra.mxu0 %v829
    %1884 = vmatpush.msra.mxu0 %v828
    %1885 = vmatpush.msra.mxu0 %v827
    %1886 = vmatpush.msra.mxu0 %v826
    %1887 = vmatpush.msra.mxu0 %v825
    %1888 = vmatpush.msra.mxu0 %v824
    %1889 = vmatpush.msra.mxu0 %v823
    %1890 = vmatpush.msra.mxu0 %v822
    %1891 = vmatpush.msra.mxu0 %v821
    %1892 = vmatpush.msra.mxu0 %v820
    %1893 = vmatmul.f32.gmra.mxu0 %v293
    %v1894 = vpop.f32.mrf.mxu0
    %v1895 = vadd.f32 %v1110, %v1894
    %1896 = vmatmul.f32.gmra.mxu0 %v295
    %v1897 = vpop.f32.mrf.mxu0
    %v1898 = vadd.f32 %v1113, %v1897
    %1899 = vmatmul.f32.gmra.mxu0 %v297
    %v1900 = vpop.f32.mrf.mxu0
    %v1901 = vadd.f32 %v1116, %v1900
    %1902 = vmatmul.f32.gmra.mxu0 %v299
    %v1903 = vpop.f32.mrf.mxu0
    %v1904 = vadd.f32 %v1119, %v1903
    %1905 = vmatmul.f32.gmra.mxu0 %v301
    %v1906 = vpop.f32.mrf.mxu0
    %v1907 = vadd.f32 %v1122, %v1906
    %1908 = vmatmul.f32.gmra.mxu0 %v303
    %v1909 = vpop.f32.mrf.mxu0
    %v1910 = vadd.f32 %v1125, %v1909
    %1911 = vmatmul.f32.gmra.mxu0 %v305
    %v1912 = vpop.f32.mrf.mxu0
    %v1913 = vadd.f32 %v1128, %v1912
    %1914 = vmatmul.f32.gmra.mxu0 %v307
    %v1915 = vpop.f32.mrf.mxu0
    %v1916 = vadd.f32 %v1131, %v1915
    %1917 = vmatmul.f32.gmra.mxu0 %v309
    %v1918 = vpop.f32.mrf.mxu0
    %v1919 = vadd.f32 %v1134, %v1918
    %1920 = vmatmul.f32.gmra.mxu0 %v311
    %v1921 = vpop.f32.mrf.mxu0
    %v1922 = vadd.f32 %v1137, %v1921
    %1923 = vmatmul.f32.gmra.mxu0 %v313
    %v1924 = vpop.f32.mrf.mxu0
    %v1925 = vadd.f32 %v1140, %v1924
    %1926 = vmatmul.f32.gmra.mxu0 %v315
    %v1927 = vpop.f32.mrf.mxu0
    %v1928 = vadd.f32 %v1143, %v1927
    %1929 = vmatmul.f32.gmra.mxu0 %v317
    %v1930 = vpop.f32.mrf.mxu0
    %v1931 = vadd.f32 %v1146, %v1930
    %1932 = vmatmul.f32.gmra.mxu0 %v319
    %v1933 = vpop.f32.mrf.mxu0
    %v1934 = vadd.f32 %v1149, %v1933
    %1935 = vmatmul.f32.gmra.mxu0 %v321
    %v1936 = vpop.f32.mrf.mxu0
    %v1937 = vadd.f32 %v1152, %v1936
    %1938 = vmatmul.f32.gmra.mxu0 %v323
    %v1939 = vpop.f32.mrf.mxu0
    %v1940 = vadd.f32 %v1155, %v1939
    %1941 = vmatmul.f32.gmra.mxu0 %v325
    %v1942 = vpop.f32.mrf.mxu0
    %v1943 = vadd.f32 %v1158, %v1942
    %1944 = vmatmul.f32.gmra.mxu0 %v327
    %v1945 = vpop.f32.mrf.mxu0
    %v1946 = vadd.f32 %v1161, %v1945
    %1947 = vmatmul.f32.gmra.mxu0 %v329
    %v1948 = vpop.f32.mrf.mxu0
    %v1949 = vadd.f32 %v1164, %v1948
    %1950 = vmatmul.f32.gmra.mxu0 %v331
    %v1951 = vpop.f32.mrf.mxu0
    %v1952 = vadd.f32 %v1167, %v1951
    %1953 = vmatmul.f32.gmra.mxu0 %v333
    %v1954 = vpop.f32.mrf.mxu0
    %v1955 = vadd.f32 %v1170, %v1954
    %1956 = vmatmul.f32.gmra.mxu0 %v335
    %v1957 = vpop.f32.mrf.mxu0
    %v1958 = vadd.f32 %v1173, %v1957
    %1959 = vmatmul.f32.gmra.mxu0 %v337
    %v1960 = vpop.f32.mrf.mxu0
    %v1961 = vadd.f32 %v1176, %v1960
    %1962 = vmatmul.f32.gmra.mxu0 %v339
    %v1963 = vpop.f32.mrf.mxu0
    %v1964 = vadd.f32 %v1179, %v1963
    %1965 = vmatmul.f32.gmra.mxu0 %v341
    %v1966 = vpop.f32.mrf.mxu0
    %v1967 = vadd.f32 %v1182, %v1966
    %1968 = vmatmul.f32.gmra.mxu0 %v343
    %v1969 = vpop.f32.mrf.mxu0
    %v1970 = vadd.f32 %v1185, %v1969
    %1971 = vmatmul.f32.gmra.mxu0 %v345
    %v1972 = vpop.f32.mrf.mxu0
    %v1973 = vadd.f32 %v1188, %v1972
    %1974 = vmatmul.f32.gmra.mxu0 %v347
    %v1975 = vpop.f32.mrf.mxu0
    %v1976 = vadd.f32 %v1191, %v1975
    %1977 = vmatmul.f32.gmra.mxu0 %v349
    %v1978 = vpop.f32.mrf.mxu0
    %v1979 = vadd.f32 %v1194, %v1978
    %1980 = vmatmul.f32.gmra.mxu0 %v351
    %v1981 = vpop.f32.mrf.mxu0
    %v1982 = vadd.f32 %v1197, %v1981
    %1983 = vmatmul.f32.gmra.mxu0 %v353
    %v1984 = vpop.f32.mrf.mxu0
    %v1985 = vadd.f32 %v1200, %v1984
    %1986 = vmatmul.f32.gmra.mxu0 %v355
    %v1987 = vpop.f32.mrf.mxu0
    %v1988 = vadd.f32 %v1203, %v1987
    %1989 = vmatmul.f32.gmra.mxu0 %v357
    %v1990 = vpop.f32.mrf.mxu0
    %v1991 = vadd.f32 %v1206, %v1990
    %1992 = vmatmul.f32.gmra.mxu0 %v359
    %v1993 = vpop.f32.mrf.mxu0
    %v1994 = vadd.f32 %v1209, %v1993
    %1995 = vmatmul.f32.gmra.mxu0 %v361
    %v1996 = vpop.f32.mrf.mxu0
    %v1997 = vadd.f32 %v1212, %v1996
    %1998 = vmatmul.f32.gmra.mxu0 %v363
    %v1999 = vpop.f32.mrf.mxu0
    %v2000 = vadd.f32 %v1215, %v1999
    %2001 = vmatmul.f32.gmra.mxu0 %v365
    %v2002 = vpop.f32.mrf.mxu0
    %v2003 = vadd.f32 %v1218, %v2002
    %2004 = vmatmul.f32.gmra.mxu0 %v367
    %v2005 = vpop.f32.mrf.mxu0
    %v2006 = vadd.f32 %v1221, %v2005
    %2007 = vmatmul.f32.gmra.mxu0 %v369
    %v2008 = vpop.f32.mrf.mxu0
    %v2009 = vadd.f32 %v1224, %v2008
    %2010 = vmatmul.f32.gmra.mxu0 %v371
    %v2011 = vpop.f32.mrf.mxu0
    %v2012 = vadd.f32 %v1227, %v2011
    %2013 = vmatmul.f32.gmra.mxu0 %v373
    %v2014 = vpop.f32.mrf.mxu0
    %v2015 = vadd.f32 %v1230, %v2014
    %2016 = vmatmul.f32.gmra.mxu0 %v375
    %v2017 = vpop.f32.mrf.mxu0
    %v2018 = vadd.f32 %v1233, %v2017
    %2019 = vmatmul.f32.gmra.mxu0 %v377
    %v2020 = vpop.f32.mrf.mxu0
    %v2021 = vadd.f32 %v1236, %v2020
    %2022 = vmatmul.f32.gmra.mxu0 %v379
    %v2023 = vpop.f32.mrf.mxu0
    %v2024 = vadd.f32 %v1239, %v2023
    %2025 = vmatmul.f32.gmra.mxu0 %v381
    %v2026 = vpop.f32.mrf.mxu0
    %v2027 = vadd.f32 %v1242, %v2026
    %2028 = vmatmul.f32.gmra.mxu0 %v383
    %v2029 = vpop.f32.mrf.mxu0
    %v2030 = vadd.f32 %v1245, %v2029
    %2031 = vmatmul.f32.gmra.mxu0 %v385
    %v2032 = vpop.f32.mrf.mxu0
    %v2033 = vadd.f32 %v1248, %v2032
    %2034 = vmatmul.f32.gmra.mxu0 %v387
    %v2035 = vpop.f32.mrf.mxu0
    %v2036 = vadd.f32 %v1251, %v2035
    %2037 = vmatmul.f32.gmra.mxu0 %v389
    %v2038 = vpop.f32.mrf.mxu0
    %v2039 = vadd.f32 %v1254, %v2038
    %2040 = vmatmul.f32.gmra.mxu0 %v391
    %v2041 = vpop.f32.mrf.mxu0
    %v2042 = vadd.f32 %v1257, %v2041
    %2043 = vmatmul.f32.gmra.mxu0 %v393
    %v2044 = vpop.f32.mrf.mxu0
    %v2045 = vadd.f32 %v1260, %v2044
    %2046 = vmatmul.f32.gmra.mxu0 %v395
    %v2047 = vpop.f32.mrf.mxu0
    %v2048 = vadd.f32 %v1263, %v2047
    %2049 = vmatmul.f32.gmra.mxu0 %v397
    %v2050 = vpop.f32.mrf.mxu0
    %v2051 = vadd.f32 %v1266, %v2050
    %2052 = vmatmul.f32.gmra.mxu0 %v399
    %v2053 = vpop.f32.mrf.mxu0
    %v2054 = vadd.f32 %v1269, %v2053
    %2055 = vmatmul.f32.gmra.mxu0 %v401
    %v2056 = vpop.f32.mrf.mxu0
    %v2057 = vadd.f32 %v1272, %v2056
    %2058 = vmatmul.f32.gmra.mxu0 %v403
    %v2059 = vpop.f32.mrf.mxu0
    %v2060 = vadd.f32 %v1275, %v2059
    %2061 = vmatmul.f32.gmra.mxu0 %v405
    %v2062 = vpop.f32.mrf.mxu0
    %v2063 = vadd.f32 %v1278, %v2062
    %2064 = vmatmul.f32.gmra.mxu0 %v407
    %v2065 = vpop.f32.mrf.mxu0
    %v2066 = vadd.f32 %v1281, %v2065
    %2067 = vmatmul.f32.gmra.mxu0 %v409
    %v2068 = vpop.f32.mrf.mxu0
    %v2069 = vadd.f32 %v1284, %v2068
    %2070 = vmatmul.f32.gmra.mxu0 %v411
    %v2071 = vpop.f32.mrf.mxu0
    %v2072 = vadd.f32 %v1287, %v2071
    %2073 = vmatmul.f32.gmra.mxu0 %v413
    %v2074 = vpop.f32.mrf.mxu0
    %v2075 = vadd.f32 %v1290, %v2074
    %2076 = vmatmul.f32.gmra.mxu0 %v415
    %v2077 = vpop.f32.mrf.mxu0
    %v2078 = vadd.f32 %v1293, %v2077
    %2079 = vmatmul.f32.gmra.mxu0 %v417
    %v2080 = vpop.f32.mrf.mxu0
    %v2081 = vadd.f32 %v1296, %v2080
    %2082 = vmatmul.f32.gmra.mxu0 %v419
    %v2083 = vpop.f32.mrf.mxu0
    %v2084 = vadd.f32 %v1299, %v2083
    %2085 = vmatmul.f32.gmra.mxu0 %v421
    %v2086 = vpop.f32.mrf.mxu0
    %v2087 = vadd.f32 %v1302, %v2086
    %2088 = vmatmul.f32.gmra.mxu0 %v423
    %v2089 = vpop.f32.mrf.mxu0
    %v2090 = vadd.f32 %v1305, %v2089
    %2091 = vmatmul.f32.gmra.mxu0 %v425
    %v2092 = vpop.f32.mrf.mxu0
    %v2093 = vadd.f32 %v1308, %v2092
    %2094 = vmatmul.f32.gmra.mxu0 %v427
    %v2095 = vpop.f32.mrf.mxu0
    %v2096 = vadd.f32 %v1311, %v2095
    %2097 = vmatmul.f32.gmra.mxu0 %v429
    %v2098 = vpop.f32.mrf.mxu0
    %v2099 = vadd.f32 %v1314, %v2098
    %2100 = vmatmul.f32.gmra.mxu0 %v431
    %v2101 = vpop.f32.mrf.mxu0
    %v2102 = vadd.f32 %v1317, %v2101
    %2103 = vmatmul.f32.gmra.mxu0 %v433
    %v2104 = vpop.f32.mrf.mxu0
    %v2105 = vadd.f32 %v1320, %v2104
    %2106 = vmatmul.f32.gmra.mxu0 %v435
    %v2107 = vpop.f32.mrf.mxu0
    %v2108 = vadd.f32 %v1323, %v2107
    %2109 = vmatmul.f32.gmra.mxu0 %v437
    %v2110 = vpop.f32.mrf.mxu0
    %v2111 = vadd.f32 %v1326, %v2110
    %2112 = vmatmul.f32.gmra.mxu0 %v439
    %v2113 = vpop.f32.mrf.mxu0
    %v2114 = vadd.f32 %v1329, %v2113
    %2115 = vmatmul.f32.gmra.mxu0 %v441
    %v2116 = vpop.f32.mrf.mxu0
    %v2117 = vadd.f32 %v1332, %v2116
    %2118 = vmatmul.f32.gmra.mxu0 %v443
    %v2119 = vpop.f32.mrf.mxu0
    %v2120 = vadd.f32 %v1335, %v2119
    %2121 = vmatmul.f32.gmra.mxu0 %v445
    %v2122 = vpop.f32.mrf.mxu0
    %v2123 = vadd.f32 %v1338, %v2122
    %2124 = vmatmul.f32.gmra.mxu0 %v447
    %v2125 = vpop.f32.mrf.mxu0
    %v2126 = vadd.f32 %v1341, %v2125
    %2127 = vmatmul.f32.gmra.mxu0 %v449
    %v2128 = vpop.f32.mrf.mxu0
    %v2129 = vadd.f32 %v1344, %v2128
    %2130 = vmatmul.f32.gmra.mxu0 %v451
    %v2131 = vpop.f32.mrf.mxu0
    %v2132 = vadd.f32 %v1347, %v2131
    %2133 = vmatmul.f32.gmra.mxu0 %v453
    %v2134 = vpop.f32.mrf.mxu0
    %v2135 = vadd.f32 %v1350, %v2134
    %2136 = vmatmul.f32.gmra.mxu0 %v455
    %v2137 = vpop.f32.mrf.mxu0
    %v2138 = vadd.f32 %v1353, %v2137
    %2139 = vmatmul.f32.gmra.mxu0 %v457
    %v2140 = vpop.f32.mrf.mxu0
    %v2141 = vadd.f32 %v1356, %v2140
    %2142 = vmatmul.f32.gmra.mxu0 %v459
    %v2143 = vpop.f32.mrf.mxu0
    %v2144 = vadd.f32 %v1359, %v2143
    %2145 = vmatmul.f32.gmra.mxu0 %v461
    %v2146 = vpop.f32.mrf.mxu0
    %v2147 = vadd.f32 %v1362, %v2146
    %2148 = vmatmul.f32.gmra.mxu0 %v463
    %v2149 = vpop.f32.mrf.mxu0
    %v2150 = vadd.f32 %v1365, %v2149
    %2151 = vmatmul.f32.gmra.mxu0 %v465
    %v2152 = vpop.f32.mrf.mxu0
    %v2153 = vadd.f32 %v1368, %v2152
    %2154 = vmatmul.f32.gmra.mxu0 %v467
    %v2155 = vpop.f32.mrf.mxu0
    %v2156 = vadd.f32 %v1371, %v2155
    %2157 = vmatmul.f32.gmra.mxu0 %v469
    %v2158 = vpop.f32.mrf.mxu0
    %v2159 = vadd.f32 %v1374, %v2158
    %2160 = vmatmul.f32.gmra.mxu0 %v471
    %v2161 = vpop.f32.mrf.mxu0
    %v2162 = vadd.f32 %v1377, %v2161
    %2163 = vmatmul.f32.gmra.mxu0 %v473
    %v2164 = vpop.f32.mrf.mxu0
    %v2165 = vadd.f32 %v1380, %v2164
    %2166 = vmatmul.f32.gmra.mxu0 %v475
    %v2167 = vpop.f32.mrf.mxu0
    %v2168 = vadd.f32 %v1383, %v2167
    %2169 = vmatmul.f32.gmra.mxu0 %v477
    %v2170 = vpop.f32.mrf.mxu0
    %v2171 = vadd.f32 %v1386, %v2170
    %2172 = vmatmul.f32.gmra.mxu0 %v479
    %v2173 = vpop.f32.mrf.mxu0
    %v2174 = vadd.f32 %v1389, %v2173
    %2175 = vmatmul.f32.gmra.mxu0 %v481
    %v2176 = vpop.f32.mrf.mxu0
    %v2177 = vadd.f32 %v1392, %v2176
    %2178 = vmatmul.f32.gmra.mxu0 %v483
    %v2179 = vpop.f32.mrf.mxu0
    %v2180 = vadd.f32 %v1395, %v2179
    %2181 = vmatmul.f32.gmra.mxu0 %v485
    %v2182 = vpop.f32.mrf.mxu0
    %v2183 = vadd.f32 %v1398, %v2182
    %2184 = vmatmul.f32.gmra.mxu0 %v487
    %v2185 = vpop.f32.mrf.mxu0
    %v2186 = vadd.f32 %v1401, %v2185
    %2187 = vmatmul.f32.gmra.mxu0 %v489
    %v2188 = vpop.f32.mrf.mxu0
    %v2189 = vadd.f32 %v1404, %v2188
    %2190 = vmatmul.f32.gmra.mxu0 %v491
    %v2191 = vpop.f32.mrf.mxu0
    %v2192 = vadd.f32 %v1407, %v2191
    %2193 = vmatmul.f32.gmra.mxu0 %v493
    %v2194 = vpop.f32.mrf.mxu0
    %v2195 = vadd.f32 %v1410, %v2194
    %2196 = vmatmul.f32.gmra.mxu0 %v495
    %v2197 = vpop.f32.mrf.mxu0
    %v2198 = vadd.f32 %v1413, %v2197
    %2199 = vmatmul.f32.gmra.mxu0 %v497
    %v2200 = vpop.f32.mrf.mxu0
    %v2201 = vadd.f32 %v1416, %v2200
    %2202 = vmatmul.f32.gmra.mxu0 %v499
    %v2203 = vpop.f32.mrf.mxu0
    %v2204 = vadd.f32 %v1419, %v2203
    %2205 = vmatmul.f32.gmra.mxu0 %v501
    %v2206 = vpop.f32.mrf.mxu0
    %v2207 = vadd.f32 %v1422, %v2206
    %2208 = vmatmul.f32.gmra.mxu0 %v503
    %v2209 = vpop.f32.mrf.mxu0
    %v2210 = vadd.f32 %v1425, %v2209
    %2211 = vmatmul.f32.gmra.mxu0 %v505
    %v2212 = vpop.f32.mrf.mxu0
    %v2213 = vadd.f32 %v1428, %v2212
    %2214 = vmatmul.f32.gmra.mxu0 %v507
    %v2215 = vpop.f32.mrf.mxu0
    %v2216 = vadd.f32 %v1431, %v2215
    %2217 = vmatmul.f32.gmra.mxu0 %v509
    %v2218 = vpop.f32.mrf.mxu0
    %v2219 = vadd.f32 %v1434, %v2218
    %2220 = vmatmul.f32.gmra.mxu0 %v511
    %v2221 = vpop.f32.mrf.mxu0
    %v2222 = vadd.f32 %v1437, %v2221
    %2223 = vmatmul.f32.gmra.mxu0 %v513
    %v2224 = vpop.f32.mrf.mxu0
    %v2225 = vadd.f32 %v1440, %v2224
    %2226 = vmatmul.f32.gmra.mxu0 %v515
    %v2227 = vpop.f32.mrf.mxu0
    %v2228 = vadd.f32 %v1443, %v2227
    %2229 = vmatmul.f32.gmra.mxu0 %v517
    %v2230 = vpop.f32.mrf.mxu0
    %v2231 = vadd.f32 %v1446, %v2230
    %2232 = vmatmul.f32.gmra.mxu0 %v519
    %v2233 = vpop.f32.mrf.mxu0
    %v2234 = vadd.f32 %v1449, %v2233
    %2235 = vmatmul.f32.gmra.mxu0 %v521
    %v2236 = vpop.f32.mrf.mxu0
    %v2237 = vadd.f32 %v1452, %v2236
    %2238 = vmatmul.f32.gmra.mxu0 %v523
    %v2239 = vpop.f32.mrf.mxu0
    %v2240 = vadd.f32 %v1455, %v2239
    %2241 = vmatmul.f32.gmra.mxu0 %v525
    %v2242 = vpop.f32.mrf.mxu0
    %v2243 = vadd.f32 %v1458, %v2242
    %2244 = vmatmul.f32.gmra.mxu0 %v527
    %v2245 = vpop.f32.mrf.mxu0
    %v2246 = vadd.f32 %v1461, %v2245
    %2247 = vmatmul.f32.gmra.mxu0 %v529
    %v2248 = vpop.f32.mrf.mxu0
    %v2249 = vadd.f32 %v1464, %v2248
    %2250 = vmatmul.f32.gmra.mxu0 %v531
    %v2251 = vpop.f32.mrf.mxu0
    %v2252 = vadd.f32 %v1467, %v2251
    %2253 = vmatmul.f32.gmra.mxu0 %v533
    %v2254 = vpop.f32.mrf.mxu0
    %v2255 = vadd.f32 %v1470, %v2254
    %2256 = vmatmul.f32.gmra.mxu0 %v535
    %v2257 = vpop.f32.mrf.mxu0
    %v2258 = vadd.f32 %v1473, %v2257
    %2259 = vmatmul.f32.gmra.mxu0 %v537
    %v2260 = vpop.f32.mrf.mxu0
    %v2261 = vadd.f32 %v1476, %v2260
    %2262 = vmatmul.f32.gmra.mxu0 %v539
    %v2263 = vpop.f32.mrf.mxu0
    %v2264 = vadd.f32 %v1479, %v2263
    %2265 = vmatmul.f32.gmra.mxu0 %v541
    %v2266 = vpop.f32.mrf.mxu0
    %v2267 = vadd.f32 %v1482, %v2266
    %2268 = vmatmul.f32.gmra.mxu0 %v543
    %v2269 = vpop.f32.mrf.mxu0
    %v2270 = vadd.f32 %v1485, %v2269
    %2271 = vmatmul.f32.gmra.mxu0 %v545
    %v2272 = vpop.f32.mrf.mxu0
    %v2273 = vadd.f32 %v1488, %v2272
    %2274 = vmatmul.f32.gmra.mxu0 %v547
    %v2275 = vpop.f32.mrf.mxu0
    %v2276 = vadd.f32 %v1491, %v2275
    %2277 = vmatmul.f32.gmra.mxu0 %v549
    %v2278 = vpop.f32.mrf.mxu0
    %v2279 = vadd.f32 %v1494, %v2278
    %2280 = vmatmul.f32.gmra.mxu0 %v551
    %v2281 = vpop.f32.mrf.mxu0
    %v2282 = vadd.f32 %v1497, %v2281
    %2283 = vmatmul.f32.gmra.mxu0 %v553
    %v2284 = vpop.f32.mrf.mxu0
    %v2285 = vadd.f32 %v1500, %v2284
    %2286 = vmatmul.f32.gmra.mxu0 %v555
    %v2287 = vpop.f32.mrf.mxu0
    %v2288 = vadd.f32 %v1503, %v2287
    %2289 = vmatmul.f32.gmra.mxu0 %v557
    %v2290 = vpop.f32.mrf.mxu0
    %v2291 = vadd.f32 %v1506, %v2290
    %2292 = vmatmul.f32.gmra.mxu0 %v559
    %v2293 = vpop.f32.mrf.mxu0
    %v2294 = vadd.f32 %v1509, %v2293
    %2295 = vmatmul.f32.gmra.mxu0 %v561
    %v2296 = vpop.f32.mrf.mxu0
    %v2297 = vadd.f32 %v1512, %v2296
    %2298 = vmatmul.f32.gmra.mxu0 %v563
    %v2299 = vpop.f32.mrf.mxu0
    %v2300 = vadd.f32 %v1515, %v2299
    %2301 = vmatmul.f32.gmra.mxu0 %v565
    %v2302 = vpop.f32.mrf.mxu0
    %v2303 = vadd.f32 %v1518, %v2302
    %2304 = vmatmul.f32.gmra.mxu0 %v567
    %v2305 = vpop.f32.mrf.mxu0
    %v2306 = vadd.f32 %v1521, %v2305
    %2307 = vmatmul.f32.gmra.mxu0 %v569
    %v2308 = vpop.f32.mrf.mxu0
    %v2309 = vadd.f32 %v1524, %v2308
    %2310 = vmatmul.f32.gmra.mxu0 %v571
    %v2311 = vpop.f32.mrf.mxu0
    %v2312 = vadd.f32 %v1527, %v2311
    %2313 = vmatmul.f32.gmra.mxu0 %v573
    %v2314 = vpop.f32.mrf.mxu0
    %v2315 = vadd.f32 %v1530, %v2314
    %2316 = vmatmul.f32.gmra.mxu0 %v575
    %v2317 = vpop.f32.mrf.mxu0
    %v2318 = vadd.f32 %v1533, %v2317
    %2319 = vmatmul.f32.gmra.mxu0 %v577
    %v2320 = vpop.f32.mrf.mxu0
    %v2321 = vadd.f32 %v1536, %v2320
    %2322 = vmatmul.f32.gmra.mxu0 %v579
    %v2323 = vpop.f32.mrf.mxu0
    %v2324 = vadd.f32 %v1539, %v2323
    %2325 = vmatmul.f32.gmra.mxu0 %v581
    %v2326 = vpop.f32.mrf.mxu0
    %v2327 = vadd.f32 %v1542, %v2326
    %2328 = vmatmul.f32.gmra.mxu0 %v583
    %v2329 = vpop.f32.mrf.mxu0
    %v2330 = vadd.f32 %v1545, %v2329
    %2331 = vmatmul.f32.gmra.mxu0 %v585
    %v2332 = vpop.f32.mrf.mxu0
    %v2333 = vadd.f32 %v1548, %v2332
    %2334 = vmatmul.f32.gmra.mxu0 %v587
    %v2335 = vpop.f32.mrf.mxu0
    %v2336 = vadd.f32 %v1551, %v2335
    %2337 = vmatmul.f32.gmra.mxu0 %v589
    %v2338 = vpop.f32.mrf.mxu0
    %v2339 = vadd.f32 %v1554, %v2338
    %2340 = vmatmul.f32.gmra.mxu0 %v591
    %v2341 = vpop.f32.mrf.mxu0
    %v2342 = vadd.f32 %v1557, %v2341
    %2343 = vmatmul.f32.gmra.mxu0 %v593
    %v2344 = vpop.f32.mrf.mxu0
    %v2345 = vadd.f32 %v1560, %v2344
    %2346 = vmatmul.f32.gmra.mxu0 %v595
    %v2347 = vpop.f32.mrf.mxu0
    %v2348 = vadd.f32 %v1563, %v2347
    %2349 = vmatmul.f32.gmra.mxu0 %v597
    %v2350 = vpop.f32.mrf.mxu0
    %v2351 = vadd.f32 %v1566, %v2350
    %2352 = vmatmul.f32.gmra.mxu0 %v599
    %v2353 = vpop.f32.mrf.mxu0
    %v2354 = vadd.f32 %v1569, %v2353
    %2355 = vmatmul.f32.gmra.mxu0 %v601
    %v2356 = vpop.f32.mrf.mxu0
    %v2357 = vadd.f32 %v1572, %v2356
    %2358 = vmatmul.f32.gmra.mxu0 %v603
    %v2359 = vpop.f32.mrf.mxu0
    %v2360 = vadd.f32 %v1575, %v2359
    %2361 = vmatmul.f32.gmra.mxu0 %v605
    %v2362 = vpop.f32.mrf.mxu0
    %v2363 = vadd.f32 %v1578, %v2362
    %2364 = vmatmul.f32.gmra.mxu0 %v607
    %v2365 = vpop.f32.mrf.mxu0
    %v2366 = vadd.f32 %v1581, %v2365
    %2367 = vmatmul.f32.gmra.mxu0 %v609
    %v2368 = vpop.f32.mrf.mxu0
    %v2369 = vadd.f32 %v1584, %v2368
    %2370 = vmatmul.f32.gmra.mxu0 %v611
    %v2371 = vpop.f32.mrf.mxu0
    %v2372 = vadd.f32 %v1587, %v2371
    %2373 = vmatmul.f32.gmra.mxu0 %v613
    %v2374 = vpop.f32.mrf.mxu0
    %v2375 = vadd.f32 %v1590, %v2374
    %2376 = vmatmul.f32.gmra.mxu0 %v615
    %v2377 = vpop.f32.mrf.mxu0
    %v2378 = vadd.f32 %v1593, %v2377
    %2379 = vmatmul.f32.gmra.mxu0 %v617
    %v2380 = vpop.f32.mrf.mxu0
    %v2381 = vadd.f32 %v1596, %v2380
    %2382 = vmatmul.f32.gmra.mxu0 %v619
    %v2383 = vpop.f32.mrf.mxu0
    %v2384 = vadd.f32 %v1599, %v2383
    %2385 = vmatmul.f32.gmra.mxu0 %v621
    %v2386 = vpop.f32.mrf.mxu0
    %v2387 = vadd.f32 %v1602, %v2386
    %2388 = vmatmul.f32.gmra.mxu0 %v623
    %v2389 = vpop.f32.mrf.mxu0
    %v2390 = vadd.f32 %v1605, %v2389
    %2391 = vmatmul.f32.gmra.mxu0 %v625
    %v2392 = vpop.f32.mrf.mxu0
    %v2393 = vadd.f32 %v1608, %v2392
    %2394 = vmatmul.f32.gmra.mxu0 %v627
    %v2395 = vpop.f32.mrf.mxu0
    %v2396 = vadd.f32 %v1611, %v2395
    %2397 = vmatmul.f32.gmra.mxu0 %v629
    %v2398 = vpop.f32.mrf.mxu0
    %v2399 = vadd.f32 %v1614, %v2398
    %2400 = vmatmul.f32.gmra.mxu0 %v631
    %v2401 = vpop.f32.mrf.mxu0
    %v2402 = vadd.f32 %v1617, %v2401
    %2403 = vmatmul.f32.gmra.mxu0 %v633
    %v2404 = vpop.f32.mrf.mxu0
    %v2405 = vadd.f32 %v1620, %v2404
    %2406 = vmatmul.f32.gmra.mxu0 %v635
    %v2407 = vpop.f32.mrf.mxu0
    %v2408 = vadd.f32 %v1623, %v2407
    %2409 = vmatmul.f32.gmra.mxu0 %v637
    %v2410 = vpop.f32.mrf.mxu0
    %v2411 = vadd.f32 %v1626, %v2410
    %2412 = vmatmul.f32.gmra.mxu0 %v639
    %v2413 = vpop.f32.mrf.mxu0
    %v2414 = vadd.f32 %v1629, %v2413
    %2415 = vmatmul.f32.gmra.mxu0 %v641
    %v2416 = vpop.f32.mrf.mxu0
    %v2417 = vadd.f32 %v1632, %v2416
    %2418 = vmatmul.f32.gmra.mxu0 %v643
    %v2419 = vpop.f32.mrf.mxu0
    %v2420 = vadd.f32 %v1635, %v2419
    %2421 = vmatmul.f32.gmra.mxu0 %v645
    %v2422 = vpop.f32.mrf.mxu0
    %v2423 = vadd.f32 %v1638, %v2422
    %2424 = vmatmul.f32.gmra.mxu0 %v647
    %v2425 = vpop.f32.mrf.mxu0
    %v2426 = vadd.f32 %v1641, %v2425
    %2427 = vmatmul.f32.gmra.mxu0 %v649
    %v2428 = vpop.f32.mrf.mxu0
    %v2429 = vadd.f32 %v1644, %v2428
    %2430 = vmatmul.f32.gmra.mxu0 %v651
    %v2431 = vpop.f32.mrf.mxu0
    %v2432 = vadd.f32 %v1647, %v2431
    %2433 = vmatmul.f32.gmra.mxu0 %v653
    %v2434 = vpop.f32.mrf.mxu0
    %v2435 = vadd.f32 %v1650, %v2434
    %2436 = vmatmul.f32.gmra.mxu0 %v655
    %v2437 = vpop.f32.mrf.mxu0
    %v2438 = vadd.f32 %v1653, %v2437
    %2439 = vmatmul.f32.gmra.mxu0 %v657
    %v2440 = vpop.f32.mrf.mxu0
    %v2441 = vadd.f32 %v1656, %v2440
    %2442 = vmatmul.f32.gmra.mxu0 %v659
    %v2443 = vpop.f32.mrf.mxu0
    %v2444 = vadd.f32 %v1659, %v2443
    %2445 = vmatmul.f32.gmra.mxu0 %v661
    %v2446 = vpop.f32.mrf.mxu0
    %v2447 = vadd.f32 %v1662, %v2446
    %2448 = vmatmul.f32.gmra.mxu0 %v663
    %v2449 = vpop.f32.mrf.mxu0
    %v2450 = vadd.f32 %v1665, %v2449
    %2451 = vmatmul.f32.gmra.mxu0 %v665
    %v2452 = vpop.f32.mrf.mxu0
    %v2453 = vadd.f32 %v1668, %v2452
    %2454 = vmatmul.f32.gmra.mxu0 %v667
    %v2455 = vpop.f32.mrf.mxu0
    %v2456 = vadd.f32 %v1671, %v2455
    %2457 = vmatmul.f32.gmra.mxu0 %v669
    %v2458 = vpop.f32.mrf.mxu0
    %v2459 = vadd.f32 %v1674, %v2458
    %2460 = vmatmul.f32.gmra.mxu0 %v671
    %v2461 = vpop.f32.mrf.mxu0
    %v2462 = vadd.f32 %v1677, %v2461
    %2463 = vmatmul.f32.gmra.mxu0 %v673
    %v2464 = vpop.f32.mrf.mxu0
    %v2465 = vadd.f32 %v1680, %v2464
    %2466 = vmatmul.f32.gmra.mxu0 %v675
    %v2467 = vpop.f32.mrf.mxu0
    %v2468 = vadd.f32 %v1683, %v2467
    %2469 = vmatmul.f32.gmra.mxu0 %v677
    %v2470 = vpop.f32.mrf.mxu0
    %v2471 = vadd.f32 %v1686, %v2470
    %2472 = vmatmul.f32.gmra.mxu0 %v679
    %v2473 = vpop.f32.mrf.mxu0
    %v2474 = vadd.f32 %v1689, %v2473
    %2475 = vmatmul.f32.gmra.mxu0 %v681
    %v2476 = vpop.f32.mrf.mxu0
    %v2477 = vadd.f32 %v1692, %v2476
    %2478 = vmatmul.f32.gmra.mxu0 %v683
    %v2479 = vpop.f32.mrf.mxu0
    %v2480 = vadd.f32 %v1695, %v2479
    %2481 = vmatmul.f32.gmra.mxu0 %v685
    %v2482 = vpop.f32.mrf.mxu0
    %v2483 = vadd.f32 %v1698, %v2482
    %2484 = vmatmul.f32.gmra.mxu0 %v687
    %v2485 = vpop.f32.mrf.mxu0
    %v2486 = vadd.f32 %v1701, %v2485
    %2487 = vmatmul.f32.gmra.mxu0 %v689
    %v2488 = vpop.f32.mrf.mxu0
    %v2489 = vadd.f32 %v1704, %v2488
    %2490 = vmatmul.f32.gmra.mxu0 %v691
    %v2491 = vpop.f32.mrf.mxu0
    %v2492 = vadd.f32 %v1707, %v2491
    %2493 = vmatmul.f32.gmra.mxu0 %v693
    %v2494 = vpop.f32.mrf.mxu0
    %v2495 = vadd.f32 %v1710, %v2494
    %2496 = vmatmul.f32.gmra.mxu0 %v695
    %v2497 = vpop.f32.mrf.mxu0
    %v2498 = vadd.f32 %v1713, %v2497
    %2499 = vmatmul.f32.gmra.mxu0 %v697
    %v2500 = vpop.f32.mrf.mxu0
    %v2501 = vadd.f32 %v1716, %v2500
    %2502 = vmatmul.f32.gmra.mxu0 %v699
    %v2503 = vpop.f32.mrf.mxu0
    %v2504 = vadd.f32 %v1719, %v2503
    %2505 = vmatmul.f32.gmra.mxu0 %v701
    %v2506 = vpop.f32.mrf.mxu0
    %v2507 = vadd.f32 %v1722, %v2506
    %2508 = vmatmul.f32.gmra.mxu0 %v703
    %v2509 = vpop.f32.mrf.mxu0
    %v2510 = vadd.f32 %v1725, %v2509
    %2511 = vmatmul.f32.gmra.mxu0 %v705
    %v2512 = vpop.f32.mrf.mxu0
    %v2513 = vadd.f32 %v1728, %v2512
    %2514 = vmatmul.f32.gmra.mxu0 %v707
    %v2515 = vpop.f32.mrf.mxu0
    %v2516 = vadd.f32 %v1731, %v2515
    %2517 = vmatmul.f32.gmra.mxu0 %v709
    %v2518 = vpop.f32.mrf.mxu0
    %v2519 = vadd.f32 %v1734, %v2518
    %2520 = vmatmul.f32.gmra.mxu0 %v711
    %v2521 = vpop.f32.mrf.mxu0
    %v2522 = vadd.f32 %v1737, %v2521
    %2523 = vmatmul.f32.gmra.mxu0 %v713
    %v2524 = vpop.f32.mrf.mxu0
    %v2525 = vadd.f32 %v1740, %v2524
    %2526 = vmatmul.f32.gmra.mxu0 %v715
    %v2527 = vpop.f32.mrf.mxu0
    %v2528 = vadd.f32 %v1743, %v2527
    %2529 = vmatmul.f32.gmra.mxu0 %v717
    %v2530 = vpop.f32.mrf.mxu0
    %v2531 = vadd.f32 %v1746, %v2530
    %2532 = vmatmul.f32.gmra.mxu0 %v719
    %v2533 = vpop.f32.mrf.mxu0
    %v2534 = vadd.f32 %v1749, %v2533
    %2535 = vmatmul.f32.gmra.mxu0 %v721
    %v2536 = vpop.f32.mrf.mxu0
    %v2537 = vadd.f32 %v1752, %v2536
    %2538 = vmatmul.f32.gmra.mxu0 %v723
    %v2539 = vpop.f32.mrf.mxu0
    %v2540 = vadd.f32 %v1755, %v2539
    %2541 = vmatmul.f32.gmra.mxu0 %v725
    %v2542 = vpop.f32.mrf.mxu0
    %v2543 = vadd.f32 %v1758, %v2542
    %2544 = vmatmul.f32.gmra.mxu0 %v727
    %v2545 = vpop.f32.mrf.mxu0
    %v2546 = vadd.f32 %v1761, %v2545
    %2547 = vmatmul.f32.gmra.mxu0 %v729
    %v2548 = vpop.f32.mrf.mxu0
    %v2549 = vadd.f32 %v1764, %v2548
    %2550 = vmatmul.f32.gmra.mxu0 %v731
    %v2551 = vpop.f32.mrf.mxu0
    %v2552 = vadd.f32 %v1767, %v2551
    %2553 = vmatmul.f32.gmra.mxu0 %v733
    %v2554 = vpop.f32.mrf.mxu0
    %v2555 = vadd.f32 %v1770, %v2554
    %2556 = vmatmul.f32.gmra.mxu0 %v735
    %v2557 = vpop.f32.mrf.mxu0
    %v2558 = vadd.f32 %v1773, %v2557
    %2559 = vmatmul.f32.gmra.mxu0 %v737
    %v2560 = vpop.f32.mrf.mxu0
    %v2561 = vadd.f32 %v1776, %v2560
    %2562 = vmatmul.f32.gmra.mxu0 %v739
    %v2563 = vpop.f32.mrf.mxu0
    %v2564 = vadd.f32 %v1779, %v2563
    %2565 = vmatmul.f32.gmra.mxu0 %v741
    %v2566 = vpop.f32.mrf.mxu0
    %v2567 = vadd.f32 %v1782, %v2566
    %2568 = vmatmul.f32.gmra.mxu0 %v743
    %v2569 = vpop.f32.mrf.mxu0
    %v2570 = vadd.f32 %v1785, %v2569
    %2571 = vmatmul.f32.gmra.mxu0 %v745
    %v2572 = vpop.f32.mrf.mxu0
    %v2573 = vadd.f32 %v1788, %v2572
    %2574 = vmatmul.f32.gmra.mxu0 %v747
    %v2575 = vpop.f32.mrf.mxu0
    %v2576 = vadd.f32 %v1791, %v2575
    %2577 = vmatmul.f32.gmra.mxu0 %v749
    %v2578 = vpop.f32.mrf.mxu0
    %v2579 = vadd.f32 %v1794, %v2578
    %2580 = vmatmul.f32.gmra.mxu0 %v751
    %v2581 = vpop.f32.mrf.mxu0
    %v2582 = vadd.f32 %v1797, %v2581
    %2583 = vmatmul.f32.gmra.mxu0 %v753
    %v2584 = vpop.f32.mrf.mxu0
    %v2585 = vadd.f32 %v1800, %v2584
    %2586 = vmatmul.f32.gmra.mxu0 %v755
    %v2587 = vpop.f32.mrf.mxu0
    %v2588 = vadd.f32 %v1803, %v2587
    %2589 = vmatmul.f32.gmra.mxu0 %v757
    %v2590 = vpop.f32.mrf.mxu0
    %v2591 = vadd.f32 %v1806, %v2590
    %2592 = vmatmul.f32.gmra.mxu0 %v759
    %v2593 = vpop.f32.mrf.mxu0
    %v2594 = vadd.f32 %v1809, %v2593
    %2595 = vmatmul.f32.gmra.mxu0 %v761
    %v2596 = vpop.f32.mrf.mxu0
    %v2597 = vadd.f32 %v1812, %v2596
    %2598 = vmatmul.f32.gmra.mxu0 %v763
    %v2599 = vpop.f32.mrf.mxu0
    %v2600 = vadd.f32 %v1815, %v2599
    %2601 = vmatmul.f32.gmra.mxu0 %v765
    %v2602 = vpop.f32.mrf.mxu0
    %v2603 = vadd.f32 %v1818, %v2602
    %2604 = vmatmul.f32.gmra.mxu0 %v767
    %v2605 = vpop.f32.mrf.mxu0
    %v2606 = vadd.f32 %v1821, %v2605
    %2607 = vmatmul.f32.gmra.mxu0 %v769
    %v2608 = vpop.f32.mrf.mxu0
    %v2609 = vadd.f32 %v1824, %v2608
    %2610 = vmatmul.f32.gmra.mxu0 %v771
    %v2611 = vpop.f32.mrf.mxu0
    %v2612 = vadd.f32 %v1827, %v2611
    %2613 = vmatmul.f32.gmra.mxu0 %v773
    %v2614 = vpop.f32.mrf.mxu0
    %v2615 = vadd.f32 %v1830, %v2614
    %2616 = vmatmul.f32.gmra.mxu0 %v775
    %v2617 = vpop.f32.mrf.mxu0
    %v2618 = vadd.f32 %v1833, %v2617
    %2619 = vmatmul.f32.gmra.mxu0 %v777
    %v2620 = vpop.f32.mrf.mxu0
    %v2621 = vadd.f32 %v1836, %v2620
    %2622 = vmatmul.f32.gmra.mxu0 %v779
    %v2623 = vpop.f32.mrf.mxu0
    %v2624 = vadd.f32 %v1839, %v2623
    %2625 = vmatmul.f32.gmra.mxu0 %v781
    %v2626 = vpop.f32.mrf.mxu0
    %v2627 = vadd.f32 %v1842, %v2626
    %2628 = vmatmul.f32.gmra.mxu0 %v783
    %v2629 = vpop.f32.mrf.mxu0
    %v2630 = vadd.f32 %v1845, %v2629
    %2631 = vmatmul.f32.gmra.mxu0 %v785
    %v2632 = vpop.f32.mrf.mxu0
    %v2633 = vadd.f32 %v1848, %v2632
    %2634 = vmatmul.f32.gmra.mxu0 %v787
    %v2635 = vpop.f32.mrf.mxu0
    %v2636 = vadd.f32 %v1851, %v2635
    %2637 = vmatmul.f32.gmra.mxu0 %v789
    %v2638 = vpop.f32.mrf.mxu0
    %v2639 = vadd.f32 %v1854, %v2638
    %2640 = vmatmul.f32.gmra.mxu0 %v791
    %v2641 = vpop.f32.mrf.mxu0
    %v2642 = vadd.f32 %v1857, %v2641
    %2643 = vmatmul.f32.gmra.mxu0 %v793
    %v2644 = vpop.f32.mrf.mxu0
    %v2645 = vadd.f32 %v1860, %v2644
    %2646 = vmatmul.f32.gmra.mxu0 %v795
    %v2647 = vpop.f32.mrf.mxu0
    %v2648 = vadd.f32 %v1863, %v2647
    %2649 = vmatmul.f32.gmra.mxu0 %v797
    %v2650 = vpop.f32.mrf.mxu0
    %v2651 = vadd.f32 %v1866, %v2650
    %2652 = vmatmul.f32.gmra.mxu0 %v799
    %v2653 = vpop.f32.mrf.mxu0
    %v2654 = vadd.f32 %v1869, %v2653
    %2655 = vmatmul.f32.gmra.mxu0 %v801
    %v2656 = vpop.f32.mrf.mxu0
    %v2657 = vadd.f32 %v1872, %v2656
    %2658 = vmatmul.f32.gmra.mxu0 %v803
    %v2659 = vpop.f32.mrf.mxu0
    %v2660 = vadd.f32 %v1875, %v2659
    %2661 = vdwg.mxu0
    %v2662 = vadd.f32 %v836, %v1895
    %v2663 = vadd.f32 %v837, %v1898
    %v2664 = vadd.f32 %v838, %v1901
    %v2665 = vadd.f32 %v839, %v1904
    %v2666 = vadd.f32 %v840, %v1907
    %v2667 = vadd.f32 %v841, %v1910
    %v2668 = vadd.f32 %v842, %v1913
    %v2669 = vadd.f32 %v843, %v1916
    %v2670 = vadd.f32 %v844, %v1919
    %v2671 = vadd.f32 %v845, %v1922
    %v2672 = vadd.f32 %v846, %v1925
    %v2673 = vadd.f32 %v847, %v1928
    %v2674 = vadd.f32 %v848, %v1931
    %v2675 = vadd.f32 %v849, %v1934
    %v2676 = vadd.f32 %v850, %v1937
    %v2677 = vadd.f32 %v851, %v1940
    %v2678 = vadd.f32 %v852, %v1943
    %v2679 = vadd.f32 %v853, %v1946
    %v2680 = vadd.f32 %v854, %v1949
    %v2681 = vadd.f32 %v855, %v1952
    %v2682 = vadd.f32 %v856, %v1955
    %v2683 = vadd.f32 %v857, %v1958
    %v2684 = vadd.f32 %v858, %v1961
    %v2685 = vadd.f32 %v859, %v1964
    %v2686 = vadd.f32 %v860, %v1967
    %v2687 = vadd.f32 %v861, %v1970
    %v2688 = vadd.f32 %v862, %v1973
    %v2689 = vadd.f32 %v863, %v1976
    %v2690 = vadd.f32 %v864, %v1979
    %v2691 = vadd.f32 %v865, %v1982
    %v2692 = vadd.f32 %v866, %v1985
    %v2693 = vadd.f32 %v867, %v1988
    %v2694 = vadd.f32 %v868, %v1991
    %v2695 = vadd.f32 %v869, %v1994
    %v2696 = vadd.f32 %v870, %v1997
    %v2697 = vadd.f32 %v871, %v2000
    %v2698 = vadd.f32 %v872, %v2003
    %v2699 = vadd.f32 %v873, %v2006
    %v2700 = vadd.f32 %v874, %v2009
    %v2701 = vadd.f32 %v875, %v2012
    %v2702 = vadd.f32 %v876, %v2015
    %v2703 = vadd.f32 %v877, %v2018
    %v2704 = vadd.f32 %v878, %v2021
    %v2705 = vadd.f32 %v879, %v2024
    %v2706 = vadd.f32 %v880, %v2027
    %v2707 = vadd.f32 %v881, %v2030
    %v2708 = vadd.f32 %v882, %v2033
    %v2709 = vadd.f32 %v883, %v2036
    %v2710 = vadd.f32 %v884, %v2039
    %v2711 = vadd.f32 %v885, %v2042
    %v2712 = vadd.f32 %v886, %v2045
    %v2713 = vadd.f32 %v887, %v2048
    %v2714 = vadd.f32 %v888, %v2051
    %v2715 = vadd.f32 %v889, %v2054
    %v2716 = vadd.f32 %v890, %v2057
    %v2717 = vadd.f32 %v891, %v2060
    %v2718 = vadd.f32 %v892, %v2063
    %v2719 = vadd.f32 %v893, %v2066
    %v2720 = vadd.f32 %v894, %v2069
    %v2721 = vadd.f32 %v895, %v2072
    %v2722 = vadd.f32 %v896, %v2075
    %v2723 = vadd.f32 %v897, %v2078
    %v2724 = vadd.f32 %v898, %v2081
    %v2725 = vadd.f32 %v899, %v2084
    %v2726 = vadd.f32 %v900, %v2087
    %v2727 = vadd.f32 %v901, %v2090
    %v2728 = vadd.f32 %v902, %v2093
    %v2729 = vadd.f32 %v903, %v2096
    %v2730 = vadd.f32 %v904, %v2099
    %v2731 = vadd.f32 %v905, %v2102
    %v2732 = vadd.f32 %v906, %v2105
    %v2733 = vadd.f32 %v907, %v2108
    %v2734 = vadd.f32 %v908, %v2111
    %v2735 = vadd.f32 %v909, %v2114
    %v2736 = vadd.f32 %v910, %v2117
    %v2737 = vadd.f32 %v911, %v2120
    %v2738 = vadd.f32 %v912, %v2123
    %v2739 = vadd.f32 %v913, %v2126
    %v2740 = vadd.f32 %v914, %v2129
    %v2741 = vadd.f32 %v915, %v2132
    %v2742 = vadd.f32 %v916, %v2135
    %v2743 = vadd.f32 %v917, %v2138
    %v2744 = vadd.f32 %v918, %v2141
    %v2745 = vadd.f32 %v919, %v2144
    %v2746 = vadd.f32 %v920, %v2147
    %v2747 = vadd.f32 %v921, %v2150
    %v2748 = vadd.f32 %v922, %v2153
    %v2749 = vadd.f32 %v923, %v2156
    %v2750 = vadd.f32 %v924, %v2159
    %v2751 = vadd.f32 %v925, %v2162
    %v2752 = vadd.f32 %v926, %v2165
    %v2753 = vadd.f32 %v927, %v2168
    %v2754 = vadd.f32 %v928, %v2171
    %v2755 = vadd.f32 %v929, %v2174
    %v2756 = vadd.f32 %v930, %v2177
    %v2757 = vadd.f32 %v931, %v2180
    %v2758 = vadd.f32 %v932, %v2183
    %v2759 = vadd.f32 %v933, %v2186
    %v2760 = vadd.f32 %v934, %v2189
    %v2761 = vadd.f32 %v935, %v2192
    %v2762 = vadd.f32 %v936, %v2195
    %v2763 = vadd.f32 %v937, %v2198
    %v2764 = vadd.f32 %v938, %v2201
    %v2765 = vadd.f32 %v939, %v2204
    %v2766 = vadd.f32 %v940, %v2207
    %v2767 = vadd.f32 %v941, %v2210
    %v2768 = vadd.f32 %v942, %v2213
    %v2769 = vadd.f32 %v943, %v2216
    %v2770 = vadd.f32 %v944, %v2219
    %v2771 = vadd.f32 %v945, %v2222
    %v2772 = vadd.f32 %v946, %v2225
    %v2773 = vadd.f32 %v947, %v2228
    %v2774 = vadd.f32 %v948, %v2231
    %v2775 = vadd.f32 %v949, %v2234
    %v2776 = vadd.f32 %v950, %v2237
    %v2777 = vadd.f32 %v951, %v2240
    %v2778 = vadd.f32 %v952, %v2243
    %v2779 = vadd.f32 %v953, %v2246
    %v2780 = vadd.f32 %v954, %v2249
    %v2781 = vadd.f32 %v955, %v2252
    %v2782 = vadd.f32 %v956, %v2255
    %v2783 = vadd.f32 %v957, %v2258
    %v2784 = vadd.f32 %v958, %v2261
    %v2785 = vadd.f32 %v959, %v2264
    %v2786 = vadd.f32 %v960, %v2267
    %v2787 = vadd.f32 %v961, %v2270
    %v2788 = vadd.f32 %v962, %v2273
    %v2789 = vadd.f32 %v963, %v2276
    %v2790 = vadd.f32 %v964, %v2279
    %v2791 = vadd.f32 %v965, %v2282
    %v2792 = vadd.f32 %v966, %v2285
    %v2793 = vadd.f32 %v967, %v2288
    %v2794 = vadd.f32 %v968, %v2291
    %v2795 = vadd.f32 %v969, %v2294
    %v2796 = vadd.f32 %v970, %v2297
    %v2797 = vadd.f32 %v971, %v2300
    %v2798 = vadd.f32 %v972, %v2303
    %v2799 = vadd.f32 %v973, %v2306
    %v2800 = vadd.f32 %v974, %v2309
    %v2801 = vadd.f32 %v975, %v2312
    %v2802 = vadd.f32 %v976, %v2315
    %v2803 = vadd.f32 %v977, %v2318
    %v2804 = vadd.f32 %v978, %v2321
    %v2805 = vadd.f32 %v979, %v2324
    %v2806 = vadd.f32 %v980, %v2327
    %v2807 = vadd.f32 %v981, %v2330
    %v2808 = vadd.f32 %v982, %v2333
    %v2809 = vadd.f32 %v983, %v2336
    %v2810 = vadd.f32 %v984, %v2339
    %v2811 = vadd.f32 %v985, %v2342
    %v2812 = vadd.f32 %v986, %v2345
    %v2813 = vadd.f32 %v987, %v2348
    %v2814 = vadd.f32 %v988, %v2351
    %v2815 = vadd.f32 %v989, %v2354
    %v2816 = vadd.f32 %v990, %v2357
    %v2817 = vadd.f32 %v991, %v2360
    %v2818 = vadd.f32 %v992, %v2363
    %v2819 = vadd.f32 %v993, %v2366
    %v2820 = vadd.f32 %v994, %v2369
    %v2821 = vadd.f32 %v995, %v2372
    %v2822 = vadd.f32 %v996, %v2375
    %v2823 = vadd.f32 %v997, %v2378
    %v2824 = vadd.f32 %v998, %v2381
    %v2825 = vadd.f32 %v999, %v2384
    %v2826 = vadd.f32 %v1000, %v2387
    %v2827 = vadd.f32 %v1001, %v2390
    %v2828 = vadd.f32 %v1002, %v2393
    %v2829 = vadd.f32 %v1003, %v2396
    %v2830 = vadd.f32 %v1004, %v2399
    %v2831 = vadd.f32 %v1005, %v2402
    %v2832 = vadd.f32 %v1006, %v2405
    %v2833 = vadd.f32 %v1007, %v2408
    %v2834 = vadd.f32 %v1008, %v2411
    %v2835 = vadd.f32 %v1009, %v2414
    %v2836 = vadd.f32 %v1010, %v2417
    %v2837 = vadd.f32 %v1011, %v2420
    %v2838 = vadd.f32 %v1012, %v2423
    %v2839 = vadd.f32 %v1013, %v2426
    %v2840 = vadd.f32 %v1014, %v2429
    %v2841 = vadd.f32 %v1015, %v2432
    %v2842 = vadd.f32 %v1016, %v2435
    %v2843 = vadd.f32 %v1017, %v2438
    %v2844 = vadd.f32 %v1018, %v2441
    %v2845 = vadd.f32 %v1019, %v2444
    %v2846 = vadd.f32 %v1020, %v2447
    %v2847 = vadd.f32 %v1021, %v2450
    %v2848 = vadd.f32 %v1022, %v2453
    %v2849 = vadd.f32 %v1023, %v2456
    %v2850 = vadd.f32 %v1024, %v2459
    %v2851 = vadd.f32 %v1025, %v2462
    %v2852 = vadd.f32 %v1026, %v2465
    %v2853 = vadd.f32 %v1027, %v2468
    %v2854 = vadd.f32 %v1028, %v2471
    %v2855 = vadd.f32 %v1029, %v2474
    %v2856 = vadd.f32 %v1030, %v2477
    %v2857 = vadd.f32 %v1031, %v2480
    %v2858 = vadd.f32 %v1032, %v2483
    %v2859 = vadd.f32 %v1033, %v2486
    %v2860 = vadd.f32 %v1034, %v2489
    %v2861 = vadd.f32 %v1035, %v2492
    %v2862 = vadd.f32 %v1036, %v2495
    %v2863 = vadd.f32 %v1037, %v2498
    %v2864 = vadd.f32 %v1038, %v2501
    %v2865 = vadd.f32 %v1039, %v2504
    %v2866 = vadd.f32 %v1040, %v2507
    %v2867 = vadd.f32 %v1041, %v2510
    %v2868 = vadd.f32 %v1042, %v2513
    %v2869 = vadd.f32 %v1043, %v2516
    %v2870 = vadd.f32 %v1044, %v2519
    %v2871 = vadd.f32 %v1045, %v2522
    %v2872 = vadd.f32 %v1046, %v2525
    %v2873 = vadd.f32 %v1047, %v2528
    %v2874 = vadd.f32 %v1048, %v2531
    %v2875 = vadd.f32 %v1049, %v2534
    %v2876 = vadd.f32 %v1050, %v2537
    %v2877 = vadd.f32 %v1051, %v2540
    %v2878 = vadd.f32 %v1052, %v2543
    %v2879 = vadd.f32 %v1053, %v2546
    %v2880 = vadd.f32 %v1054, %v2549
    %v2881 = vadd.f32 %v1055, %v2552
    %v2882 = vadd.f32 %v1056, %v2555
    %v2883 = vadd.f32 %v1057, %v2558
    %v2884 = vadd.f32 %v1058, %v2561
    %v2885 = vadd.f32 %v1059, %v2564
    %v2886 = vadd.f32 %v1060, %v2567
    %v2887 = vadd.f32 %v1061, %v2570
    %v2888 = vadd.f32 %v1062, %v2573
    %v2889 = vadd.f32 %v1063, %v2576
    %v2890 = vadd.f32 %v1064, %v2579
    %v2891 = vadd.f32 %v1065, %v2582
    %v2892 = vadd.f32 %v1066, %v2585
    %v2893 = vadd.f32 %v1067, %v2588
    %v2894 = vadd.f32 %v1068, %v2591
    %v2895 = vadd.f32 %v1069, %v2594
    %v2896 = vadd.f32 %v1070, %v2597
    %v2897 = vadd.f32 %v1071, %v2600
    %v2898 = vadd.f32 %v1072, %v2603
    %v2899 = vadd.f32 %v1073, %v2606
    %v2900 = vadd.f32 %v1074, %v2609
    %v2901 = vadd.f32 %v1075, %v2612
    %v2902 = vadd.f32 %v1076, %v2615
    %v2903 = vadd.f32 %v1077, %v2618
    %v2904 = vadd.f32 %v1078, %v2621
    %v2905 = vadd.f32 %v1079, %v2624
    %v2906 = vadd.f32 %v1080, %v2627
    %v2907 = vadd.f32 %v1081, %v2630
    %v2908 = vadd.f32 %v1082, %v2633
    %v2909 = vadd.f32 %v1083, %v2636
    %v2910 = vadd.f32 %v1084, %v2639
    %v2911 = vadd.f32 %v1085, %v2642
    %v2912 = vadd.f32 %v1086, %v2645
    %v2913 = vadd.f32 %v1087, %v2648
    %v2914 = vadd.f32 %v1088, %v2651
    %v2915 = vadd.f32 %v1089, %v2654
    %v2916 = vadd.f32 %v1090, %v2657
    %v2917 = vadd.f32 %v1091, %v2660
    %vm2918 = vcmask 7168
    %2919 = vst.msk [vmem:[#allocation2] sm:$0xff] %vm2918, %v2662
    %2920 = vst.msk [vmem:[#allocation2 + $0x8] sm:$0xff] %vm2918, %v2663
    %2921 = vst.msk [vmem:[#allocation2 + $0x10] sm:$0xff] %vm2918, %v2664
    %2922 = vst.msk [vmem:[#allocation2 + $0x18] sm:$0xff] %vm2918, %v2665
    %2923 = vst.msk [vmem:[#allocation2 + $0x20] sm:$0xff] %vm2918, %v2666
    %2924 = vst.msk [vmem:[#allocation2 + $0x28] sm:$0xff] %vm2918, %v2667
    %2925 = vst.msk [vmem:[#allocation2 + $0x30] sm:$0xff] %vm2918, %v2668
    %2926 = vst.msk [vmem:[#allocation2 + $0x38] sm:$0xff] %vm2918, %v2669
    %2927 = vst.msk [vmem:[#allocation2 + $0x40] sm:$0xff] %vm2918, %v2670
    %2928 = vst.msk [vmem:[#allocation2 + $0x48] sm:$0xff] %vm2918, %v2671
    %2929 = vst.msk [vmem:[#allocation2 + $0x50] sm:$0xff] %vm2918, %v2672
    %2930 = vst.msk [vmem:[#allocation2 + $0x58] sm:$0xff] %vm2918, %v2673
    %2931 = vst.msk [vmem:[#allocation2 + $0x60] sm:$0xff] %vm2918, %v2674
    %2932 = vst.msk [vmem:[#allocation2 + $0x68] sm:$0xff] %vm2918, %v2675
    %2933 = vst.msk [vmem:[#allocation2 + $0x70] sm:$0xff] %vm2918, %v2676
    %2934 = vst.msk [vmem:[#allocation2 + $0x78] sm:$0xff] %vm2918, %v2677
    %2935 = vst.msk [vmem:[#allocation2 + $0x80] sm:$0xff] %vm2918, %v2678
    %2936 = vst.msk [vmem:[#allocation2 + $0x88] sm:$0xff] %vm2918, %v2679
    %2937 = vst.msk [vmem:[#allocation2 + $0x90] sm:$0xff] %vm2918, %v2680
    %2938 = vst.msk [vmem:[#allocation2 + $0x98] sm:$0xff] %vm2918, %v2681
    %2939 = vst.msk [vmem:[#allocation2 + $0xa0] sm:$0xff] %vm2918, %v2682
    %2940 = vst.msk [vmem:[#allocation2 + $0xa8] sm:$0xff] %vm2918, %v2683
    %2941 = vst.msk [vmem:[#allocation2 + $0xb0] sm:$0xff] %vm2918, %v2684
    %2942 = vst.msk [vmem:[#allocation2 + $0xb8] sm:$0xff] %vm2918, %v2685
    %2943 = vst.msk [vmem:[#allocation2 + $0xc0] sm:$0xff] %vm2918, %v2686
    %2944 = vst.msk [vmem:[#allocation2 + $0xc8] sm:$0xff] %vm2918, %v2687
    %2945 = vst.msk [vmem:[#allocation2 + $0xd0] sm:$0xff] %vm2918, %v2688
    %2946 = vst.msk [vmem:[#allocation2 + $0xd8] sm:$0xff] %vm2918, %v2689
    %2947 = vst.msk [vmem:[#allocation2 + $0xe0] sm:$0xff] %vm2918, %v2690
    %2948 = vst.msk [vmem:[#allocation2 + $0xe8] sm:$0xff] %vm2918, %v2691
    %2949 = vst.msk [vmem:[#allocation2 + $0xf0] sm:$0xff] %vm2918, %v2692
    %2950 = vst.msk [vmem:[#allocation2 + $0xf8] sm:$0xff] %vm2918, %v2693
    %2951 = vst.msk [vmem:[#allocation2 + $0x100] sm:$0xff] %vm2918, %v2694
    %2952 = vst.msk [vmem:[#allocation2 + $0x108] sm:$0xff] %vm2918, %v2695
    %2953 = vst.msk [vmem:[#allocation2 + $0x110] sm:$0xff] %vm2918, %v2696
    %2954 = vst.msk [vmem:[#allocation2 + $0x118] sm:$0xff] %vm2918, %v2697
    %2955 = vst.msk [vmem:[#allocation2 + $0x120] sm:$0xff] %vm2918, %v2698
    %2956 = vst.msk [vmem:[#allocation2 + $0x128] sm:$0xff] %vm2918, %v2699
    %2957 = vst.msk [vmem:[#allocation2 + $0x130] sm:$0xff] %vm2918, %v2700
    %2958 = vst.msk [vmem:[#allocation2 + $0x138] sm:$0xff] %vm2918, %v2701
    %2959 = vst.msk [vmem:[#allocation2 + $0x140] sm:$0xff] %vm2918, %v2702
    %2960 = vst.msk [vmem:[#allocation2 + $0x148] sm:$0xff] %vm2918, %v2703
    %2961 = vst.msk [vmem:[#allocation2 + $0x150] sm:$0xff] %vm2918, %v2704
    %2962 = vst.msk [vmem:[#allocation2 + $0x158] sm:$0xff] %vm2918, %v2705
    %2963 = vst.msk [vmem:[#allocation2 + $0x160] sm:$0xff] %vm2918, %v2706
    %2964 = vst.msk [vmem:[#allocation2 + $0x168] sm:$0xff] %vm2918, %v2707
    %2965 = vst.msk [vmem:[#allocation2 + $0x170] sm:$0xff] %vm2918, %v2708
    %2966 = vst.msk [vmem:[#allocation2 + $0x178] sm:$0xff] %vm2918, %v2709
    %2967 = vst.msk [vmem:[#allocation2 + $0x180] sm:$0xff] %vm2918, %v2710
    %2968 = vst.msk [vmem:[#allocation2 + $0x188] sm:$0xff] %vm2918, %v2711
    %2969 = vst.msk [vmem:[#allocation2 + $0x190] sm:$0xff] %vm2918, %v2712
    %2970 = vst.msk [vmem:[#allocation2 + $0x198] sm:$0xff] %vm2918, %v2713
    %2971 = vst.msk [vmem:[#allocation2 + $0x1a0] sm:$0xff] %vm2918, %v2714
    %2972 = vst.msk [vmem:[#allocation2 + $0x1a8] sm:$0xff] %vm2918, %v2715
    %2973 = vst.msk [vmem:[#allocation2 + $0x1b0] sm:$0xff] %vm2918, %v2716
    %2974 = vst.msk [vmem:[#allocation2 + $0x1b8] sm:$0xff] %vm2918, %v2717
    %2975 = vst.msk [vmem:[#allocation2 + $0x1c0] sm:$0xff] %vm2918, %v2718
    %2976 = vst.msk [vmem:[#allocation2 + $0x1c8] sm:$0xff] %vm2918, %v2719
    %2977 = vst.msk [vmem:[#allocation2 + $0x1d0] sm:$0xff] %vm2918, %v2720
    %2978 = vst.msk [vmem:[#allocation2 + $0x1d8] sm:$0xff] %vm2918, %v2721
    %2979 = vst.msk [vmem:[#allocation2 + $0x1e0] sm:$0xff] %vm2918, %v2722
    %2980 = vst.msk [vmem:[#allocation2 + $0x1e8] sm:$0xff] %vm2918, %v2723
    %2981 = vst.msk [vmem:[#allocation2 + $0x1f0] sm:$0xff] %vm2918, %v2724
    %2982 = vst.msk [vmem:[#allocation2 + $0x1f8] sm:$0xff] %vm2918, %v2725
    %2983 = vst.msk [vmem:[#allocation2 + $0x200] sm:$0xff] %vm2918, %v2726
    %2984 = vst.msk [vmem:[#allocation2 + $0x208] sm:$0xff] %vm2918, %v2727
    %2985 = vst.msk [vmem:[#allocation2 + $0x210] sm:$0xff] %vm2918, %v2728
    %2986 = vst.msk [vmem:[#allocation2 + $0x218] sm:$0xff] %vm2918, %v2729
    %2987 = vst.msk [vmem:[#allocation2 + $0x220] sm:$0xff] %vm2918, %v2730
    %2988 = vst.msk [vmem:[#allocation2 + $0x228] sm:$0xff] %vm2918, %v2731
    %2989 = vst.msk [vmem:[#allocation2 + $0x230] sm:$0xff] %vm2918, %v2732
    %2990 = vst.msk [vmem:[#allocation2 + $0x238] sm:$0xff] %vm2918, %v2733
    %2991 = vst.msk [vmem:[#allocation2 + $0x240] sm:$0xff] %vm2918, %v2734
    %2992 = vst.msk [vmem:[#allocation2 + $0x248] sm:$0xff] %vm2918, %v2735
    %2993 = vst.msk [vmem:[#allocation2 + $0x250] sm:$0xff] %vm2918, %v2736
    %2994 = vst.msk [vmem:[#allocation2 + $0x258] sm:$0xff] %vm2918, %v2737
    %2995 = vst.msk [vmem:[#allocation2 + $0x260] sm:$0xff] %vm2918, %v2738
    %2996 = vst.msk [vmem:[#allocation2 + $0x268] sm:$0xff] %vm2918, %v2739
    %2997 = vst.msk [vmem:[#allocation2 + $0x270] sm:$0xff] %vm2918, %v2740
    %2998 = vst.msk [vmem:[#allocation2 + $0x278] sm:$0xff] %vm2918, %v2741
    %2999 = vst.msk [vmem:[#allocation2 + $0x280] sm:$0xff] %vm2918, %v2742
    %3000 = vst.msk [vmem:[#allocation2 + $0x288] sm:$0xff] %vm2918, %v2743
    %3001 = vst.msk [vmem:[#allocation2 + $0x290] sm:$0xff] %vm2918, %v2744
    %3002 = vst.msk [vmem:[#allocation2 + $0x298] sm:$0xff] %vm2918, %v2745
    %3003 = vst.msk [vmem:[#allocation2 + $0x2a0] sm:$0xff] %vm2918, %v2746
    %3004 = vst.msk [vmem:[#allocation2 + $0x2a8] sm:$0xff] %vm2918, %v2747
    %3005 = vst.msk [vmem:[#allocation2 + $0x2b0] sm:$0xff] %vm2918, %v2748
    %3006 = vst.msk [vmem:[#allocation2 + $0x2b8] sm:$0xff] %vm2918, %v2749
    %3007 = vst.msk [vmem:[#allocation2 + $0x2c0] sm:$0xff] %vm2918, %v2750
    %3008 = vst.msk [vmem:[#allocation2 + $0x2c8] sm:$0xff] %vm2918, %v2751
    %3009 = vst.msk [vmem:[#allocation2 + $0x2d0] sm:$0xff] %vm2918, %v2752
    %3010 = vst.msk [vmem:[#allocation2 + $0x2d8] sm:$0xff] %vm2918, %v2753
    %3011 = vst.msk [vmem:[#allocation2 + $0x2e0] sm:$0xff] %vm2918, %v2754
    %3012 = vst.msk [vmem:[#allocation2 + $0x2e8] sm:$0xff] %vm2918, %v2755
    %3013 = vst.msk [vmem:[#allocation2 + $0x2f0] sm:$0xff] %vm2918, %v2756
    %3014 = vst.msk [vmem:[#allocation2 + $0x2f8] sm:$0xff] %vm2918, %v2757
    %3015 = vst.msk [vmem:[#allocation2 + $0x300] sm:$0xff] %vm2918, %v2758
    %3016 = vst.msk [vmem:[#allocation2 + $0x308] sm:$0xff] %vm2918, %v2759
    %3017 = vst.msk [vmem:[#allocation2 + $0x310] sm:$0xff] %vm2918, %v2760
    %3018 = vst.msk [vmem:[#allocation2 + $0x318] sm:$0xff] %vm2918, %v2761
    %3019 = vst.msk [vmem:[#allocation2 + $0x320] sm:$0xff] %vm2918, %v2762
    %3020 = vst.msk [vmem:[#allocation2 + $0x328] sm:$0xff] %vm2918, %v2763
    %3021 = vst.msk [vmem:[#allocation2 + $0x330] sm:$0xff] %vm2918, %v2764
    %3022 = vst.msk [vmem:[#allocation2 + $0x338] sm:$0xff] %vm2918, %v2765
    %3023 = vst.msk [vmem:[#allocation2 + $0x340] sm:$0xff] %vm2918, %v2766
    %3024 = vst.msk [vmem:[#allocation2 + $0x348] sm:$0xff] %vm2918, %v2767
    %3025 = vst.msk [vmem:[#allocation2 + $0x350] sm:$0xff] %vm2918, %v2768
    %3026 = vst.msk [vmem:[#allocation2 + $0x358] sm:$0xff] %vm2918, %v2769
    %3027 = vst.msk [vmem:[#allocation2 + $0x360] sm:$0xff] %vm2918, %v2770
    %3028 = vst.msk [vmem:[#allocation2 + $0x368] sm:$0xff] %vm2918, %v2771
    %3029 = vst.msk [vmem:[#allocation2 + $0x370] sm:$0xff] %vm2918, %v2772
    %3030 = vst.msk [vmem:[#allocation2 + $0x378] sm:$0xff] %vm2918, %v2773
    %3031 = vst.msk [vmem:[#allocation2 + $0x380] sm:$0xff] %vm2918, %v2774
    %3032 = vst.msk [vmem:[#allocation2 + $0x388] sm:$0xff] %vm2918, %v2775
    %3033 = vst.msk [vmem:[#allocation2 + $0x390] sm:$0xff] %vm2918, %v2776
    %3034 = vst.msk [vmem:[#allocation2 + $0x398] sm:$0xff] %vm2918, %v2777
    %3035 = vst.msk [vmem:[#allocation2 + $0x3a0] sm:$0xff] %vm2918, %v2778
    %3036 = vst.msk [vmem:[#allocation2 + $0x3a8] sm:$0xff] %vm2918, %v2779
    %3037 = vst.msk [vmem:[#allocation2 + $0x3b0] sm:$0xff] %vm2918, %v2780
    %3038 = vst.msk [vmem:[#allocation2 + $0x3b8] sm:$0xff] %vm2918, %v2781
    %3039 = vst.msk [vmem:[#allocation2 + $0x3c0] sm:$0xff] %vm2918, %v2782
    %3040 = vst.msk [vmem:[#allocation2 + $0x3c8] sm:$0xff] %vm2918, %v2783
    %3041 = vst.msk [vmem:[#allocation2 + $0x3d0] sm:$0xff] %vm2918, %v2784
    %3042 = vst.msk [vmem:[#allocation2 + $0x3d8] sm:$0xff] %vm2918, %v2785
    %3043 = vst.msk [vmem:[#allocation2 + $0x3e0] sm:$0xff] %vm2918, %v2786
    %3044 = vst.msk [vmem:[#allocation2 + $0x3e8] sm:$0xff] %vm2918, %v2787
    %3045 = vst.msk [vmem:[#allocation2 + $0x3f0] sm:$0xff] %vm2918, %v2788
    %3046 = vst.msk [vmem:[#allocation2 + $0x3f8] sm:$0xff] %vm2918, %v2789
    %3047 = vst.msk [vmem:[#allocation2 + $0x400] sm:$0xff] %vm2918, %v2790
    %3048 = vst.msk [vmem:[#allocation2 + $0x408] sm:$0xff] %vm2918, %v2791
    %3049 = vst.msk [vmem:[#allocation2 + $0x410] sm:$0xff] %vm2918, %v2792
    %3050 = vst.msk [vmem:[#allocation2 + $0x418] sm:$0xff] %vm2918, %v2793
    %3051 = vst.msk [vmem:[#allocation2 + $0x420] sm:$0xff] %vm2918, %v2794
    %3052 = vst.msk [vmem:[#allocation2 + $0x428] sm:$0xff] %vm2918, %v2795
    %3053 = vst.msk [vmem:[#allocation2 + $0x430] sm:$0xff] %vm2918, %v2796
    %3054 = vst.msk [vmem:[#allocation2 + $0x438] sm:$0xff] %vm2918, %v2797
    %3055 = vst.msk [vmem:[#allocation2 + $0x440] sm:$0xff] %vm2918, %v2798
    %3056 = vst.msk [vmem:[#allocation2 + $0x448] sm:$0xff] %vm2918, %v2799
    %3057 = vst.msk [vmem:[#allocation2 + $0x450] sm:$0xff] %vm2918, %v2800
    %3058 = vst.msk [vmem:[#allocation2 + $0x458] sm:$0xff] %vm2918, %v2801
    %3059 = vst.msk [vmem:[#allocation2 + $0x460] sm:$0xff] %vm2918, %v2802
    %3060 = vst.msk [vmem:[#allocation2 + $0x468] sm:$0xff] %vm2918, %v2803
    %3061 = vst.msk [vmem:[#allocation2 + $0x470] sm:$0xff] %vm2918, %v2804
    %3062 = vst.msk [vmem:[#allocation2 + $0x478] sm:$0xff] %vm2918, %v2805
    %3063 = vst.msk [vmem:[#allocation2 + $0x480] sm:$0xff] %vm2918, %v2806
    %3064 = vst.msk [vmem:[#allocation2 + $0x488] sm:$0xff] %vm2918, %v2807
    %3065 = vst.msk [vmem:[#allocation2 + $0x490] sm:$0xff] %vm2918, %v2808
    %3066 = vst.msk [vmem:[#allocation2 + $0x498] sm:$0xff] %vm2918, %v2809
    %3067 = vst.msk [vmem:[#allocation2 + $0x4a0] sm:$0xff] %vm2918, %v2810
    %3068 = vst.msk [vmem:[#allocation2 + $0x4a8] sm:$0xff] %vm2918, %v2811
    %3069 = vst.msk [vmem:[#allocation2 + $0x4b0] sm:$0xff] %vm2918, %v2812
    %3070 = vst.msk [vmem:[#allocation2 + $0x4b8] sm:$0xff] %vm2918, %v2813
    %3071 = vst.msk [vmem:[#allocation2 + $0x4c0] sm:$0xff] %vm2918, %v2814
    %3072 = vst.msk [vmem:[#allocation2 + $0x4c8] sm:$0xff] %vm2918, %v2815
    %3073 = vst.msk [vmem:[#allocation2 + $0x4d0] sm:$0xff] %vm2918, %v2816
    %3074 = vst.msk [vmem:[#allocation2 + $0x4d8] sm:$0xff] %vm2918, %v2817
    %3075 = vst.msk [vmem:[#allocation2 + $0x4e0] sm:$0xff] %vm2918, %v2818
    %3076 = vst.msk [vmem:[#allocation2 + $0x4e8] sm:$0xff] %vm2918, %v2819
    %3077 = vst.msk [vmem:[#allocation2 + $0x4f0] sm:$0xff] %vm2918, %v2820
    %3078 = vst.msk [vmem:[#allocation2 + $0x4f8] sm:$0xff] %vm2918, %v2821
    %3079 = vst.msk [vmem:[#allocation2 + $0x500] sm:$0xff] %vm2918, %v2822
    %3080 = vst.msk [vmem:[#allocation2 + $0x508] sm:$0xff] %vm2918, %v2823
    %3081 = vst.msk [vmem:[#allocation2 + $0x510] sm:$0xff] %vm2918, %v2824
    %3082 = vst.msk [vmem:[#allocation2 + $0x518] sm:$0xff] %vm2918, %v2825
    %3083 = vst.msk [vmem:[#allocation2 + $0x520] sm:$0xff] %vm2918, %v2826
    %3084 = vst.msk [vmem:[#allocation2 + $0x528] sm:$0xff] %vm2918, %v2827
    %3085 = vst.msk [vmem:[#allocation2 + $0x530] sm:$0xff] %vm2918, %v2828
    %3086 = vst.msk [vmem:[#allocation2 + $0x538] sm:$0xff] %vm2918, %v2829
    %3087 = vst.msk [vmem:[#allocation2 + $0x540] sm:$0xff] %vm2918, %v2830
    %3088 = vst.msk [vmem:[#allocation2 + $0x548] sm:$0xff] %vm2918, %v2831
    %3089 = vst.msk [vmem:[#allocation2 + $0x550] sm:$0xff] %vm2918, %v2832
    %3090 = vst.msk [vmem:[#allocation2 + $0x558] sm:$0xff] %vm2918, %v2833
    %3091 = vst.msk [vmem:[#allocation2 + $0x560] sm:$0xff] %vm2918, %v2834
    %3092 = vst.msk [vmem:[#allocation2 + $0x568] sm:$0xff] %vm2918, %v2835
    %3093 = vst.msk [vmem:[#allocation2 + $0x570] sm:$0xff] %vm2918, %v2836
    %3094 = vst.msk [vmem:[#allocation2 + $0x578] sm:$0xff] %vm2918, %v2837
    %3095 = vst.msk [vmem:[#allocation2 + $0x580] sm:$0xff] %vm2918, %v2838
    %3096 = vst.msk [vmem:[#allocation2 + $0x588] sm:$0xff] %vm2918, %v2839
    %3097 = vst.msk [vmem:[#allocation2 + $0x590] sm:$0xff] %vm2918, %v2840
    %3098 = vst.msk [vmem:[#allocation2 + $0x598] sm:$0xff] %vm2918, %v2841
    %3099 = vst.msk [vmem:[#allocation2 + $0x5a0] sm:$0xff] %vm2918, %v2842
    %3100 = vst.msk [vmem:[#allocation2 + $0x5a8] sm:$0xff] %vm2918, %v2843
    %3101 = vst.msk [vmem:[#allocation2 + $0x5b0] sm:$0xff] %vm2918, %v2844
    %3102 = vst.msk [vmem:[#allocation2 + $0x5b8] sm:$0xff] %vm2918, %v2845
    %3103 = vst.msk [vmem:[#allocation2 + $0x5c0] sm:$0xff] %vm2918, %v2846
    %3104 = vst.msk [vmem:[#allocation2 + $0x5c8] sm:$0xff] %vm2918, %v2847
    %3105 = vst.msk [vmem:[#allocation2 + $0x5d0] sm:$0xff] %vm2918, %v2848
    %3106 = vst.msk [vmem:[#allocation2 + $0x5d8] sm:$0xff] %vm2918, %v2849
    %3107 = vst.msk [vmem:[#allocation2 + $0x5e0] sm:$0xff] %vm2918, %v2850
    %3108 = vst.msk [vmem:[#allocation2 + $0x5e8] sm:$0xff] %vm2918, %v2851
    %3109 = vst.msk [vmem:[#allocation2 + $0x5f0] sm:$0xff] %vm2918, %v2852
    %3110 = vst.msk [vmem:[#allocation2 + $0x5f8] sm:$0xff] %vm2918, %v2853
    %3111 = vst.msk [vmem:[#allocation2 + $0x600] sm:$0xff] %vm2918, %v2854
    %3112 = vst.msk [vmem:[#allocation2 + $0x608] sm:$0xff] %vm2918, %v2855
    %3113 = vst.msk [vmem:[#allocation2 + $0x610] sm:$0xff] %vm2918, %v2856
    %3114 = vst.msk [vmem:[#allocation2 + $0x618] sm:$0xff] %vm2918, %v2857
    %3115 = vst.msk [vmem:[#allocation2 + $0x620] sm:$0xff] %vm2918, %v2858
    %3116 = vst.msk [vmem:[#allocation2 + $0x628] sm:$0xff] %vm2918, %v2859
    %3117 = vst.msk [vmem:[#allocation2 + $0x630] sm:$0xff] %vm2918, %v2860
    %3118 = vst.msk [vmem:[#allocation2 + $0x638] sm:$0xff] %vm2918, %v2861
    %3119 = vst.msk [vmem:[#allocation2 + $0x640] sm:$0xff] %vm2918, %v2862
    %3120 = vst.msk [vmem:[#allocation2 + $0x648] sm:$0xff] %vm2918, %v2863
    %3121 = vst.msk [vmem:[#allocation2 + $0x650] sm:$0xff] %vm2918, %v2864
    %3122 = vst.msk [vmem:[#allocation2 + $0x658] sm:$0xff] %vm2918, %v2865
    %3123 = vst.msk [vmem:[#allocation2 + $0x660] sm:$0xff] %vm2918, %v2866
    %3124 = vst.msk [vmem:[#allocation2 + $0x668] sm:$0xff] %vm2918, %v2867
    %3125 = vst.msk [vmem:[#allocation2 + $0x670] sm:$0xff] %vm2918, %v2868
    %3126 = vst.msk [vmem:[#allocation2 + $0x678] sm:$0xff] %vm2918, %v2869
    %3127 = vst.msk [vmem:[#allocation2 + $0x680] sm:$0xff] %vm2918, %v2870
    %3128 = vst.msk [vmem:[#allocation2 + $0x688] sm:$0xff] %vm2918, %v2871
    %3129 = vst.msk [vmem:[#allocation2 + $0x690] sm:$0xff] %vm2918, %v2872
    %3130 = vst.msk [vmem:[#allocation2 + $0x698] sm:$0xff] %vm2918, %v2873
    %3131 = vst.msk [vmem:[#allocation2 + $0x6a0] sm:$0xff] %vm2918, %v2874
    %3132 = vst.msk [vmem:[#allocation2 + $0x6a8] sm:$0xff] %vm2918, %v2875
    %3133 = vst.msk [vmem:[#allocation2 + $0x6b0] sm:$0xff] %vm2918, %v2876
    %3134 = vst.msk [vmem:[#allocation2 + $0x6b8] sm:$0xff] %vm2918, %v2877
    %3135 = vst.msk [vmem:[#allocation2 + $0x6c0] sm:$0xff] %vm2918, %v2878
    %3136 = vst.msk [vmem:[#allocation2 + $0x6c8] sm:$0xff] %vm2918, %v2879
    %3137 = vst.msk [vmem:[#allocation2 + $0x6d0] sm:$0xff] %vm2918, %v2880
    %3138 = vst.msk [vmem:[#allocation2 + $0x6d8] sm:$0xff] %vm2918, %v2881
    %3139 = vst.msk [vmem:[#allocation2 + $0x6e0] sm:$0xff] %vm2918, %v2882
    %3140 = vst.msk [vmem:[#allocation2 + $0x6e8] sm:$0xff] %vm2918, %v2883
    %3141 = vst.msk [vmem:[#allocation2 + $0x6f0] sm:$0xff] %vm2918, %v2884
    %3142 = vst.msk [vmem:[#allocation2 + $0x6f8] sm:$0xff] %vm2918, %v2885
    %3143 = vst.msk [vmem:[#allocation2 + $0x700] sm:$0xff] %vm2918, %v2886
    %3144 = vst.msk [vmem:[#allocation2 + $0x708] sm:$0xff] %vm2918, %v2887
    %3145 = vst.msk [vmem:[#allocation2 + $0x710] sm:$0xff] %vm2918, %v2888
    %3146 = vst.msk [vmem:[#allocation2 + $0x718] sm:$0xff] %vm2918, %v2889
    %3147 = vst.msk [vmem:[#allocation2 + $0x720] sm:$0xff] %vm2918, %v2890
    %3148 = vst.msk [vmem:[#allocation2 + $0x728] sm:$0xff] %vm2918, %v2891
    %3149 = vst.msk [vmem:[#allocation2 + $0x730] sm:$0xff] %vm2918, %v2892
    %3150 = vst.msk [vmem:[#allocation2 + $0x738] sm:$0xff] %vm2918, %v2893
    %3151 = vst.msk [vmem:[#allocation2 + $0x740] sm:$0xff] %vm2918, %v2894
    %3152 = vst.msk [vmem:[#allocation2 + $0x748] sm:$0xff] %vm2918, %v2895
    %3153 = vst.msk [vmem:[#allocation2 + $0x750] sm:$0xff] %vm2918, %v2896
    %3154 = vst.msk [vmem:[#allocation2 + $0x758] sm:$0xff] %vm2918, %v2897
    %3155 = vst.msk [vmem:[#allocation2 + $0x760] sm:$0xff] %vm2918, %v2898
    %3156 = vst.msk [vmem:[#allocation2 + $0x768] sm:$0xff] %vm2918, %v2899
    %3157 = vst.msk [vmem:[#allocation2 + $0x770] sm:$0xff] %vm2918, %v2900
    %3158 = vst.msk [vmem:[#allocation2 + $0x778] sm:$0xff] %vm2918, %v2901
    %3159 = vst.msk [vmem:[#allocation2 + $0x780] sm:$0xff] %vm2918, %v2902
    %3160 = vst.msk [vmem:[#allocation2 + $0x788] sm:$0xff] %vm2918, %v2903
    %3161 = vst.msk [vmem:[#allocation2 + $0x790] sm:$0xff] %vm2918, %v2904
    %3162 = vst.msk [vmem:[#allocation2 + $0x798] sm:$0xff] %vm2918, %v2905
    %3163 = vst.msk [vmem:[#allocation2 + $0x7a0] sm:$0xff] %vm2918, %v2906
    %3164 = vst.msk [vmem:[#allocation2 + $0x7a8] sm:$0xff] %vm2918, %v2907
    %3165 = vst.msk [vmem:[#allocation2 + $0x7b0] sm:$0xff] %vm2918, %v2908
    %3166 = vst.msk [vmem:[#allocation2 + $0x7b8] sm:$0xff] %vm2918, %v2909
    %3167 = vst.msk [vmem:[#allocation2 + $0x7c0] sm:$0xff] %vm2918, %v2910
    %3168 = vst.msk [vmem:[#allocation2 + $0x7c8] sm:$0xff] %vm2918, %v2911
    %3169 = vst.msk [vmem:[#allocation2 + $0x7d0] sm:$0xff] %vm2918, %v2912
    %3170 = vst.msk [vmem:[#allocation2 + $0x7d8] sm:$0xff] %vm2918, %v2913
    %3171 = vst.msk [vmem:[#allocation2 + $0x7e0] sm:$0xff] %vm2918, %v2914
    %3172 = vst.msk [vmem:[#allocation2 + $0x7e8] sm:$0xff] %vm2918, %v2915
    %3173 = vst.msk [vmem:[#allocation2 + $0x7f0] sm:$0xff] %vm2918, %v2916
    %3174 = vst.msk [vmem:[#allocation2 + $0x7f8] sm:$0xff] %vm2918, %v2917
    // Predicated region
    $region22: #{tpu_custom_call.1} parent=1 // pred_check
      %p3175 = pneg %p31
    $region23: #{tpu_custom_call.1} parent=1 // pred_check_branch
      %3177 = sbr.rel (%p3175) target = $region25
    $region24: #{tpu_custom_call.1} parent=1 // pred_region
      %v3178 = vld [vmem:[#allocation2] sm:$0xff]
      %v3179 = vld [vmem:[#allocation2 + $0x8] sm:$0xff]
      %v3180 = vld [vmem:[#allocation2 + $0x10] sm:$0xff]
      %v3181 = vld [vmem:[#allocation2 + $0x18] sm:$0xff]
      %v3182 = vld [vmem:[#allocation2 + $0x20] sm:$0xff]
      %v3183 = vld [vmem:[#allocation2 + $0x28] sm:$0xff]
      %v3184 = vld [vmem:[#allocation2 + $0x30] sm:$0xff]
      %v3185 = vld [vmem:[#allocation2 + $0x38] sm:$0xff]
      %v3186 = vld [vmem:[#allocation2 + $0x40] sm:$0xff]
      %v3187 = vld [vmem:[#allocation2 + $0x48] sm:$0xff]
      %v3188 = vld [vmem:[#allocation2 + $0x50] sm:$0xff]
      %v3189 = vld [vmem:[#allocation2 + $0x58] sm:$0xff]
      %v3190 = vld [vmem:[#allocation2 + $0x60] sm:$0xff]
      %v3191 = vld [vmem:[#allocation2 + $0x68] sm:$0xff]
      %v3192 = vld [vmem:[#allocation2 + $0x70] sm:$0xff]
      %v3193 = vld [vmem:[#allocation2 + $0x78] sm:$0xff]
      %v3194 = vld [vmem:[#allocation2 + $0x80] sm:$0xff]
      %v3195 = vld [vmem:[#allocation2 + $0x88] sm:$0xff]
      %v3196 = vld [vmem:[#allocation2 + $0x90] sm:$0xff]
      %v3197 = vld [vmem:[#allocation2 + $0x98] sm:$0xff]
      %v3198 = vld [vmem:[#allocation2 + $0xa0] sm:$0xff]
      %v3199 = vld [vmem:[#allocation2 + $0xa8] sm:$0xff]
      %v3200 = vld [vmem:[#allocation2 + $0xb0] sm:$0xff]
      %v3201 = vld [vmem:[#allocation2 + $0xb8] sm:$0xff]
      %v3202 = vld [vmem:[#allocation2 + $0xc0] sm:$0xff]
      %v3203 = vld [vmem:[#allocation2 + $0xc8] sm:$0xff]
      %v3204 = vld [vmem:[#allocation2 + $0xd0] sm:$0xff]
      %v3205 = vld [vmem:[#allocation2 + $0xd8] sm:$0xff]
      %v3206 = vld [vmem:[#allocation2 + $0xe0] sm:$0xff]
      %v3207 = vld [vmem:[#allocation2 + $0xe8] sm:$0xff]
      %v3208 = vld [vmem:[#allocation2 + $0xf0] sm:$0xff]
      %v3209 = vld [vmem:[#allocation2 + $0xf8] sm:$0xff]
      %v3210 = vld [vmem:[#allocation2 + $0x100] sm:$0xff]
      %v3211 = vld [vmem:[#allocation2 + $0x108] sm:$0xff]
      %v3212 = vld [vmem:[#allocation2 + $0x110] sm:$0xff]
      %v3213 = vld [vmem:[#allocation2 + $0x118] sm:$0xff]
      %v3214 = vld [vmem:[#allocation2 + $0x120] sm:$0xff]
      %v3215 = vld [vmem:[#allocation2 + $0x128] sm:$0xff]
      %v3216 = vld [vmem:[#allocation2 + $0x130] sm:$0xff]
      %v3217 = vld [vmem:[#allocation2 + $0x138] sm:$0xff]
      %v3218 = vld [vmem:[#allocation2 + $0x140] sm:$0xff]
      %v3219 = vld [vmem:[#allocation2 + $0x148] sm:$0xff]
      %v3220 = vld [vmem:[#allocation2 + $0x150] sm:$0xff]
      %v3221 = vld [vmem:[#allocation2 + $0x158] sm:$0xff]
      %v3222 = vld [vmem:[#allocation2 + $0x160] sm:$0xff]
      %v3223 = vld [vmem:[#allocation2 + $0x168] sm:$0xff]
      %v3224 = vld [vmem:[#allocation2 + $0x170] sm:$0xff]
      %v3225 = vld [vmem:[#allocation2 + $0x178] sm:$0xff]
      %v3226 = vld [vmem:[#allocation2 + $0x180] sm:$0xff]
      %v3227 = vld [vmem:[#allocation2 + $0x188] sm:$0xff]
      %v3228 = vld [vmem:[#allocation2 + $0x190] sm:$0xff]
      %v3229 = vld [vmem:[#allocation2 + $0x198] sm:$0xff]
      %v3230 = vld [vmem:[#allocation2 + $0x1a0] sm:$0xff]
      %v3231 = vld [vmem:[#allocation2 + $0x1a8] sm:$0xff]
      %v3232 = vld [vmem:[#allocation2 + $0x1b0] sm:$0xff]
      %v3233 = vld [vmem:[#allocation2 + $0x1b8] sm:$0xff]
      %v3234 = vld [vmem:[#allocation2 + $0x1c0] sm:$0xff]
      %v3235 = vld [vmem:[#allocation2 + $0x1c8] sm:$0xff]
      %v3236 = vld [vmem:[#allocation2 + $0x1d0] sm:$0xff]
      %v3237 = vld [vmem:[#allocation2 + $0x1d8] sm:$0xff]
      %v3238 = vld [vmem:[#allocation2 + $0x1e0] sm:$0xff]
      %v3239 = vld [vmem:[#allocation2 + $0x1e8] sm:$0xff]
      %v3240 = vld [vmem:[#allocation2 + $0x1f0] sm:$0xff]
      %v3241 = vld [vmem:[#allocation2 + $0x1f8] sm:$0xff]
      %v3242 = vld [vmem:[#allocation2 + $0x200] sm:$0xff]
      %v3243 = vld [vmem:[#allocation2 + $0x208] sm:$0xff]
      %v3244 = vld [vmem:[#allocation2 + $0x210] sm:$0xff]
      %v3245 = vld [vmem:[#allocation2 + $0x218] sm:$0xff]
      %v3246 = vld [vmem:[#allocation2 + $0x220] sm:$0xff]
      %v3247 = vld [vmem:[#allocation2 + $0x228] sm:$0xff]
      %v3248 = vld [vmem:[#allocation2 + $0x230] sm:$0xff]
      %v3249 = vld [vmem:[#allocation2 + $0x238] sm:$0xff]
      %v3250 = vld [vmem:[#allocation2 + $0x240] sm:$0xff]
      %v3251 = vld [vmem:[#allocation2 + $0x248] sm:$0xff]
      %v3252 = vld [vmem:[#allocation2 + $0x250] sm:$0xff]
      %v3253 = vld [vmem:[#allocation2 + $0x258] sm:$0xff]
      %v3254 = vld [vmem:[#allocation2 + $0x260] sm:$0xff]
      %v3255 = vld [vmem:[#allocation2 + $0x268] sm:$0xff]
      %v3256 = vld [vmem:[#allocation2 + $0x270] sm:$0xff]
      %v3257 = vld [vmem:[#allocation2 + $0x278] sm:$0xff]
      %v3258 = vld [vmem:[#allocation2 + $0x280] sm:$0xff]
      %v3259 = vld [vmem:[#allocation2 + $0x288] sm:$0xff]
      %v3260 = vld [vmem:[#allocation2 + $0x290] sm:$0xff]
      %v3261 = vld [vmem:[#allocation2 + $0x298] sm:$0xff]
      %v3262 = vld [vmem:[#allocation2 + $0x2a0] sm:$0xff]
      %v3263 = vld [vmem:[#allocation2 + $0x2a8] sm:$0xff]
      %v3264 = vld [vmem:[#allocation2 + $0x2b0] sm:$0xff]
      %v3265 = vld [vmem:[#allocation2 + $0x2b8] sm:$0xff]
      %v3266 = vld [vmem:[#allocation2 + $0x2c0] sm:$0xff]
      %v3267 = vld [vmem:[#allocation2 + $0x2c8] sm:$0xff]
      %v3268 = vld [vmem:[#allocation2 + $0x2d0] sm:$0xff]
      %v3269 = vld [vmem:[#allocation2 + $0x2d8] sm:$0xff]
      %v3270 = vld [vmem:[#allocation2 + $0x2e0] sm:$0xff]
      %v3271 = vld [vmem:[#allocation2 + $0x2e8] sm:$0xff]
      %v3272 = vld [vmem:[#allocation2 + $0x2f0] sm:$0xff]
      %v3273 = vld [vmem:[#allocation2 + $0x2f8] sm:$0xff]
      %v3274 = vld [vmem:[#allocation2 + $0x300] sm:$0xff]
      %v3275 = vld [vmem:[#allocation2 + $0x308] sm:$0xff]
      %v3276 = vld [vmem:[#allocation2 + $0x310] sm:$0xff]
      %v3277 = vld [vmem:[#allocation2 + $0x318] sm:$0xff]
      %v3278 = vld [vmem:[#allocation2 + $0x320] sm:$0xff]
      %v3279 = vld [vmem:[#allocation2 + $0x328] sm:$0xff]
      %v3280 = vld [vmem:[#allocation2 + $0x330] sm:$0xff]
      %v3281 = vld [vmem:[#allocation2 + $0x338] sm:$0xff]
      %v3282 = vld [vmem:[#allocation2 + $0x340] sm:$0xff]
      %v3283 = vld [vmem:[#allocation2 + $0x348] sm:$0xff]
      %v3284 = vld [vmem:[#allocation2 + $0x350] sm:$0xff]
      %v3285 = vld [vmem:[#allocation2 + $0x358] sm:$0xff]
      %v3286 = vld [vmem:[#allocation2 + $0x360] sm:$0xff]
      %v3287 = vld [vmem:[#allocation2 + $0x368] sm:$0xff]
      %v3288 = vld [vmem:[#allocation2 + $0x370] sm:$0xff]
      %v3289 = vld [vmem:[#allocation2 + $0x378] sm:$0xff]
      %v3290 = vld [vmem:[#allocation2 + $0x380] sm:$0xff]
      %v3291 = vld [vmem:[#allocation2 + $0x388] sm:$0xff]
      %v3292 = vld [vmem:[#allocation2 + $0x390] sm:$0xff]
      %v3293 = vld [vmem:[#allocation2 + $0x398] sm:$0xff]
      %v3294 = vld [vmem:[#allocation2 + $0x3a0] sm:$0xff]
      %v3295 = vld [vmem:[#allocation2 + $0x3a8] sm:$0xff]
      %v3296 = vld [vmem:[#allocation2 + $0x3b0] sm:$0xff]
      %v3297 = vld [vmem:[#allocation2 + $0x3b8] sm:$0xff]
      %v3298 = vld [vmem:[#allocation2 + $0x3c0] sm:$0xff]
      %v3299 = vld [vmem:[#allocation2 + $0x3c8] sm:$0xff]
      %v3300 = vld [vmem:[#allocation2 + $0x3d0] sm:$0xff]
      %v3301 = vld [vmem:[#allocation2 + $0x3d8] sm:$0xff]
      %v3302 = vld [vmem:[#allocation2 + $0x3e0] sm:$0xff]
      %v3303 = vld [vmem:[#allocation2 + $0x3e8] sm:$0xff]
      %v3304 = vld [vmem:[#allocation2 + $0x3f0] sm:$0xff]
      %v3305 = vld [vmem:[#allocation2 + $0x3f8] sm:$0xff]
      %v3306 = vld [vmem:[#allocation2 + $0x400] sm:$0xff]
      %v3307 = vld [vmem:[#allocation2 + $0x408] sm:$0xff]
      %v3308 = vld [vmem:[#allocation2 + $0x410] sm:$0xff]
      %v3309 = vld [vmem:[#allocation2 + $0x418] sm:$0xff]
      %v3310 = vld [vmem:[#allocation2 + $0x420] sm:$0xff]
      %v3311 = vld [vmem:[#allocation2 + $0x428] sm:$0xff]
      %v3312 = vld [vmem:[#allocation2 + $0x430] sm:$0xff]
      %v3313 = vld [vmem:[#allocation2 + $0x438] sm:$0xff]
      %v3314 = vld [vmem:[#allocation2 + $0x440] sm:$0xff]
      %v3315 = vld [vmem:[#allocation2 + $0x448] sm:$0xff]
      %v3316 = vld [vmem:[#allocation2 + $0x450] sm:$0xff]
      %v3317 = vld [vmem:[#allocation2 + $0x458] sm:$0xff]
      %v3318 = vld [vmem:[#allocation2 + $0x460] sm:$0xff]
      %v3319 = vld [vmem:[#allocation2 + $0x468] sm:$0xff]
      %v3320 = vld [vmem:[#allocation2 + $0x470] sm:$0xff]
      %v3321 = vld [vmem:[#allocation2 + $0x478] sm:$0xff]
      %v3322 = vld [vmem:[#allocation2 + $0x480] sm:$0xff]
      %v3323 = vld [vmem:[#allocation2 + $0x488] sm:$0xff]
      %v3324 = vld [vmem:[#allocation2 + $0x490] sm:$0xff]
      %v3325 = vld [vmem:[#allocation2 + $0x498] sm:$0xff]
      %v3326 = vld [vmem:[#allocation2 + $0x4a0] sm:$0xff]
      %v3327 = vld [vmem:[#allocation2 + $0x4a8] sm:$0xff]
      %v3328 = vld [vmem:[#allocation2 + $0x4b0] sm:$0xff]
      %v3329 = vld [vmem:[#allocation2 + $0x4b8] sm:$0xff]
      %v3330 = vld [vmem:[#allocation2 + $0x4c0] sm:$0xff]
      %v3331 = vld [vmem:[#allocation2 + $0x4c8] sm:$0xff]
      %v3332 = vld [vmem:[#allocation2 + $0x4d0] sm:$0xff]
      %v3333 = vld [vmem:[#allocation2 + $0x4d8] sm:$0xff]
      %v3334 = vld [vmem:[#allocation2 + $0x4e0] sm:$0xff]
      %v3335 = vld [vmem:[#allocation2 + $0x4e8] sm:$0xff]
      %v3336 = vld [vmem:[#allocation2 + $0x4f0] sm:$0xff]
      %v3337 = vld [vmem:[#allocation2 + $0x4f8] sm:$0xff]
      %v3338 = vld [vmem:[#allocation2 + $0x500] sm:$0xff]
      %v3339 = vld [vmem:[#allocation2 + $0x508] sm:$0xff]
      %v3340 = vld [vmem:[#allocation2 + $0x510] sm:$0xff]
      %v3341 = vld [vmem:[#allocation2 + $0x518] sm:$0xff]
      %v3342 = vld [vmem:[#allocation2 + $0x520] sm:$0xff]
      %v3343 = vld [vmem:[#allocation2 + $0x528] sm:$0xff]
      %v3344 = vld [vmem:[#allocation2 + $0x530] sm:$0xff]
      %v3345 = vld [vmem:[#allocation2 + $0x538] sm:$0xff]
      %v3346 = vld [vmem:[#allocation2 + $0x540] sm:$0xff]
      %v3347 = vld [vmem:[#allocation2 + $0x548] sm:$0xff]
      %v3348 = vld [vmem:[#allocation2 + $0x550] sm:$0xff]
      %v3349 = vld [vmem:[#allocation2 + $0x558] sm:$0xff]
      %v3350 = vld [vmem:[#allocation2 + $0x560] sm:$0xff]
      %v3351 = vld [vmem:[#allocation2 + $0x568] sm:$0xff]
      %v3352 = vld [vmem:[#allocation2 + $0x570] sm:$0xff]
      %v3353 = vld [vmem:[#allocation2 + $0x578] sm:$0xff]
      %v3354 = vld [vmem:[#allocation2 + $0x580] sm:$0xff]
      %v3355 = vld [vmem:[#allocation2 + $0x588] sm:$0xff]
      %v3356 = vld [vmem:[#allocation2 + $0x590] sm:$0xff]
      %v3357 = vld [vmem:[#allocation2 + $0x598] sm:$0xff]
      %v3358 = vld [vmem:[#allocation2 + $0x5a0] sm:$0xff]
      %v3359 = vld [vmem:[#allocation2 + $0x5a8] sm:$0xff]
      %v3360 = vld [vmem:[#allocation2 + $0x5b0] sm:$0xff]
      %v3361 = vld [vmem:[#allocation2 + $0x5b8] sm:$0xff]
      %v3362 = vld [vmem:[#allocation2 + $0x5c0] sm:$0xff]
      %v3363 = vld [vmem:[#allocation2 + $0x5c8] sm:$0xff]
      %v3364 = vld [vmem:[#allocation2 + $0x5d0] sm:$0xff]
      %v3365 = vld [vmem:[#allocation2 + $0x5d8] sm:$0xff]
      %v3366 = vld [vmem:[#allocation2 + $0x5e0] sm:$0xff]
      %v3367 = vld [vmem:[#allocation2 + $0x5e8] sm:$0xff]
      %v3368 = vld [vmem:[#allocation2 + $0x5f0] sm:$0xff]
      %v3369 = vld [vmem:[#allocation2 + $0x5f8] sm:$0xff]
      %v3370 = vld [vmem:[#allocation2 + $0x600] sm:$0xff]
      %v3371 = vld [vmem:[#allocation2 + $0x608] sm:$0xff]
      %v3372 = vld [vmem:[#allocation2 + $0x610] sm:$0xff]
      %v3373 = vld [vmem:[#allocation2 + $0x618] sm:$0xff]
      %v3374 = vld [vmem:[#allocation2 + $0x620] sm:$0xff]
      %v3375 = vld [vmem:[#allocation2 + $0x628] sm:$0xff]
      %v3376 = vld [vmem:[#allocation2 + $0x630] sm:$0xff]
      %v3377 = vld [vmem:[#allocation2 + $0x638] sm:$0xff]
      %v3378 = vld [vmem:[#allocation2 + $0x640] sm:$0xff]
      %v3379 = vld [vmem:[#allocation2 + $0x648] sm:$0xff]
      %v3380 = vld [vmem:[#allocation2 + $0x650] sm:$0xff]
      %v3381 = vld [vmem:[#allocation2 + $0x658] sm:$0xff]
      %v3382 = vld [vmem:[#allocation2 + $0x660] sm:$0xff]
      %v3383 = vld [vmem:[#allocation2 + $0x668] sm:$0xff]
      %v3384 = vld [vmem:[#allocation2 + $0x670] sm:$0xff]
      %v3385 = vld [vmem:[#allocation2 + $0x678] sm:$0xff]
      %v3386 = vld [vmem:[#allocation2 + $0x680] sm:$0xff]
      %v3387 = vld [vmem:[#allocation2 + $0x688] sm:$0xff]
      %v3388 = vld [vmem:[#allocation2 + $0x690] sm:$0xff]
      %v3389 = vld [vmem:[#allocation2 + $0x698] sm:$0xff]
      %v3390 = vld [vmem:[#allocation2 + $0x6a0] sm:$0xff]
      %v3391 = vld [vmem:[#allocation2 + $0x6a8] sm:$0xff]
      %v3392 = vld [vmem:[#allocation2 + $0x6b0] sm:$0xff]
      %v3393 = vld [vmem:[#allocation2 + $0x6b8] sm:$0xff]
      %v3394 = vld [vmem:[#allocation2 + $0x6c0] sm:$0xff]
      %v3395 = vld [vmem:[#allocation2 + $0x6c8] sm:$0xff]
      %v3396 = vld [vmem:[#allocation2 + $0x6d0] sm:$0xff]
      %v3397 = vld [vmem:[#allocation2 + $0x6d8] sm:$0xff]
      %v3398 = vld [vmem:[#allocation2 + $0x6e0] sm:$0xff]
      %v3399 = vld [vmem:[#allocation2 + $0x6e8] sm:$0xff]
      %v3400 = vld [vmem:[#allocation2 + $0x6f0] sm:$0xff]
      %v3401 = vld [vmem:[#allocation2 + $0x6f8] sm:$0xff]
      %v3402 = vld [vmem:[#allocation2 + $0x700] sm:$0xff]
      %v3403 = vld [vmem:[#allocation2 + $0x708] sm:$0xff]
      %v3404 = vld [vmem:[#allocation2 + $0x710] sm:$0xff]
      %v3405 = vld [vmem:[#allocation2 + $0x718] sm:$0xff]
      %v3406 = vld [vmem:[#allocation2 + $0x720] sm:$0xff]
      %v3407 = vld [vmem:[#allocation2 + $0x728] sm:$0xff]
      %v3408 = vld [vmem:[#allocation2 + $0x730] sm:$0xff]
      %v3409 = vld [vmem:[#allocation2 + $0x738] sm:$0xff]
      %v3410 = vld [vmem:[#allocation2 + $0x740] sm:$0xff]
      %v3411 = vld [vmem:[#allocation2 + $0x748] sm:$0xff]
      %v3412 = vld [vmem:[#allocation2 + $0x750] sm:$0xff]
      %v3413 = vld [vmem:[#allocation2 + $0x758] sm:$0xff]
      %v3414 = vld [vmem:[#allocation2 + $0x760] sm:$0xff]
      %v3415 = vld [vmem:[#allocation2 + $0x768] sm:$0xff]
      %v3416 = vld [vmem:[#allocation2 + $0x770] sm:$0xff]
      %v3417 = vld [vmem:[#allocation2 + $0x778] sm:$0xff]
      %v3418 = vld [vmem:[#allocation2 + $0x780] sm:$0xff]
      %v3419 = vld [vmem:[#allocation2 + $0x788] sm:$0xff]
      %v3420 = vld [vmem:[#allocation2 + $0x790] sm:$0xff]
      %v3421 = vld [vmem:[#allocation2 + $0x798] sm:$0xff]
      %v3422 = vld [vmem:[#allocation2 + $0x7a0] sm:$0xff]
      %v3423 = vld [vmem:[#allocation2 + $0x7a8] sm:$0xff]
      %v3424 = vld [vmem:[#allocation2 + $0x7b0] sm:$0xff]
      %v3425 = vld [vmem:[#allocation2 + $0x7b8] sm:$0xff]
      %v3426 = vld [vmem:[#allocation2 + $0x7c0] sm:$0xff]
      %v3427 = vld [vmem:[#allocation2 + $0x7c8] sm:$0xff]
      %v3428 = vld [vmem:[#allocation2 + $0x7d0] sm:$0xff]
      %v3429 = vld [vmem:[#allocation2 + $0x7d8] sm:$0xff]
      %v3430 = vld [vmem:[#allocation2 + $0x7e0] sm:$0xff]
      %v3431 = vld [vmem:[#allocation2 + $0x7e8] sm:$0xff]
      %v3432 = vld [vmem:[#allocation2 + $0x7f0] sm:$0xff]
      %v3433 = vld [vmem:[#allocation2 + $0x7f8] sm:$0xff]
      %s3434 = sld [smem:[#allocation3]]
      %v3435 = vstv %s3434
      %v3436 = vadd.f32 %v3178, %v3435
      %v3437 = vadd.f32 %v3179, %v3435
      %v3438 = vadd.f32 %v3180, %v3435
      %v3439 = vadd.f32 %v3181, %v3435
      %v3440 = vadd.f32 %v3182, %v3435
      %v3441 = vadd.f32 %v3183, %v3435
      %v3442 = vadd.f32 %v3184, %v3435
      %v3443 = vadd.f32 %v3185, %v3435
      %v3444 = vadd.f32 %v3186, %v3435
      %v3445 = vadd.f32 %v3187, %v3435
      %v3446 = vadd.f32 %v3188, %v3435
      %v3447 = vadd.f32 %v3189, %v3435
      %v3448 = vadd.f32 %v3190, %v3435
      %v3449 = vadd.f32 %v3191, %v3435
      %v3450 = vadd.f32 %v3192, %v3435
      %v3451 = vadd.f32 %v3193, %v3435
      %v3452 = vadd.f32 %v3194, %v3435
      %v3453 = vadd.f32 %v3195, %v3435
      %v3454 = vadd.f32 %v3196, %v3435
      %v3455 = vadd.f32 %v3197, %v3435
      %v3456 = vadd.f32 %v3198, %v3435
      %v3457 = vadd.f32 %v3199, %v3435
      %v3458 = vadd.f32 %v3200, %v3435
      %v3459 = vadd.f32 %v3201, %v3435
      %v3460 = vadd.f32 %v3202, %v3435
      %v3461 = vadd.f32 %v3203, %v3435
      %v3462 = vadd.f32 %v3204, %v3435
      %v3463 = vadd.f32 %v3205, %v3435
      %v3464 = vadd.f32 %v3206, %v3435
      %v3465 = vadd.f32 %v3207, %v3435
      %v3466 = vadd.f32 %v3208, %v3435
      %v3467 = vadd.f32 %v3209, %v3435
      %v3468 = vadd.f32 %v3210, %v3435
      %v3469 = vadd.f32 %v3211, %v3435
      %v3470 = vadd.f32 %v3212, %v3435
      %v3471 = vadd.f32 %v3213, %v3435
      %v3472 = vadd.f32 %v3214, %v3435
      %v3473 = vadd.f32 %v3215, %v3435
      %v3474 = vadd.f32 %v3216, %v3435
      %v3475 = vadd.f32 %v3217, %v3435
      %v3476 = vadd.f32 %v3218, %v3435
      %v3477 = vadd.f32 %v3219, %v3435
      %v3478 = vadd.f32 %v3220, %v3435
      %v3479 = vadd.f32 %v3221, %v3435
      %v3480 = vadd.f32 %v3222, %v3435
      %v3481 = vadd.f32 %v3223, %v3435
      %v3482 = vadd.f32 %v3224, %v3435
      %v3483 = vadd.f32 %v3225, %v3435
      %v3484 = vadd.f32 %v3226, %v3435
      %v3485 = vadd.f32 %v3227, %v3435
      %v3486 = vadd.f32 %v3228, %v3435
      %v3487 = vadd.f32 %v3229, %v3435
      %v3488 = vadd.f32 %v3230, %v3435
      %v3489 = vadd.f32 %v3231, %v3435
      %v3490 = vadd.f32 %v3232, %v3435
      %v3491 = vadd.f32 %v3233, %v3435
      %v3492 = vadd.f32 %v3234, %v3435
      %v3493 = vadd.f32 %v3235, %v3435
      %v3494 = vadd.f32 %v3236, %v3435
      %v3495 = vadd.f32 %v3237, %v3435
      %v3496 = vadd.f32 %v3238, %v3435
      %v3497 = vadd.f32 %v3239, %v3435
      %v3498 = vadd.f32 %v3240, %v3435
      %v3499 = vadd.f32 %v3241, %v3435
      %v3500 = vadd.f32 %v3242, %v3435
      %v3501 = vadd.f32 %v3243, %v3435
      %v3502 = vadd.f32 %v3244, %v3435
      %v3503 = vadd.f32 %v3245, %v3435
      %v3504 = vadd.f32 %v3246, %v3435
      %v3505 = vadd.f32 %v3247, %v3435
      %v3506 = vadd.f32 %v3248, %v3435
      %v3507 = vadd.f32 %v3249, %v3435
      %v3508 = vadd.f32 %v3250, %v3435
      %v3509 = vadd.f32 %v3251, %v3435
      %v3510 = vadd.f32 %v3252, %v3435
      %v3511 = vadd.f32 %v3253, %v3435
      %v3512 = vadd.f32 %v3254, %v3435
      %v3513 = vadd.f32 %v3255, %v3435
      %v3514 = vadd.f32 %v3256, %v3435
      %v3515 = vadd.f32 %v3257, %v3435
      %v3516 = vadd.f32 %v3258, %v3435
      %v3517 = vadd.f32 %v3259, %v3435
      %v3518 = vadd.f32 %v3260, %v3435
      %v3519 = vadd.f32 %v3261, %v3435
      %v3520 = vadd.f32 %v3262, %v3435
      %v3521 = vadd.f32 %v3263, %v3435
      %v3522 = vadd.f32 %v3264, %v3435
      %v3523 = vadd.f32 %v3265, %v3435
      %v3524 = vadd.f32 %v3266, %v3435
      %v3525 = vadd.f32 %v3267, %v3435
      %v3526 = vadd.f32 %v3268, %v3435
      %v3527 = vadd.f32 %v3269, %v3435
      %v3528 = vadd.f32 %v3270, %v3435
      %v3529 = vadd.f32 %v3271, %v3435
      %v3530 = vadd.f32 %v3272, %v3435
      %v3531 = vadd.f32 %v3273, %v3435
      %v3532 = vadd.f32 %v3274, %v3435
      %v3533 = vadd.f32 %v3275, %v3435
      %v3534 = vadd.f32 %v3276, %v3435
      %v3535 = vadd.f32 %v3277, %v3435
      %v3536 = vadd.f32 %v3278, %v3435
      %v3537 = vadd.f32 %v3279, %v3435
      %v3538 = vadd.f32 %v3280, %v3435
      %v3539 = vadd.f32 %v3281, %v3435
      %v3540 = vadd.f32 %v3282, %v3435
      %v3541 = vadd.f32 %v3283, %v3435
      %v3542 = vadd.f32 %v3284, %v3435
      %v3543 = vadd.f32 %v3285, %v3435
      %v3544 = vadd.f32 %v3286, %v3435
      %v3545 = vadd.f32 %v3287, %v3435
      %v3546 = vadd.f32 %v3288, %v3435
      %v3547 = vadd.f32 %v3289, %v3435
      %v3548 = vadd.f32 %v3290, %v3435
      %v3549 = vadd.f32 %v3291, %v3435
      %v3550 = vadd.f32 %v3292, %v3435
      %v3551 = vadd.f32 %v3293, %v3435
      %v3552 = vadd.f32 %v3294, %v3435
      %v3553 = vadd.f32 %v3295, %v3435
      %v3554 = vadd.f32 %v3296, %v3435
      %v3555 = vadd.f32 %v3297, %v3435
      %v3556 = vadd.f32 %v3298, %v3435
      %v3557 = vadd.f32 %v3299, %v3435
      %v3558 = vadd.f32 %v3300, %v3435
      %v3559 = vadd.f32 %v3301, %v3435
      %v3560 = vadd.f32 %v3302, %v3435
      %v3561 = vadd.f32 %v3303, %v3435
      %v3562 = vadd.f32 %v3304, %v3435
      %v3563 = vadd.f32 %v3305, %v3435
      %v3564 = vadd.f32 %v3306, %v3435
      %v3565 = vadd.f32 %v3307, %v3435
      %v3566 = vadd.f32 %v3308, %v3435
      %v3567 = vadd.f32 %v3309, %v3435
      %v3568 = vadd.f32 %v3310, %v3435
      %v3569 = vadd.f32 %v3311, %v3435
      %v3570 = vadd.f32 %v3312, %v3435
      %v3571 = vadd.f32 %v3313, %v3435
      %v3572 = vadd.f32 %v3314, %v3435
      %v3573 = vadd.f32 %v3315, %v3435
      %v3574 = vadd.f32 %v3316, %v3435
      %v3575 = vadd.f32 %v3317, %v3435
      %v3576 = vadd.f32 %v3318, %v3435
      %v3577 = vadd.f32 %v3319, %v3435
      %v3578 = vadd.f32 %v3320, %v3435
      %v3579 = vadd.f32 %v3321, %v3435
      %v3580 = vadd.f32 %v3322, %v3435
      %v3581 = vadd.f32 %v3323, %v3435
      %v3582 = vadd.f32 %v3324, %v3435
      %v3583 = vadd.f32 %v3325, %v3435
      %v3584 = vadd.f32 %v3326, %v3435
      %v3585 = vadd.f32 %v3327, %v3435
      %v3586 = vadd.f32 %v3328, %v3435
      %v3587 = vadd.f32 %v3329, %v3435
      %v3588 = vadd.f32 %v3330, %v3435
      %v3589 = vadd.f32 %v3331, %v3435
      %v3590 = vadd.f32 %v3332, %v3435
      %v3591 = vadd.f32 %v3333, %v3435
      %v3592 = vadd.f32 %v3334, %v3435
      %v3593 = vadd.f32 %v3335, %v3435
      %v3594 = vadd.f32 %v3336, %v3435
      %v3595 = vadd.f32 %v3337, %v3435
      %v3596 = vadd.f32 %v3338, %v3435
      %v3597 = vadd.f32 %v3339, %v3435
      %v3598 = vadd.f32 %v3340, %v3435
      %v3599 = vadd.f32 %v3341, %v3435
      %v3600 = vadd.f32 %v3342, %v3435
      %v3601 = vadd.f32 %v3343, %v3435
      %v3602 = vadd.f32 %v3344, %v3435
      %v3603 = vadd.f32 %v3345, %v3435
      %v3604 = vadd.f32 %v3346, %v3435
      %v3605 = vadd.f32 %v3347, %v3435
      %v3606 = vadd.f32 %v3348, %v3435
      %v3607 = vadd.f32 %v3349, %v3435
      %v3608 = vadd.f32 %v3350, %v3435
      %v3609 = vadd.f32 %v3351, %v3435
      %v3610 = vadd.f32 %v3352, %v3435
      %v3611 = vadd.f32 %v3353, %v3435
      %v3612 = vadd.f32 %v3354, %v3435
      %v3613 = vadd.f32 %v3355, %v3435
      %v3614 = vadd.f32 %v3356, %v3435
      %v3615 = vadd.f32 %v3357, %v3435
      %v3616 = vadd.f32 %v3358, %v3435
      %v3617 = vadd.f32 %v3359, %v3435
      %v3618 = vadd.f32 %v3360, %v3435
      %v3619 = vadd.f32 %v3361, %v3435
      %v3620 = vadd.f32 %v3362, %v3435
      %v3621 = vadd.f32 %v3363, %v3435
      %v3622 = vadd.f32 %v3364, %v3435
      %v3623 = vadd.f32 %v3365, %v3435
      %v3624 = vadd.f32 %v3366, %v3435
      %v3625 = vadd.f32 %v3367, %v3435
      %v3626 = vadd.f32 %v3368, %v3435
      %v3627 = vadd.f32 %v3369, %v3435
      %v3628 = vadd.f32 %v3370, %v3435
      %v3629 = vadd.f32 %v3371, %v3435
      %v3630 = vadd.f32 %v3372, %v3435
      %v3631 = vadd.f32 %v3373, %v3435
      %v3632 = vadd.f32 %v3374, %v3435
      %v3633 = vadd.f32 %v3375, %v3435
      %v3634 = vadd.f32 %v3376, %v3435
      %v3635 = vadd.f32 %v3377, %v3435
      %v3636 = vadd.f32 %v3378, %v3435
      %v3637 = vadd.f32 %v3379, %v3435
      %v3638 = vadd.f32 %v3380, %v3435
      %v3639 = vadd.f32 %v3381, %v3435
      %v3640 = vadd.f32 %v3382, %v3435
      %v3641 = vadd.f32 %v3383, %v3435
      %v3642 = vadd.f32 %v3384, %v3435
      %v3643 = vadd.f32 %v3385, %v3435
      %v3644 = vadd.f32 %v3386, %v3435
      %v3645 = vadd.f32 %v3387, %v3435
      %v3646 = vadd.f32 %v3388, %v3435
      %v3647 = vadd.f32 %v3389, %v3435
      %v3648 = vadd.f32 %v3390, %v3435
      %v3649 = vadd.f32 %v3391, %v3435
      %v3650 = vadd.f32 %v3392, %v3435
      %v3651 = vadd.f32 %v3393, %v3435
      %v3652 = vadd.f32 %v3394, %v3435
      %v3653 = vadd.f32 %v3395, %v3435
      %v3654 = vadd.f32 %v3396, %v3435
      %v3655 = vadd.f32 %v3397, %v3435
      %v3656 = vadd.f32 %v3398, %v3435
      %v3657 = vadd.f32 %v3399, %v3435
      %v3658 = vadd.f32 %v3400, %v3435
      %v3659 = vadd.f32 %v3401, %v3435
      %v3660 = vadd.f32 %v3402, %v3435
      %v3661 = vadd.f32 %v3403, %v3435
      %v3662 = vadd.f32 %v3404, %v3435
      %v3663 = vadd.f32 %v3405, %v3435
      %v3664 = vadd.f32 %v3406, %v3435
      %v3665 = vadd.f32 %v3407, %v3435
      %v3666 = vadd.f32 %v3408, %v3435
      %v3667 = vadd.f32 %v3409, %v3435
      %v3668 = vadd.f32 %v3410, %v3435
      %v3669 = vadd.f32 %v3411, %v3435
      %v3670 = vadd.f32 %v3412, %v3435
      %v3671 = vadd.f32 %v3413, %v3435
      %v3672 = vadd.f32 %v3414, %v3435
      %v3673 = vadd.f32 %v3415, %v3435
      %v3674 = vadd.f32 %v3416, %v3435
      %v3675 = vadd.f32 %v3417, %v3435
      %v3676 = vadd.f32 %v3418, %v3435
      %v3677 = vadd.f32 %v3419, %v3435
      %v3678 = vadd.f32 %v3420, %v3435
      %v3679 = vadd.f32 %v3421, %v3435
      %v3680 = vadd.f32 %v3422, %v3435
      %v3681 = vadd.f32 %v3423, %v3435
      %v3682 = vadd.f32 %v3424, %v3435
      %v3683 = vadd.f32 %v3425, %v3435
      %v3684 = vadd.f32 %v3426, %v3435
      %v3685 = vadd.f32 %v3427, %v3435
      %v3686 = vadd.f32 %v3428, %v3435
      %v3687 = vadd.f32 %v3429, %v3435
      %v3688 = vadd.f32 %v3430, %v3435
      %v3689 = vadd.f32 %v3431, %v3435
      %v3690 = vadd.f32 %v3432, %v3435
      %v3691 = vadd.f32 %v3433, %v3435
      %3692 = vst.msk [vmem:[%s3] sm:$0xff] %vm2918, %v3436
      %3693 = vst.msk [vmem:[%s3 + $0x8] sm:$0xff] %vm2918, %v3437
      %3694 = vst.msk [vmem:[%s3 + $0x10] sm:$0xff] %vm2918, %v3438
      %3695 = vst.msk [vmem:[%s3 + $0x18] sm:$0xff] %vm2918, %v3439
      %3696 = vst.msk [vmem:[%s3 + $0x20] sm:$0xff] %vm2918, %v3440
      %3697 = vst.msk [vmem:[%s3 + $0x28] sm:$0xff] %vm2918, %v3441
      %3698 = vst.msk [vmem:[%s3 + $0x30] sm:$0xff] %vm2918, %v3442
      %3699 = vst.msk [vmem:[%s3 + $0x38] sm:$0xff] %vm2918, %v3443
      %3700 = vst.msk [vmem:[%s3 + $0x40] sm:$0xff] %vm2918, %v3444
      %3701 = vst.msk [vmem:[%s3 + $0x48] sm:$0xff] %vm2918, %v3445
      %3702 = vst.msk [vmem:[%s3 + $0x50] sm:$0xff] %vm2918, %v3446
      %3703 = vst.msk [vmem:[%s3 + $0x58] sm:$0xff] %vm2918, %v3447
      %3704 = vst.msk [vmem:[%s3 + $0x60] sm:$0xff] %vm2918, %v3448
      %3705 = vst.msk [vmem:[%s3 + $0x68] sm:$0xff] %vm2918, %v3449
      %3706 = vst.msk [vmem:[%s3 + $0x70] sm:$0xff] %vm2918, %v3450
      %3707 = vst.msk [vmem:[%s3 + $0x78] sm:$0xff] %vm2918, %v3451
      %3708 = vst.msk [vmem:[%s3 + $0x80] sm:$0xff] %vm2918, %v3452
      %3709 = vst.msk [vmem:[%s3 + $0x88] sm:$0xff] %vm2918, %v3453
      %3710 = vst.msk [vmem:[%s3 + $0x90] sm:$0xff] %vm2918, %v3454
      %3711 = vst.msk [vmem:[%s3 + $0x98] sm:$0xff] %vm2918, %v3455
      %3712 = vst.msk [vmem:[%s3 + $0xa0] sm:$0xff] %vm2918, %v3456
      %3713 = vst.msk [vmem:[%s3 + $0xa8] sm:$0xff] %vm2918, %v3457
      %3714 = vst.msk [vmem:[%s3 + $0xb0] sm:$0xff] %vm2918, %v3458
      %3715 = vst.msk [vmem:[%s3 + $0xb8] sm:$0xff] %vm2918, %v3459
      %3716 = vst.msk [vmem:[%s3 + $0xc0] sm:$0xff] %vm2918, %v3460
      %3717 = vst.msk [vmem:[%s3 + $0xc8] sm:$0xff] %vm2918, %v3461
      %3718 = vst.msk [vmem:[%s3 + $0xd0] sm:$0xff] %vm2918, %v3462
      %3719 = vst.msk [vmem:[%s3 + $0xd8] sm:$0xff] %vm2918, %v3463
      %3720 = vst.msk [vmem:[%s3 + $0xe0] sm:$0xff] %vm2918, %v3464
      %3721 = vst.msk [vmem:[%s3 + $0xe8] sm:$0xff] %vm2918, %v3465
      %3722 = vst.msk [vmem:[%s3 + $0xf0] sm:$0xff] %vm2918, %v3466
      %3723 = vst.msk [vmem:[%s3 + $0xf8] sm:$0xff] %vm2918, %v3467
      %3724 = vst.msk [vmem:[%s3 + $0x100] sm:$0xff] %vm2918, %v3468
      %3725 = vst.msk [vmem:[%s3 + $0x108] sm:$0xff] %vm2918, %v3469
      %3726 = vst.msk [vmem:[%s3 + $0x110] sm:$0xff] %vm2918, %v3470
      %3727 = vst.msk [vmem:[%s3 + $0x118] sm:$0xff] %vm2918, %v3471
      %3728 = vst.msk [vmem:[%s3 + $0x120] sm:$0xff] %vm2918, %v3472
      %3729 = vst.msk [vmem:[%s3 + $0x128] sm:$0xff] %vm2918, %v3473
      %3730 = vst.msk [vmem:[%s3 + $0x130] sm:$0xff] %vm2918, %v3474
      %3731 = vst.msk [vmem:[%s3 + $0x138] sm:$0xff] %vm2918, %v3475
      %3732 = vst.msk [vmem:[%s3 + $0x140] sm:$0xff] %vm2918, %v3476
      %3733 = vst.msk [vmem:[%s3 + $0x148] sm:$0xff] %vm2918, %v3477
      %3734 = vst.msk [vmem:[%s3 + $0x150] sm:$0xff] %vm2918, %v3478
      %3735 = vst.msk [vmem:[%s3 + $0x158] sm:$0xff] %vm2918, %v3479
      %3736 = vst.msk [vmem:[%s3 + $0x160] sm:$0xff] %vm2918, %v3480
      %3737 = vst.msk [vmem:[%s3 + $0x168] sm:$0xff] %vm2918, %v3481
      %3738 = vst.msk [vmem:[%s3 + $0x170] sm:$0xff] %vm2918, %v3482
      %3739 = vst.msk [vmem:[%s3 + $0x178] sm:$0xff] %vm2918, %v3483
      %3740 = vst.msk [vmem:[%s3 + $0x180] sm:$0xff] %vm2918, %v3484
      %3741 = vst.msk [vmem:[%s3 + $0x188] sm:$0xff] %vm2918, %v3485
      %3742 = vst.msk [vmem:[%s3 + $0x190] sm:$0xff] %vm2918, %v3486
      %3743 = vst.msk [vmem:[%s3 + $0x198] sm:$0xff] %vm2918, %v3487
      %3744 = vst.msk [vmem:[%s3 + $0x1a0] sm:$0xff] %vm2918, %v3488
      %3745 = vst.msk [vmem:[%s3 + $0x1a8] sm:$0xff] %vm2918, %v3489
      %3746 = vst.msk [vmem:[%s3 + $0x1b0] sm:$0xff] %vm2918, %v3490
      %3747 = vst.msk [vmem:[%s3 + $0x1b8] sm:$0xff] %vm2918, %v3491
      %3748 = vst.msk [vmem:[%s3 + $0x1c0] sm:$0xff] %vm2918, %v3492
      %3749 = vst.msk [vmem:[%s3 + $0x1c8] sm:$0xff] %vm2918, %v3493
      %3750 = vst.msk [vmem:[%s3 + $0x1d0] sm:$0xff] %vm2918, %v3494
      %3751 = vst.msk [vmem:[%s3 + $0x1d8] sm:$0xff] %vm2918, %v3495
      %3752 = vst.msk [vmem:[%s3 + $0x1e0] sm:$0xff] %vm2918, %v3496
      %3753 = vst.msk [vmem:[%s3 + $0x1e8] sm:$0xff] %vm2918, %v3497
      %3754 = vst.msk [vmem:[%s3 + $0x1f0] sm:$0xff] %vm2918, %v3498
      %3755 = vst.msk [vmem:[%s3 + $0x1f8] sm:$0xff] %vm2918, %v3499
      %3756 = vst.msk [vmem:[%s3 + $0x200] sm:$0xff] %vm2918, %v3500
      %3757 = vst.msk [vmem:[%s3 + $0x208] sm:$0xff] %vm2918, %v3501
      %3758 = vst.msk [vmem:[%s3 + $0x210] sm:$0xff] %vm2918, %v3502
      %3759 = vst.msk [vmem:[%s3 + $0x218] sm:$0xff] %vm2918, %v3503
      %3760 = vst.msk [vmem:[%s3 + $0x220] sm:$0xff] %vm2918, %v3504
      %3761 = vst.msk [vmem:[%s3 + $0x228] sm:$0xff] %vm2918, %v3505
      %3762 = vst.msk [vmem:[%s3 + $0x230] sm:$0xff] %vm2918, %v3506
      %3763 = vst.msk [vmem:[%s3 + $0x238] sm:$0xff] %vm2918, %v3507
      %3764 = vst.msk [vmem:[%s3 + $0x240] sm:$0xff] %vm2918, %v3508
      %3765 = vst.msk [vmem:[%s3 + $0x248] sm:$0xff] %vm2918, %v3509
      %3766 = vst.msk [vmem:[%s3 + $0x250] sm:$0xff] %vm2918, %v3510
      %3767 = vst.msk [vmem:[%s3 + $0x258] sm:$0xff] %vm2918, %v3511
      %3768 = vst.msk [vmem:[%s3 + $0x260] sm:$0xff] %vm2918, %v3512
      %3769 = vst.msk [vmem:[%s3 + $0x268] sm:$0xff] %vm2918, %v3513
      %3770 = vst.msk [vmem:[%s3 + $0x270] sm:$0xff] %vm2918, %v3514
      %3771 = vst.msk [vmem:[%s3 + $0x278] sm:$0xff] %vm2918, %v3515
      %3772 = vst.msk [vmem:[%s3 + $0x280] sm:$0xff] %vm2918, %v3516
      %3773 = vst.msk [vmem:[%s3 + $0x288] sm:$0xff] %vm2918, %v3517
      %3774 = vst.msk [vmem:[%s3 + $0x290] sm:$0xff] %vm2918, %v3518
      %3775 = vst.msk [vmem:[%s3 + $0x298] sm:$0xff] %vm2918, %v3519
      %3776 = vst.msk [vmem:[%s3 + $0x2a0] sm:$0xff] %vm2918, %v3520
      %3777 = vst.msk [vmem:[%s3 + $0x2a8] sm:$0xff] %vm2918, %v3521
      %3778 = vst.msk [vmem:[%s3 + $0x2b0] sm:$0xff] %vm2918, %v3522
      %3779 = vst.msk [vmem:[%s3 + $0x2b8] sm:$0xff] %vm2918, %v3523
      %3780 = vst.msk [vmem:[%s3 + $0x2c0] sm:$0xff] %vm2918, %v3524
      %3781 = vst.msk [vmem:[%s3 + $0x2c8] sm:$0xff] %vm2918, %v3525
      %3782 = vst.msk [vmem:[%s3 + $0x2d0] sm:$0xff] %vm2918, %v3526
      %3783 = vst.msk [vmem:[%s3 + $0x2d8] sm:$0xff] %vm2918, %v3527
      %3784 = vst.msk [vmem:[%s3 + $0x2e0] sm:$0xff] %vm2918, %v3528
      %3785 = vst.msk [vmem:[%s3 + $0x2e8] sm:$0xff] %vm2918, %v3529
      %3786 = vst.msk [vmem:[%s3 + $0x2f0] sm:$0xff] %vm2918, %v3530
      %3787 = vst.msk [vmem:[%s3 + $0x2f8] sm:$0xff] %vm2918, %v3531
      %3788 = vst.msk [vmem:[%s3 + $0x300] sm:$0xff] %vm2918, %v3532
      %3789 = vst.msk [vmem:[%s3 + $0x308] sm:$0xff] %vm2918, %v3533
      %3790 = vst.msk [vmem:[%s3 + $0x310] sm:$0xff] %vm2918, %v3534
      %3791 = vst.msk [vmem:[%s3 + $0x318] sm:$0xff] %vm2918, %v3535
      %3792 = vst.msk [vmem:[%s3 + $0x320] sm:$0xff] %vm2918, %v3536
      %3793 = vst.msk [vmem:[%s3 + $0x328] sm:$0xff] %vm2918, %v3537
      %3794 = vst.msk [vmem:[%s3 + $0x330] sm:$0xff] %vm2918, %v3538
      %3795 = vst.msk [vmem:[%s3 + $0x338] sm:$0xff] %vm2918, %v3539
      %3796 = vst.msk [vmem:[%s3 + $0x340] sm:$0xff] %vm2918, %v3540
      %3797 = vst.msk [vmem:[%s3 + $0x348] sm:$0xff] %vm2918, %v3541
      %3798 = vst.msk [vmem:[%s3 + $0x350] sm:$0xff] %vm2918, %v3542
      %3799 = vst.msk [vmem:[%s3 + $0x358] sm:$0xff] %vm2918, %v3543
      %3800 = vst.msk [vmem:[%s3 + $0x360] sm:$0xff] %vm2918, %v3544
      %3801 = vst.msk [vmem:[%s3 + $0x368] sm:$0xff] %vm2918, %v3545
      %3802 = vst.msk [vmem:[%s3 + $0x370] sm:$0xff] %vm2918, %v3546
      %3803 = vst.msk [vmem:[%s3 + $0x378] sm:$0xff] %vm2918, %v3547
      %3804 = vst.msk [vmem:[%s3 + $0x380] sm:$0xff] %vm2918, %v3548
      %3805 = vst.msk [vmem:[%s3 + $0x388] sm:$0xff] %vm2918, %v3549
      %3806 = vst.msk [vmem:[%s3 + $0x390] sm:$0xff] %vm2918, %v3550
      %3807 = vst.msk [vmem:[%s3 + $0x398] sm:$0xff] %vm2918, %v3551
      %3808 = vst.msk [vmem:[%s3 + $0x3a0] sm:$0xff] %vm2918, %v3552
      %3809 = vst.msk [vmem:[%s3 + $0x3a8] sm:$0xff] %vm2918, %v3553
      %3810 = vst.msk [vmem:[%s3 + $0x3b0] sm:$0xff] %vm2918, %v3554
      %3811 = vst.msk [vmem:[%s3 + $0x3b8] sm:$0xff] %vm2918, %v3555
      %3812 = vst.msk [vmem:[%s3 + $0x3c0] sm:$0xff] %vm2918, %v3556
      %3813 = vst.msk [vmem:[%s3 + $0x3c8] sm:$0xff] %vm2918, %v3557
      %3814 = vst.msk [vmem:[%s3 + $0x3d0] sm:$0xff] %vm2918, %v3558
      %3815 = vst.msk [vmem:[%s3 + $0x3d8] sm:$0xff] %vm2918, %v3559
      %3816 = vst.msk [vmem:[%s3 + $0x3e0] sm:$0xff] %vm2918, %v3560
      %3817 = vst.msk [vmem:[%s3 + $0x3e8] sm:$0xff] %vm2918, %v3561
      %3818 = vst.msk [vmem:[%s3 + $0x3f0] sm:$0xff] %vm2918, %v3562
      %3819 = vst.msk [vmem:[%s3 + $0x3f8] sm:$0xff] %vm2918, %v3563
      %3820 = vst.msk [vmem:[%s3 + $0x400] sm:$0xff] %vm2918, %v3564
      %3821 = vst.msk [vmem:[%s3 + $0x408] sm:$0xff] %vm2918, %v3565
      %3822 = vst.msk [vmem:[%s3 + $0x410] sm:$0xff] %vm2918, %v3566
      %3823 = vst.msk [vmem:[%s3 + $0x418] sm:$0xff] %vm2918, %v3567
      %3824 = vst.msk [vmem:[%s3 + $0x420] sm:$0xff] %vm2918, %v3568
      %3825 = vst.msk [vmem:[%s3 + $0x428] sm:$0xff] %vm2918, %v3569
      %3826 = vst.msk [vmem:[%s3 + $0x430] sm:$0xff] %vm2918, %v3570
      %3827 = vst.msk [vmem:[%s3 + $0x438] sm:$0xff] %vm2918, %v3571
      %3828 = vst.msk [vmem:[%s3 + $0x440] sm:$0xff] %vm2918, %v3572
      %3829 = vst.msk [vmem:[%s3 + $0x448] sm:$0xff] %vm2918, %v3573
      %3830 = vst.msk [vmem:[%s3 + $0x450] sm:$0xff] %vm2918, %v3574
      %3831 = vst.msk [vmem:[%s3 + $0x458] sm:$0xff] %vm2918, %v3575
      %3832 = vst.msk [vmem:[%s3 + $0x460] sm:$0xff] %vm2918, %v3576
      %3833 = vst.msk [vmem:[%s3 + $0x468] sm:$0xff] %vm2918, %v3577
      %3834 = vst.msk [vmem:[%s3 + $0x470] sm:$0xff] %vm2918, %v3578
      %3835 = vst.msk [vmem:[%s3 + $0x478] sm:$0xff] %vm2918, %v3579
      %3836 = vst.msk [vmem:[%s3 + $0x480] sm:$0xff] %vm2918, %v3580
      %3837 = vst.msk [vmem:[%s3 + $0x488] sm:$0xff] %vm2918, %v3581
      %3838 = vst.msk [vmem:[%s3 + $0x490] sm:$0xff] %vm2918, %v3582
      %3839 = vst.msk [vmem:[%s3 + $0x498] sm:$0xff] %vm2918, %v3583
      %3840 = vst.msk [vmem:[%s3 + $0x4a0] sm:$0xff] %vm2918, %v3584
      %3841 = vst.msk [vmem:[%s3 + $0x4a8] sm:$0xff] %vm2918, %v3585
      %3842 = vst.msk [vmem:[%s3 + $0x4b0] sm:$0xff] %vm2918, %v3586
      %3843 = vst.msk [vmem:[%s3 + $0x4b8] sm:$0xff] %vm2918, %v3587
      %3844 = vst.msk [vmem:[%s3 + $0x4c0] sm:$0xff] %vm2918, %v3588
      %3845 = vst.msk [vmem:[%s3 + $0x4c8] sm:$0xff] %vm2918, %v3589
      %3846 = vst.msk [vmem:[%s3 + $0x4d0] sm:$0xff] %vm2918, %v3590
      %3847 = vst.msk [vmem:[%s3 + $0x4d8] sm:$0xff] %vm2918, %v3591
      %3848 = vst.msk [vmem:[%s3 + $0x4e0] sm:$0xff] %vm2918, %v3592
      %3849 = vst.msk [vmem:[%s3 + $0x4e8] sm:$0xff] %vm2918, %v3593
      %3850 = vst.msk [vmem:[%s3 + $0x4f0] sm:$0xff] %vm2918, %v3594
      %3851 = vst.msk [vmem:[%s3 + $0x4f8] sm:$0xff] %vm2918, %v3595
      %3852 = vst.msk [vmem:[%s3 + $0x500] sm:$0xff] %vm2918, %v3596
      %3853 = vst.msk [vmem:[%s3 + $0x508] sm:$0xff] %vm2918, %v3597
      %3854 = vst.msk [vmem:[%s3 + $0x510] sm:$0xff] %vm2918, %v3598
      %3855 = vst.msk [vmem:[%s3 + $0x518] sm:$0xff] %vm2918, %v3599
      %3856 = vst.msk [vmem:[%s3 + $0x520] sm:$0xff] %vm2918, %v3600
      %3857 = vst.msk [vmem:[%s3 + $0x528] sm:$0xff] %vm2918, %v3601
      %3858 = vst.msk [vmem:[%s3 + $0x530] sm:$0xff] %vm2918, %v3602
      %3859 = vst.msk [vmem:[%s3 + $0x538] sm:$0xff] %vm2918, %v3603
      %3860 = vst.msk [vmem:[%s3 + $0x540] sm:$0xff] %vm2918, %v3604
      %3861 = vst.msk [vmem:[%s3 + $0x548] sm:$0xff] %vm2918, %v3605
      %3862 = vst.msk [vmem:[%s3 + $0x550] sm:$0xff] %vm2918, %v3606
      %3863 = vst.msk [vmem:[%s3 + $0x558] sm:$0xff] %vm2918, %v3607
      %3864 = vst.msk [vmem:[%s3 + $0x560] sm:$0xff] %vm2918, %v3608
      %3865 = vst.msk [vmem:[%s3 + $0x568] sm:$0xff] %vm2918, %v3609
      %3866 = vst.msk [vmem:[%s3 + $0x570] sm:$0xff] %vm2918, %v3610
      %3867 = vst.msk [vmem:[%s3 + $0x578] sm:$0xff] %vm2918, %v3611
      %3868 = vst.msk [vmem:[%s3 + $0x580] sm:$0xff] %vm2918, %v3612
      %3869 = vst.msk [vmem:[%s3 + $0x588] sm:$0xff] %vm2918, %v3613
      %3870 = vst.msk [vmem:[%s3 + $0x590] sm:$0xff] %vm2918, %v3614
      %3871 = vst.msk [vmem:[%s3 + $0x598] sm:$0xff] %vm2918, %v3615
      %3872 = vst.msk [vmem:[%s3 + $0x5a0] sm:$0xff] %vm2918, %v3616
      %3873 = vst.msk [vmem:[%s3 + $0x5a8] sm:$0xff] %vm2918, %v3617
      %3874 = vst.msk [vmem:[%s3 + $0x5b0] sm:$0xff] %vm2918, %v3618
      %3875 = vst.msk [vmem:[%s3 + $0x5b8] sm:$0xff] %vm2918, %v3619
      %3876 = vst.msk [vmem:[%s3 + $0x5c0] sm:$0xff] %vm2918, %v3620
      %3877 = vst.msk [vmem:[%s3 + $0x5c8] sm:$0xff] %vm2918, %v3621
      %3878 = vst.msk [vmem:[%s3 + $0x5d0] sm:$0xff] %vm2918, %v3622
      %3879 = vst.msk [vmem:[%s3 + $0x5d8] sm:$0xff] %vm2918, %v3623
      %3880 = vst.msk [vmem:[%s3 + $0x5e0] sm:$0xff] %vm2918, %v3624
      %3881 = vst.msk [vmem:[%s3 + $0x5e8] sm:$0xff] %vm2918, %v3625
      %3882 = vst.msk [vmem:[%s3 + $0x5f0] sm:$0xff] %vm2918, %v3626
      %3883 = vst.msk [vmem:[%s3 + $0x5f8] sm:$0xff] %vm2918, %v3627
      %3884 = vst.msk [vmem:[%s3 + $0x600] sm:$0xff] %vm2918, %v3628
      %3885 = vst.msk [vmem:[%s3 + $0x608] sm:$0xff] %vm2918, %v3629
      %3886 = vst.msk [vmem:[%s3 + $0x610] sm:$0xff] %vm2918, %v3630
      %3887 = vst.msk [vmem:[%s3 + $0x618] sm:$0xff] %vm2918, %v3631
      %3888 = vst.msk [vmem:[%s3 + $0x620] sm:$0xff] %vm2918, %v3632
      %3889 = vst.msk [vmem:[%s3 + $0x628] sm:$0xff] %vm2918, %v3633
      %3890 = vst.msk [vmem:[%s3 + $0x630] sm:$0xff] %vm2918, %v3634
      %3891 = vst.msk [vmem:[%s3 + $0x638] sm:$0xff] %vm2918, %v3635
      %3892 = vst.msk [vmem:[%s3 + $0x640] sm:$0xff] %vm2918, %v3636
      %3893 = vst.msk [vmem:[%s3 + $0x648] sm:$0xff] %vm2918, %v3637
      %3894 = vst.msk [vmem:[%s3 + $0x650] sm:$0xff] %vm2918, %v3638
      %3895 = vst.msk [vmem:[%s3 + $0x658] sm:$0xff] %vm2918, %v3639
      %3896 = vst.msk [vmem:[%s3 + $0x660] sm:$0xff] %vm2918, %v3640
      %3897 = vst.msk [vmem:[%s3 + $0x668] sm:$0xff] %vm2918, %v3641
      %3898 = vst.msk [vmem:[%s3 + $0x670] sm:$0xff] %vm2918, %v3642
      %3899 = vst.msk [vmem:[%s3 + $0x678] sm:$0xff] %vm2918, %v3643
      %3900 = vst.msk [vmem:[%s3 + $0x680] sm:$0xff] %vm2918, %v3644
      %3901 = vst.msk [vmem:[%s3 + $0x688] sm:$0xff] %vm2918, %v3645
      %3902 = vst.msk [vmem:[%s3 + $0x690] sm:$0xff] %vm2918, %v3646
      %3903 = vst.msk [vmem:[%s3 + $0x698] sm:$0xff] %vm2918, %v3647
      %3904 = vst.msk [vmem:[%s3 + $0x6a0] sm:$0xff] %vm2918, %v3648
      %3905 = vst.msk [vmem:[%s3 + $0x6a8] sm:$0xff] %vm2918, %v3649
      %3906 = vst.msk [vmem:[%s3 + $0x6b0] sm:$0xff] %vm2918, %v3650
      %3907 = vst.msk [vmem:[%s3 + $0x6b8] sm:$0xff] %vm2918, %v3651
      %3908 = vst.msk [vmem:[%s3 + $0x6c0] sm:$0xff] %vm2918, %v3652
      %3909 = vst.msk [vmem:[%s3 + $0x6c8] sm:$0xff] %vm2918, %v3653
      %3910 = vst.msk [vmem:[%s3 + $0x6d0] sm:$0xff] %vm2918, %v3654
      %3911 = vst.msk [vmem:[%s3 + $0x6d8] sm:$0xff] %vm2918, %v3655
      %3912 = vst.msk [vmem:[%s3 + $0x6e0] sm:$0xff] %vm2918, %v3656
      %3913 = vst.msk [vmem:[%s3 + $0x6e8] sm:$0xff] %vm2918, %v3657
      %3914 = vst.msk [vmem:[%s3 + $0x6f0] sm:$0xff] %vm2918, %v3658
      %3915 = vst.msk [vmem:[%s3 + $0x6f8] sm:$0xff] %vm2918, %v3659
      %3916 = vst.msk [vmem:[%s3 + $0x700] sm:$0xff] %vm2918, %v3660
      %3917 = vst.msk [vmem:[%s3 + $0x708] sm:$0xff] %vm2918, %v3661
      %3918 = vst.msk [vmem:[%s3 + $0x710] sm:$0xff] %vm2918, %v3662
      %3919 = vst.msk [vmem:[%s3 + $0x718] sm:$0xff] %vm2918, %v3663
      %3920 = vst.msk [vmem:[%s3 + $0x720] sm:$0xff] %vm2918, %v3664
      %3921 = vst.msk [vmem:[%s3 + $0x728] sm:$0xff] %vm2918, %v3665
      %3922 = vst.msk [vmem:[%s3 + $0x730] sm:$0xff] %vm2918, %v3666
      %3923 = vst.msk [vmem:[%s3 + $0x738] sm:$0xff] %vm2918, %v3667
      %3924 = vst.msk [vmem:[%s3 + $0x740] sm:$0xff] %vm2918, %v3668
      %3925 = vst.msk [vmem:[%s3 + $0x748] sm:$0xff] %vm2918, %v3669
      %3926 = vst.msk [vmem:[%s3 + $0x750] sm:$0xff] %vm2918, %v3670
      %3927 = vst.msk [vmem:[%s3 + $0x758] sm:$0xff] %vm2918, %v3671
      %3928 = vst.msk [vmem:[%s3 + $0x760] sm:$0xff] %vm2918, %v3672
      %3929 = vst.msk [vmem:[%s3 + $0x768] sm:$0xff] %vm2918, %v3673
      %3930 = vst.msk [vmem:[%s3 + $0x770] sm:$0xff] %vm2918, %v3674
      %3931 = vst.msk [vmem:[%s3 + $0x778] sm:$0xff] %vm2918, %v3675
      %3932 = vst.msk [vmem:[%s3 + $0x780] sm:$0xff] %vm2918, %v3676
      %3933 = vst.msk [vmem:[%s3 + $0x788] sm:$0xff] %vm2918, %v3677
      %3934 = vst.msk [vmem:[%s3 + $0x790] sm:$0xff] %vm2918, %v3678
      %3935 = vst.msk [vmem:[%s3 + $0x798] sm:$0xff] %vm2918, %v3679
      %3936 = vst.msk [vmem:[%s3 + $0x7a0] sm:$0xff] %vm2918, %v3680
      %3937 = vst.msk [vmem:[%s3 + $0x7a8] sm:$0xff] %vm2918, %v3681
      %3938 = vst.msk [vmem:[%s3 + $0x7b0] sm:$0xff] %vm2918, %v3682
      %3939 = vst.msk [vmem:[%s3 + $0x7b8] sm:$0xff] %vm2918, %v3683
      %3940 = vst.msk [vmem:[%s3 + $0x7c0] sm:$0xff] %vm2918, %v3684
      %3941 = vst.msk [vmem:[%s3 + $0x7c8] sm:$0xff] %vm2918, %v3685
      %3942 = vst.msk [vmem:[%s3 + $0x7d0] sm:$0xff] %vm2918, %v3686
      %3943 = vst.msk [vmem:[%s3 + $0x7d8] sm:$0xff] %vm2918, %v3687
      %3944 = vst.msk [vmem:[%s3 + $0x7e0] sm:$0xff] %vm2918, %v3688
      %3945 = vst.msk [vmem:[%s3 + $0x7e8] sm:$0xff] %vm2918, %v3689
      %3946 = vst.msk [vmem:[%s3 + $0x7f0] sm:$0xff] %vm2918, %v3690
      %3947 = vst.msk [vmem:[%s3 + $0x7f8] sm:$0xff] %vm2918, %v3691
    $region25: #{tpu_custom_call.1} parent=1 // pred_fallthru
      _
    // Predicated region
    $region26: #{tpu_custom_call.1} parent=1 // pred_check
      _
    $region27: #{tpu_custom_call.1} parent=1 // pred_check_branch
      %3949 = sbr.rel (0) target = $region29
    $region28: #{tpu_custom_call.1} parent=1 // pred_region
      _
    $region29: #{tpu_custom_call.1} parent=1 // pred_fallthru
      _
    // Predicated region
    $region30: #{tpu_custom_call.1} parent=1 // pred_check
      _
    $region31: #{tpu_custom_call.1} parent=1 // pred_check_branch
      %3951 = sbr.rel (0) target = $region33
    $region32: #{tpu_custom_call.1} parent=1 // pred_region
      _
    $region33: #{tpu_custom_call.1} parent=1 // pred_fallthru
      _
    %3952 = vsyncpa [#allocation5], 1

</llo_original>
